<compile_context>
chip_gen: v7x
topology: tpu7x:2x2x1
jax: 0.10.0
libtpu: 0.0.40
codegen_flags: <defaults>
</compile_context>

<pallas_src>
import functools

import jax
import jax.numpy as jnp
from jax.experimental import pallas as pl
from jax.experimental.pallas import tpu as pltpu


# ----------------------------------------------------------------------------
# Kernel A: conv (in-kernel im2col via shifted windows) on the MXU
#           + per-image partial BatchNorm reductions (sum / sum-of-squares)
# ----------------------------------------------------------------------------
def _conv_stats_kernel(x_ref, w_ref, y_ref, stats_ref, *,
                       kh, kw, stride, oh, ow, cin):
    cpad = y_ref.shape[-1]                       # Cout padded to 128 (lane-dense)
    xp = x_ref[0]                                # (Hp, Wp, Cin) f32, padded image
    acc = jnp.zeros((oh * ow, cpad), jnp.float32)
    for i in range(kh):
        for j in range(kw):
            win = jax.lax.slice(
                xp, (i, j, 0),
                (i + (oh - 1) * stride + 1, j + (ow - 1) * stride + 1, cin),
                (stride, stride, 1))             # (OH, OW, Cin)
            lhs = win.reshape(oh * ow, cin).astype(jnp.bfloat16)
            rhs = w_ref[(i * kw + j) * cin:(i * kw + j + 1) * cin, :]  # (Cin, CPAD) bf16
            acc = acc + jnp.dot(lhs, rhs, preferred_element_type=jnp.float32)
    y_ref[...] = acc                             # (OH*OW, CPAD) f32, unmasked vst

    # Partial batch-norm statistics for this image, packed into one (8, CPAD)
    # vreg-aligned block: row 0 = sum, row 1 = sum of squares.
    s = jnp.sum(acc, axis=0, keepdims=True)
    sq = jnp.sum(acc * acc, axis=0, keepdims=True)
    pad_rows = stats_ref.shape[0] - 2
    stats_ref[...] = jnp.concatenate(
        [s, sq, jnp.zeros((pad_rows, cpad), jnp.float32)], axis=0)


# ----------------------------------------------------------------------------
# Kernel B: fused BatchNorm (folded scale/shift) + ReLU + separable MaxPool2d
# pool_k == pool_s == 1, pool_p == 0 degenerates to "no pooling".
# ----------------------------------------------------------------------------
def _bn_relu_pool_kernel(y_ref, scale_ref, shift_ref, o_ref, *,
                         pool_k, pool_s, pool_p, out_h, out_w):
    _, oh, ow, c = y_ref.shape
    scale = scale_ref[...].reshape(1, 1, c)
    shift = shift_ref[...].reshape(1, 1, c)
    z = jnp.maximum(y_ref[0] * scale + shift, 0.0)          # (OH, OW, C) f32

    if pool_k == 1 and pool_s == 1 and pool_p == 0:
        o_ref[...] = z[None]
        return

    # Separable max-pool: reduce over kw, then kh (2k passes instead of k^2).
    # Post-ReLU activations are >= 0, so zero-padding the border is exactly
    # equivalent to PyTorch's -inf padding (every window has >=1 real element).
    zw = jnp.pad(z, ((0, 0), (pool_p, pool_p), (0, 0)))
    wmax = None
    for j in range(pool_k):
        sl = jax.lax.slice(zw, (0, j, 0),
                           (oh, j + (out_w - 1) * pool_s + 1, c),
                           (1, pool_s, 1))
        wmax = sl if wmax is None else jnp.maximum(wmax, sl)

    zh = jnp.pad(wmax, ((pool_p, pool_p), (0, 0), (0, 0)))
    hmax = None
    for i in range(pool_k):
        sl = jax.lax.slice(zh, (i, 0, 0),
                           (i + (out_h - 1) * pool_s + 1, out_w, c),
                           (pool_s, 1, 1))
        hmax = sl if hmax is None else jnp.maximum(hmax, sl)

    o_ref[...] = hmax[None].astype(o_ref.dtype)


# ----------------------------------------------------------------------------
# Forward pass of CNN_BasicBlock
# ----------------------------------------------------------------------------
def cnn_basic_block_forward(x_nchw, params, *, kernel, stride, padding,
                            pool=True, pooling_type="maxpool",
                            pool_fix_size=False, eps=1e-5):
    assert pooling_type == "maxpool"
    w, gamma, beta = params["conv_w"], params["bn_w"], params["bn_b"]
    # NOTE: params["conv_b"] is intentionally unused — train-mode BatchNorm
    # subtracts the per-channel batch mean, so the conv bias cancels exactly.
    cout, cin, kh, kw = w.shape
    n, _, h, w_in = x_nchw.shape
    oh = (h + 2 * padding - kh) // stride + 1
    ow = (w_in + 2 * padding - kw) // stride + 1
    hp, wp = h + 2 * padding, w_in + 2 * padding
    cpad = ((cout + 127) // 128) * 128            # lane-dense channel padding

    # NCHW -> NHWC, spatial zero pad (conv padding) once; channels stay on lanes.
    x_nhwc = jnp.transpose(x_nchw, (0, 2, 3, 1)).astype(jnp.float32)
    x_pad = jnp.pad(x_nhwc, ((0, 0), (padding, padding), (padding, padding), (0, 0)))

    # (Cout, Cin, KH, KW) -> (KH*KW*Cin, CPAD), bf16 for the MXU.
    w_col = jnp.transpose(w, (2, 3, 1, 0)).reshape(kh * kw * cin, cout)
    w_col = jnp.pad(w_col, ((0, 0), (0, cpad - cout))).astype(jnp.bfloat16)

    flops = 2 * n * oh * ow * kh * kw * cin * cpad
    bytes_accessed = (x_pad.size * 4 + w_col.size * 2
                      + n * oh * ow * cpad * 4 + n * 8 * cpad * 4)

    kern_a = functools.partial(_conv_stats_kernel, kh=kh, kw=kw, stride=stride,
                               oh=oh, ow=ow, cin=cin)
    y_flat, stats = pl.pallas_call(
        kern_a,
        out_shape=(jax.ShapeDtypeStruct((n * oh * ow, cpad), jnp.float32),
                   jax.ShapeDtypeStruct((n * 8, cpad), jnp.float32)),
        grid=(n,),
        in_specs=[pl.BlockSpec((1, hp, wp, cin), lambda i: (i, 0, 0, 0)),
                  pl.BlockSpec((kh * kw * cin, cpad), lambda i: (0, 0))],
        out_specs=(pl.BlockSpec((oh * ow, cpad), lambda i: (i, 0)),
                   pl.BlockSpec((8, cpad), lambda i: (i, 0))),
        compiler_params=pltpu.CompilerParams(dimension_semantics=("parallel",)),
        cost_estimate=pl.CostEstimate(flops=flops, transcendentals=0,
                                      bytes_accessed=bytes_accessed),
    )(x_pad, w_col)

    # Training-mode BatchNorm2d: biased batch statistics over (N, H, W).
    # NOTE: single-pass E[y^2]-E[y]^2; fine at these magnitudes (two-pass for prod).
    m_rows = n * oh * ow
    stats = stats.reshape(n, 8, cpad)
    ch_sum = jnp.sum(stats[:, 0, :cout], axis=0)
    ch_sq = jnp.sum(stats[:, 1, :cout], axis=0)
    mean = ch_sum / m_rows
    var = jnp.maximum(ch_sq / m_rows - mean * mean, 0.0)
    scale_c = gamma / jnp.sqrt(var + eps)
    shift_c = beta - mean * scale_c
    scale_pad = jnp.zeros((1, cpad), jnp.float32).at[0, :cout].set(scale_c)
    shift_pad = jnp.zeros((1, cpad), jnp.float32).at[0, :cout].set(shift_c)

    # Pooling parameters: same kernel/stride/padding as conv (pool_fix_size=False).
    if pool:
        if pool_fix_size:
            pk, ps, pp = 3, 3, 1
        else:
            pk, ps, pp = kernel, stride, padding
    else:
        pk, ps, pp = 1, 1, 0
    ph = (oh + 2 * pp - pk) // ps + 1
    pw = (ow + 2 * pp - pk) // ps + 1

    y4 = y_flat.reshape(n, oh, ow, cpad)          # free row-major reshape
    kern_b = functools.partial(_bn_relu_pool_kernel, pool_k=pk, pool_s=ps,
                               pool_p=pp, out_h=ph, out_w=pw)
    out_nhwc = pl.pallas_call(
        kern_b,
        out_shape=jax.ShapeDtypeStruct((n, ph, pw, cpad), jnp.float32),
        grid=(n,),
        in_specs=[pl.BlockSpec((1, oh, ow, cpad), lambda i: (i, 0, 0, 0)),
                  pl.BlockSpec((1, cpad), lambda i: (0, 0)),
                  pl.BlockSpec((1, cpad), lambda i: (0, 0))],
        out_specs=pl.BlockSpec((1, ph, pw, cpad), lambda i: (i, 0, 0, 0)),
        compiler_params=pltpu.CompilerParams(dimension_semantics=("parallel",)),
    )(y4, scale_pad, shift_pad)

    # Drop channel padding, back to NCHW.
    return jnp.transpose(out_nhwc[..., :cout], (0, 3, 1, 2))


# ----------------------------------------------------------------------------
# Pure-JAX reference (exact PyTorch semantics, including the conv bias)
# ----------------------------------------------------------------------------
def reference_forward(x, params, *, kernel, stride, padding, eps=1e-5):
    w, b, gamma, beta = params["conv_w"], params["conv_b"], params["bn_w"], params["bn_b"]
    y = jax.lax.conv_general_dilated(
        x, w, (stride, stride), [(padding, padding), (padding, padding)],
        dimension_numbers=("NCHW", "OIHW", "NCHW"))
    y = y + b[None, :, None, None]
    mean = y.mean(axis=(0, 2, 3))
    var = y.var(axis=(0, 2, 3))
    z = (y - mean[None, :, None, None]) / jnp.sqrt(var[None, :, None, None] + eps)
    z = z * gamma[None, :, None, None] + beta[None, :, None, None]
    z = jnp.maximum(z, 0.0)
    zp = jnp.pad(z, ((0, 0), (0, 0), (padding, padding), (padding, padding)),
                 constant_values=-jnp.inf)
    return jax.lax.reduce_window(zp, -jnp.inf, jax.lax.max,
                                 (1, 1, kernel, kernel),
                                 (1, 1, stride, stride), "VALID")


if __name__ == "__main__":
    # Module config: CNN_BasicBlock(inplanes=4, planes=8, kernel=3, stride=1,
    #                               padding=1, pool=True, pooling_type='maxpool')
    inplanes, planes, kernel, stride, padding = 4, 8, 3, 1, 1
    N, H, W = 2, 16, 16

    key = jax.random.PRNGKey(0)
    kx, kw_, kb, kg, kbt = jax.random.split(key, 5)
    x = jax.random.normal(kx, (N, inplanes, H, W), dtype=jnp.float32)
    params = {
        "conv_w": 0.1 * jax.random.normal(kw_, (planes, inplanes, kernel, kernel), jnp.float32),
        "conv_b": 0.1 * jax.random.normal(kb, (planes,), jnp.float32),
        "bn_w": 1.0 + 0.1 * jax.random.normal(kg, (planes,), jnp.float32),
        "bn_b": 0.1 * jax.random.normal(kbt, (planes,), jnp.float32),
    }

    fwd = jax.jit(functools.partial(cnn_basic_block_forward, kernel=kernel,
                                    stride=stride, padding=padding,
                                    pool=True, pooling_type="maxpool"))
    out = jax.block_until_ready(fwd(x, params))

    ref = reference_forward(x, params, kernel=kernel, stride=stride, padding=padding)
    assert out.shape == ref.shape, (out.shape, ref.shape)
    max_err = float(jnp.max(jnp.abs(out - ref)))
    # Tolerance accounts for bf16 MXU operands (f32 accumulation / f32 reference).
    assert max_err < 3e-2, max_err

    print("KERNEL_OK")
</pallas_src>

<mosaic_0001>
module attributes {stable_mosaic.version = 11 : i64} {
  func.func @_conv_stats_kernel(%arg0: i32, %arg1: memref<1x18x18x4xf32, #tpu.memory_space<vmem>>, %arg2: memref<36x128xbf16, #tpu.memory_space<vmem>>, %arg3: memref<256x128xf32, #tpu.memory_space<vmem>>, %arg4: memref<8x128xf32, #tpu.memory_space<vmem>>) attributes {dimension_semantics = [#tpu.dimension_semantics<parallel>], iteration_bounds = array<i64: 2>, scalar_prefetch = 0 : i64, scratch_operands = 0 : i64, tpu.core_type = #tpu.core_type<tc>, window_params = [{transform_indices = @transform_0, window_bounds = array<i64: 1, 18, 18, 4>}, {pipeline_mode = #tpu.pipeline_mode<synchronous>, transform_indices = @transform_1, window_bounds = array<i64: 36, 128>}, {transform_indices = @transform_2, window_bounds = array<i64: 256, 128>}, {transform_indices = @transform_3, window_bounds = array<i64: 8, 128>}]} {
    %c0 = arith.constant 0 : index
    %c0_0 = arith.constant 0 : index
    %c0_1 = arith.constant 0 : index
    %c0_2 = arith.constant 0 : index
    %0 = vector.load %arg1[%c0, %c0_0, %c0_1, %c0_2] : memref<1x18x18x4xf32, #tpu.memory_space<vmem>>, vector<1x18x18x4xf32>
    %1 = vector.shape_cast %0 : vector<1x18x18x4xf32> to vector<18x18x4xf32>
    %cst = arith.constant 0.000000e+00 : f32
    %2 = vector.broadcast %cst : f32 to vector<256x128xf32>
    %3 = vector.extract_strided_slice %1 {offsets = [0, 0, 0], sizes = [16, 16, 4], strides = [1, 1, 1]} : vector<18x18x4xf32> to vector<16x16x4xf32>
    %4 = vector.shape_cast %3 : vector<16x16x4xf32> to vector<256x4xf32>
    %5 = arith.truncf %4 : vector<256x4xf32> to vector<256x4xbf16>
    %c0_3 = arith.constant 0 : index
    %c0_4 = arith.constant 0 : index
    %6 = vector.load %arg2[%c0_3, %c0_4] : memref<36x128xbf16, #tpu.memory_space<vmem>>, vector<4x128xbf16>
    %cst_5 = arith.constant dense<0.000000e+00> : vector<256x128xf32>
    %7 = tpu.matmul %5, %6, %cst_5 {dimension_numbers = #tpu.dot_dimension_numbers<[1], [0], [0], [1], [0, 0, 1, 1], [], []>} : vector<256x4xbf16>, vector<4x128xbf16>, vector<256x128xf32> -> vector<256x128xf32>
    %8 = arith.addf %2, %7 : vector<256x128xf32>
    %9 = vector.extract_strided_slice %1 {offsets = [0, 1, 0], sizes = [16, 16, 4], strides = [1, 1, 1]} : vector<18x18x4xf32> to vector<16x16x4xf32>
    %10 = vector.shape_cast %9 : vector<16x16x4xf32> to vector<256x4xf32>
    %11 = arith.truncf %10 : vector<256x4xf32> to vector<256x4xbf16>
    %c4 = arith.constant 4 : index
    %c0_6 = arith.constant 0 : index
    %12 = vector.load %arg2[%c4, %c0_6] : memref<36x128xbf16, #tpu.memory_space<vmem>>, vector<4x128xbf16>
    %cst_7 = arith.constant dense<0.000000e+00> : vector<256x128xf32>
    %13 = tpu.matmul %11, %12, %cst_7 {dimension_numbers = #tpu.dot_dimension_numbers<[1], [0], [0], [1], [0, 0, 1, 1], [], []>} : vector<256x4xbf16>, vector<4x128xbf16>, vector<256x128xf32> -> vector<256x128xf32>
    %14 = arith.addf %8, %13 : vector<256x128xf32>
    %15 = vector.extract_strided_slice %1 {offsets = [0, 2, 0], sizes = [16, 16, 4], strides = [1, 1, 1]} : vector<18x18x4xf32> to vector<16x16x4xf32>
    %16 = vector.shape_cast %15 : vector<16x16x4xf32> to vector<256x4xf32>
    %17 = arith.truncf %16 : vector<256x4xf32> to vector<256x4xbf16>
    %c8 = arith.constant 8 : index
    %c0_8 = arith.constant 0 : index
    %18 = vector.load %arg2[%c8, %c0_8] : memref<36x128xbf16, #tpu.memory_space<vmem>>, vector<4x128xbf16>
    %cst_9 = arith.constant dense<0.000000e+00> : vector<256x128xf32>
    %19 = tpu.matmul %17, %18, %cst_9 {dimension_numbers = #tpu.dot_dimension_numbers<[1], [0], [0], [1], [0, 0, 1, 1], [], []>} : vector<256x4xbf16>, vector<4x128xbf16>, vector<256x128xf32> -> vector<256x128xf32>
    %20 = arith.addf %14, %19 : vector<256x128xf32>
    %21 = vector.extract_strided_slice %1 {offsets = [1, 0, 0], sizes = [16, 16, 4], strides = [1, 1, 1]} : vector<18x18x4xf32> to vector<16x16x4xf32>
    %22 = vector.shape_cast %21 : vector<16x16x4xf32> to vector<256x4xf32>
    %23 = arith.truncf %22 : vector<256x4xf32> to vector<256x4xbf16>
    %c12 = arith.constant 12 : index
    %c0_10 = arith.constant 0 : index
    %24 = vector.load %arg2[%c12, %c0_10] : memref<36x128xbf16, #tpu.memory_space<vmem>>, vector<4x128xbf16>
    %cst_11 = arith.constant dense<0.000000e+00> : vector<256x128xf32>
    %25 = tpu.matmul %23, %24, %cst_11 {dimension_numbers = #tpu.dot_dimension_numbers<[1], [0], [0], [1], [0, 0, 1, 1], [], []>} : vector<256x4xbf16>, vector<4x128xbf16>, vector<256x128xf32> -> vector<256x128xf32>
    %26 = arith.addf %20, %25 : vector<256x128xf32>
    %27 = vector.extract_strided_slice %1 {offsets = [1, 1, 0], sizes = [16, 16, 4], strides = [1, 1, 1]} : vector<18x18x4xf32> to vector<16x16x4xf32>
    %28 = vector.shape_cast %27 : vector<16x16x4xf32> to vector<256x4xf32>
    %29 = arith.truncf %28 : vector<256x4xf32> to vector<256x4xbf16>
    %c16 = arith.constant 16 : index
    %c0_12 = arith.constant 0 : index
    %30 = vector.load %arg2[%c16, %c0_12] : memref<36x128xbf16, #tpu.memory_space<vmem>>, vector<4x128xbf16>
    %cst_13 = arith.constant dense<0.000000e+00> : vector<256x128xf32>
    %31 = tpu.matmul %29, %30, %cst_13 {dimension_numbers = #tpu.dot_dimension_numbers<[1], [0], [0], [1], [0, 0, 1, 1], [], []>} : vector<256x4xbf16>, vector<4x128xbf16>, vector<256x128xf32> -> vector<256x128xf32>
    %32 = arith.addf %26, %31 : vector<256x128xf32>
    %33 = vector.extract_strided_slice %1 {offsets = [1, 2, 0], sizes = [16, 16, 4], strides = [1, 1, 1]} : vector<18x18x4xf32> to vector<16x16x4xf32>
    %34 = vector.shape_cast %33 : vector<16x16x4xf32> to vector<256x4xf32>
    %35 = arith.truncf %34 : vector<256x4xf32> to vector<256x4xbf16>
    %c20 = arith.constant 20 : index
    %c0_14 = arith.constant 0 : index
    %36 = vector.load %arg2[%c20, %c0_14] : memref<36x128xbf16, #tpu.memory_space<vmem>>, vector<4x128xbf16>
    %cst_15 = arith.constant dense<0.000000e+00> : vector<256x128xf32>
    %37 = tpu.matmul %35, %36, %cst_15 {dimension_numbers = #tpu.dot_dimension_numbers<[1], [0], [0], [1], [0, 0, 1, 1], [], []>} : vector<256x4xbf16>, vector<4x128xbf16>, vector<256x128xf32> -> vector<256x128xf32>
    %38 = arith.addf %32, %37 : vector<256x128xf32>
    %39 = vector.extract_strided_slice %1 {offsets = [2, 0, 0], sizes = [16, 16, 4], strides = [1, 1, 1]} : vector<18x18x4xf32> to vector<16x16x4xf32>
    %40 = vector.shape_cast %39 : vector<16x16x4xf32> to vector<256x4xf32>
    %41 = arith.truncf %40 : vector<256x4xf32> to vector<256x4xbf16>
    %c24 = arith.constant 24 : index
    %c0_16 = arith.constant 0 : index
    %42 = vector.load %arg2[%c24, %c0_16] : memref<36x128xbf16, #tpu.memory_space<vmem>>, vector<4x128xbf16>
    %cst_17 = arith.constant dense<0.000000e+00> : vector<256x128xf32>
    %43 = tpu.matmul %41, %42, %cst_17 {dimension_numbers = #tpu.dot_dimension_numbers<[1], [0], [0], [1], [0, 0, 1, 1], [], []>} : vector<256x4xbf16>, vector<4x128xbf16>, vector<256x128xf32> -> vector<256x128xf32>
    %44 = arith.addf %38, %43 : vector<256x128xf32>
    %45 = vector.extract_strided_slice %1 {offsets = [2, 1, 0], sizes = [16, 16, 4], strides = [1, 1, 1]} : vector<18x18x4xf32> to vector<16x16x4xf32>
    %46 = vector.shape_cast %45 : vector<16x16x4xf32> to vector<256x4xf32>
    %47 = arith.truncf %46 : vector<256x4xf32> to vector<256x4xbf16>
    %c28 = arith.constant 28 : index
    %c0_18 = arith.constant 0 : index
    %48 = vector.load %arg2[%c28, %c0_18] : memref<36x128xbf16, #tpu.memory_space<vmem>>, vector<4x128xbf16>
    %cst_19 = arith.constant dense<0.000000e+00> : vector<256x128xf32>
    %49 = tpu.matmul %47, %48, %cst_19 {dimension_numbers = #tpu.dot_dimension_numbers<[1], [0], [0], [1], [0, 0, 1, 1], [], []>} : vector<256x4xbf16>, vector<4x128xbf16>, vector<256x128xf32> -> vector<256x128xf32>
    %50 = arith.addf %44, %49 : vector<256x128xf32>
    %51 = vector.extract_strided_slice %1 {offsets = [2, 2, 0], sizes = [16, 16, 4], strides = [1, 1, 1]} : vector<18x18x4xf32> to vector<16x16x4xf32>
    %52 = vector.shape_cast %51 : vector<16x16x4xf32> to vector<256x4xf32>
    %53 = arith.truncf %52 : vector<256x4xf32> to vector<256x4xbf16>
    %c32 = arith.constant 32 : index
    %c0_20 = arith.constant 0 : index
    %54 = vector.load %arg2[%c32, %c0_20] : memref<36x128xbf16, #tpu.memory_space<vmem>>, vector<4x128xbf16>
    %cst_21 = arith.constant dense<0.000000e+00> : vector<256x128xf32>
    %55 = tpu.matmul %53, %54, %cst_21 {dimension_numbers = #tpu.dot_dimension_numbers<[1], [0], [0], [1], [0, 0, 1, 1], [], []>} : vector<256x4xbf16>, vector<4x128xbf16>, vector<256x128xf32> -> vector<256x128xf32>
    %56 = arith.addf %50, %55 : vector<256x128xf32>
    %c0_22 = arith.constant 0 : index
    %c0_23 = arith.constant 0 : index
    %57 = vector.load %arg3[%c0_22, %c0_23] : memref<256x128xf32, #tpu.memory_space<vmem>>, vector<256x128xf32>
    tpu.vector_store %arg3[%c0_22, %c0_23], %56 {strides = array<i32>} : memref<256x128xf32, #tpu.memory_space<vmem>>, vector<256x128xf32>,
    %cst_24 = arith.constant dense<0.000000e+00> : vector<128xf32>
    %58 = vector.multi_reduction <add>, %56, %cst_24 [0] : vector<256x128xf32> to vector<128xf32>
    %59 = vector.shape_cast %58 : vector<128xf32> to vector<1x128xf32>
    %60 = arith.mulf %56, %56 : vector<256x128xf32>
    %cst_25 = arith.constant dense<0.000000e+00> : vector<128xf32>
    %61 = vector.multi_reduction <add>, %60, %cst_25 [0] : vector<256x128xf32> to vector<128xf32>
    %62 = vector.shape_cast %61 : vector<128xf32> to vector<1x128xf32>
    %cst_26 = arith.constant 0.000000e+00 : f32
    %63 = vector.broadcast %cst_26 : f32 to vector<6x128xf32>
    %64 = tpu.concatenate %59, %62, %63 in 0 : vector<1x128xf32>, vector<1x128xf32>, vector<6x128xf32> -> vector<8x128xf32>
    %c0_27 = arith.constant 0 : index
    %c0_28 = arith.constant 0 : index
    %65 = vector.load %arg4[%c0_27, %c0_28] : memref<8x128xf32, #tpu.memory_space<vmem>>, vector<8x128xf32>
    tpu.vector_store %arg4[%c0_27, %c0_28], %64 {strides = array<i32>} : memref<8x128xf32, #tpu.memory_space<vmem>>, vector<8x128xf32>,
    return
  }
  func.func @transform_0(%arg0: i32) -> (i32, i32, i32, i32) {
    %c0_i32 = arith.constant 0 : i32
    %c0_i32_0 = arith.constant 0 : i32
    %c0_i32_1 = arith.constant 0 : i32
    %c0_i32_2 = arith.constant 0 : i32
    return %arg0, %c0_i32, %c0_i32_0, %c0_i32_1 : i32, i32, i32, i32
  }
  func.func @transform_1(%arg0: i32) -> (i32, i32) {
    %c0_i32 = arith.constant 0 : i32
    %c0_i32_0 = arith.constant 0 : i32
    %c0_i32_1 = arith.constant 0 : i32
    return %c0_i32, %c0_i32_0 : i32, i32
  }
  func.func @transform_2(%arg0: i32) -> (i32, i32) {
    %c0_i32 = arith.constant 0 : i32
    %c0_i32_0 = arith.constant 0 : i32
    return %arg0, %c0_i32 : i32, i32
  }
  func.func @transform_3(%arg0: i32) -> (i32, i32) {
    %c0_i32 = arith.constant 0 : i32
    %c0_i32_0 = arith.constant 0 : i32
    return %arg0, %c0_i32 : i32, i32
  }
}

module attributes {stable_mosaic.version = 11 : i64} {
  func.func @_bn_relu_pool_kernel(%arg0: i32, %arg1: memref<1x16x16x128xf32, #tpu.memory_space<vmem>>, %arg2: memref<1x128xf32, #tpu.memory_space<vmem>>, %arg3: memref<1x128xf32, #tpu.memory_space<vmem>>, %arg4: memref<1x16x16x128xf32, #tpu.memory_space<vmem>>) attributes {dimension_semantics = [#tpu.dimension_semantics<parallel>], iteration_bounds = array<i64: 2>, scalar_prefetch = 0 : i64, scratch_operands = 0 : i64, tpu.core_type = #tpu.core_type<tc>, window_params = [{transform_indices = @transform_0, window_bounds = array<i64: 1, 16, 16, 128>}, {pipeline_mode = #tpu.pipeline_mode<synchronous>, transform_indices = @transform_1, window_bounds = array<i64: 1, 128>}, {pipeline_mode = #tpu.pipeline_mode<synchronous>, transform_indices = @transform_2, window_bounds = array<i64: 1, 128>}, {transform_indices = @transform_3, window_bounds = array<i64: 1, 16, 16, 128>}]} {
    %c0 = arith.constant 0 : index
    %c0_0 = arith.constant 0 : index
    %0 = vector.load %arg2[%c0, %c0_0] : memref<1x128xf32, #tpu.memory_space<vmem>>, vector<1x128xf32>
    %1 = vector.shape_cast %0 : vector<1x128xf32> to vector<1x1x128xf32>
    %c0_1 = arith.constant 0 : index
    %c0_2 = arith.constant 0 : index
    %2 = vector.load %arg3[%c0_1, %c0_2] : memref<1x128xf32, #tpu.memory_space<vmem>>, vector<1x128xf32>
    %3 = vector.shape_cast %2 : vector<1x128xf32> to vector<1x1x128xf32>
    %c0_3 = arith.constant 0 : index
    %c0_4 = arith.constant 0 : index
    %c0_5 = arith.constant 0 : index
    %c0_6 = arith.constant 0 : index
    %4 = vector.load %arg1[%c0_3, %c0_4, %c0_5, %c0_6] : memref<1x16x16x128xf32, #tpu.memory_space<vmem>>, vector<1x16x16x128xf32>
    %5 = vector.shape_cast %4 : vector<1x16x16x128xf32> to vector<16x16x128xf32>
    %6 = vector.broadcast %1 : vector<1x1x128xf32> to vector<16x16x128xf32>
    %7 = arith.mulf %5, %6 : vector<16x16x128xf32>
    %8 = vector.broadcast %3 : vector<1x1x128xf32> to vector<16x16x128xf32>
    %9 = arith.addf %7, %8 : vector<16x16x128xf32>
    %cst = arith.constant 0.000000e+00 : f32
    %10 = vector.broadcast %cst : f32 to vector<16x16x128xf32>
    %11 = arith.maximumf %9, %10 : vector<16x16x128xf32>
    %c0_i32 = arith.constant 0 : i32
    %12 = arith.sitofp %c0_i32 : i32 to f32
    %13 = vector.broadcast %12 : f32 to vector<16x1x128xf32>
    %14 = tpu.concatenate %13, %11 in 1 : vector<16x1x128xf32>, vector<16x16x128xf32> -> vector<16x17x128xf32>
    %15 = vector.broadcast %12 : f32 to vector<16x1x128xf32>
    %16 = tpu.concatenate %14, %15 in 1 : vector<16x17x128xf32>, vector<16x1x128xf32> -> vector<16x18x128xf32>
    %17 = vector.extract_strided_slice %16 {offsets = [0, 0, 0], sizes = [16, 16, 128], strides = [1, 1, 1]} : vector<16x18x128xf32> to vector<16x16x128xf32>
    %18 = vector.extract_strided_slice %16 {offsets = [0, 1, 0], sizes = [16, 16, 128], strides = [1, 1, 1]} : vector<16x18x128xf32> to vector<16x16x128xf32>
    %19 = arith.maximumf %17, %18 : vector<16x16x128xf32>
    %20 = vector.extract_strided_slice %16 {offsets = [0, 2, 0], sizes = [16, 16, 128], strides = [1, 1, 1]} : vector<16x18x128xf32> to vector<16x16x128xf32>
    %21 = arith.maximumf %19, %20 : vector<16x16x128xf32>
    %c0_i32_7 = arith.constant 0 : i32
    %22 = arith.sitofp %c0_i32_7 : i32 to f32
    %23 = vector.broadcast %22 : f32 to vector<1x16x128xf32>
    %24 = tpu.concatenate %23, %21 in 0 : vector<1x16x128xf32>, vector<16x16x128xf32> -> vector<17x16x128xf32>
    %25 = vector.broadcast %22 : f32 to vector<1x16x128xf32>
    %26 = tpu.concatenate %24, %25 in 0 : vector<17x16x128xf32>, vector<1x16x128xf32> -> vector<18x16x128xf32>
    %27 = vector.extract_strided_slice %26 {offsets = [0, 0, 0], sizes = [16, 16, 128], strides = [1, 1, 1]} : vector<18x16x128xf32> to vector<16x16x128xf32>
    %28 = vector.extract_strided_slice %26 {offsets = [1, 0, 0], sizes = [16, 16, 128], strides = [1, 1, 1]} : vector<18x16x128xf32> to vector<16x16x128xf32>
    %29 = arith.maximumf %27, %28 : vector<16x16x128xf32>
    %30 = vector.extract_strided_slice %26 {offsets = [2, 0, 0], sizes = [16, 16, 128], strides = [1, 1, 1]} : vector<18x16x128xf32> to vector<16x16x128xf32>
    %31 = arith.maximumf %29, %30 : vector<16x16x128xf32>
    %32 = vector.shape_cast %31 : vector<16x16x128xf32> to vector<1x16x16x128xf32>
    %c0_8 = arith.constant 0 : index
    %c0_9 = arith.constant 0 : index
    %c0_10 = arith.constant 0 : index
    %c0_11 = arith.constant 0 : index
    %33 = vector.load %arg4[%c0_8, %c0_9, %c0_10, %c0_11] : memref<1x16x16x128xf32, #tpu.memory_space<vmem>>, vector<1x16x16x128xf32>
    tpu.vector_store %arg4[%c0_8, %c0_9, %c0_10, %c0_11], %32 {strides = array<i32>} : memref<1x16x16x128xf32, #tpu.memory_space<vmem>>, vector<1x16x16x128xf32>,
    return
  }
  func.func @transform_0(%arg0: i32) -> (i32, i32, i32, i32) {
    %c0_i32 = arith.constant 0 : i32
    %c0_i32_0 = arith.constant 0 : i32
    %c0_i32_1 = arith.constant 0 : i32
    %c0_i32_2 = arith.constant 0 : i32
    return %arg0, %c0_i32, %c0_i32_0, %c0_i32_1 : i32, i32, i32, i32
  }
  func.func @transform_1(%arg0: i32) -> (i32, i32) {
    %c0_i32 = arith.constant 0 : i32
    %c0_i32_0 = arith.constant 0 : i32
    %c0_i32_1 = arith.constant 0 : i32
    return %c0_i32, %c0_i32_0 : i32, i32
  }
  func.func @transform_2(%arg0: i32) -> (i32, i32) {
    %c0_i32 = arith.constant 0 : i32
    %c0_i32_0 = arith.constant 0 : i32
    %c0_i32_1 = arith.constant 0 : i32
    return %c0_i32, %c0_i32_0 : i32, i32
  }
  func.func @transform_3(%arg0: i32) -> (i32, i32, i32, i32) {
    %c0_i32 = arith.constant 0 : i32
    %c0_i32_0 = arith.constant 0 : i32
    %c0_i32_1 = arith.constant 0 : i32
    %c0_i32_2 = arith.constant 0 : i32
    return %arg0, %c0_i32, %c0_i32_0, %c0_i32_1 : i32, i32, i32, i32
  }
}

</mosaic_0001>

<llo_original>
// kernel: cnn_basic_block_forward.3
$region0: #{cnn_basic_block_forward.3}
  #allocation0 [shape = 'u32[]', space=smem, size = 0x4, offset = 0x4, fixed_abs, tag = 'smem constant byte address 0x4 - core index']
  #allocation1 [shape = 'u32[144,128]{1,0:T(1,128)}', space=vmem, size = 0x12000, scoped, tag = 'internal scratch']
  %s0 = inlined_call_operand.vmem [shape: f32[2,16,16,128], index: 0, kind: input, shape index: {}]
  %s1 = inlined_call_operand.vmem [shape: f32[1,128], index: 1, kind: input, shape index: {}]
  %s2 = inlined_call_operand.vmem [shape: f32[1,128], index: 2, kind: input, shape index: {}]
  %s3 = inlined_call_operand.vmem [shape: f32[2,16,16,128], index: 3, kind: output, shape index: {}]
  %s4 = sld [smem:[#allocation0]]
  $region45: #{cnn_basic_block_forward.3} parent=0
    _
  %s6 = ssub.s32 1, %s4
  %s7 = scalar_select 0, %s6, %s4
  loop: start=0, step=1, limit=4
  $region2: #{cnn_basic_block_forward.3} parent=0 // loop_pre_header
    _
  $region3: #{cnn_basic_block_forward.3} parent=0 // loop_header
    %s9 = sphi 0, %s13
    %p10 = scmp.ge.s32.totalorder %s9, 4
    %s19 = sphi 0, %s21
    %s22 = sphi 0, %s19
    %s23 = sphi 0, %s22
    %s39 = sphi 0, %s23
    %s43 = sphi 0, %s43
    %s45 = sphi 0, %s43
    %s46 = sphi 0, %s45
    %s60 = sphi 0, %s46
    %s64 = sphi 0, %s64
    %s66 = sphi 0, %s64
    %s67 = sphi 0, %s66
    %s81 = sphi 0, %s67
    %s87 = sphi 0, %s89
    %s90 = sphi 0, %s87
    %s91 = sphi 0, %s90
    %s107 = sphi 0, %s91
  $region4: #{cnn_basic_block_forward.3} parent=0 // loop_header_branch
    %12 = sbr.rel (%p10) target = $region8
  $region5: #{cnn_basic_block_forward.3} parent=0 // loop_body
    %s14 = ssub.s32 %s9, 1
    %s15 = ssub.s32 %s9, 2
    %s16 = sadd.s32 %s9, 1
    %s17 = ssub.s32 %s9, %s16
    %p18 = scmp.eq.s32.totalorder %s17, 0
    %s20 = sadd.s32 %s19, 1
    %s21 = scalar_select %p18, %s19, %s20
    %p24 = pneg %p18
    %p25 = scmp.eq.s32.totalorder %s9, 1
    %p26 = por %p24, %p25
    %p27 = scmp.ne.s32.totalorder %s19, %s22
    %p28 = scmp.eq.s32.totalorder %s9, 0
    %p29 = por %p27, %p28
    %p30 = scmp.ne.s32.totalorder %s19, %s22
    %p31 = scmp.eq.s32.totalorder %s14, 1
    %p32 = por %p30, %p31
    %p33 = scmp.ne.s32.totalorder %s22, %s23
    %p34 = scmp.eq.s32.totalorder %s14, 0
    %p35 = por %p33, %p34
    %p36 = scmp.ne.s32.totalorder %s22, %s23
    %p37 = scmp.eq.s32.totalorder %s15, 1
    %p38 = por %p36, %p37
    %p40 = scmp.ne.s32.totalorder %s23, %s39
    %p41 = scmp.eq.s32.totalorder %s15, 0
    %p42 = por %p40, %p41
    %s44 = sadd.s32 %s43, 1
    %p47 = scmp.eq.s32.totalorder %s9, 1
    %p48 = scmp.ne.s32.totalorder %s43, %s45
    %p49 = scmp.eq.s32.totalorder %s9, 0
    %p50 = por %p48, %p49
    %p51 = scmp.ne.s32.totalorder %s43, %s45
    %p52 = scmp.eq.s32.totalorder %s14, 1
    %p53 = por %p51, %p52
    %p54 = scmp.ne.s32.totalorder %s45, %s46
    %p55 = scmp.eq.s32.totalorder %s14, 0
    %p56 = por %p54, %p55
    %p57 = scmp.ne.s32.totalorder %s45, %s46
    %p58 = scmp.eq.s32.totalorder %s15, 1
    %p59 = por %p57, %p58
    %p61 = scmp.ne.s32.totalorder %s46, %s60
    %p62 = scmp.eq.s32.totalorder %s15, 0
    %p63 = por %p61, %p62
    %s65 = sadd.s32 %s64, 1
    %p68 = scmp.eq.s32.totalorder %s9, 1
    %p69 = scmp.ne.s32.totalorder %s64, %s66
    %p70 = scmp.eq.s32.totalorder %s9, 0
    %p71 = por %p69, %p70
    %p72 = scmp.ne.s32.totalorder %s64, %s66
    %p73 = scmp.eq.s32.totalorder %s14, 1
    %p74 = por %p72, %p73
    %p75 = scmp.ne.s32.totalorder %s66, %s67
    %p76 = scmp.eq.s32.totalorder %s14, 0
    %p77 = por %p75, %p76
    %p78 = scmp.ne.s32.totalorder %s66, %s67
    %p79 = scmp.eq.s32.totalorder %s15, 1
    %p80 = por %p78, %p79
    %p82 = scmp.ne.s32.totalorder %s67, %s81
    %p83 = scmp.eq.s32.totalorder %s15, 0
    %p84 = por %p82, %p83
    %s85 = ssub.s32 %s9, %s16
    %p86 = scmp.eq.s32.totalorder %s85, 0
    %s88 = sadd.s32 %s87, 1
    %s89 = scalar_select %p86, %s87, %s88
    %p92 = pneg %p86
    %p93 = scmp.eq.s32.totalorder %s9, 1
    %p94 = por %p92, %p93
    %p95 = scmp.ne.s32.totalorder %s87, %s90
    %p96 = scmp.eq.s32.totalorder %s9, 0
    %p97 = por %p95, %p96
    %p98 = scmp.ne.s32.totalorder %s87, %s90
    %p99 = scmp.eq.s32.totalorder %s14, 1
    %p100 = por %p98, %p99
    %p101 = scmp.ne.s32.totalorder %s90, %s91
    %p102 = scmp.eq.s32.totalorder %s14, 0
    %p103 = por %p101, %p102
    %p104 = scmp.ne.s32.totalorder %s90, %s91
    %p105 = scmp.eq.s32.totalorder %s15, 1
    %p106 = por %p104, %p105
    %p108 = scmp.ne.s32.totalorder %s91, %s107
    %p109 = scmp.eq.s32.totalorder %s15, 0
    %p110 = por %p108, %p109
    %p111 = scmp.le.s32.totalorder 1, %s9
    %p112 = scmp.lt.s32.totalorder %s9, 3
    %p113 = pnand %p111, %p112
    %p114 = pneg %p113
    // Predicated region
    $region9: #{cnn_basic_block_forward.3} parent=5 // pred_check
      _
    $region10: #{cnn_basic_block_forward.3} parent=5 // pred_check_branch
      %116 = sbr.rel (%p113) target = $region12
    $region11: #{cnn_basic_block_forward.3} parent=5 // pred_region
      %s117 = ssub.s32 %s9, 1
      // Predicated region
      $region13: #{cnn_basic_block_forward.3} parent=11 // pred_check
        %p118 = pneg %p56
      $region14: #{cnn_basic_block_forward.3} parent=11 // pred_check_branch
        %120 = sbr.rel (%p118) target = $region16
      $region15: #{cnn_basic_block_forward.3} parent=11 // pred_region
        _
      $region16: #{cnn_basic_block_forward.3} parent=11 // pred_fallthru
        _
      // Predicated region
      $region17: #{cnn_basic_block_forward.3} parent=11 // pred_check
        %p121 = pneg %p77
      $region18: #{cnn_basic_block_forward.3} parent=11 // pred_check_branch
        %123 = sbr.rel (%p121) target = $region20
      $region19: #{cnn_basic_block_forward.3} parent=11 // pred_region
        _
      $region20: #{cnn_basic_block_forward.3} parent=11 // pred_fallthru
        _
    $region12: #{cnn_basic_block_forward.3} parent=5 // pred_fallthru
      _
    %p124 = scmp.lt.s32.totalorder %s9, 2
    // Predicated region
    $region21: #{cnn_basic_block_forward.3} parent=5 // pred_check
      %p125 = pneg %p124
    $region22: #{cnn_basic_block_forward.3} parent=5 // pred_check_branch
      %127 = sbr.rel (%p125) target = $region24
    $region23: #{cnn_basic_block_forward.3} parent=5 // pred_region
      // Predicated region
      $region25: #{cnn_basic_block_forward.3} parent=23 // pred_check
        %p128 = pneg %p29
      $region26: #{cnn_basic_block_forward.3} parent=23 // pred_check_branch
        %130 = sbr.rel (%p128) target = $region28
      $region27: #{cnn_basic_block_forward.3} parent=23 // pred_region
        %p131 = scmp.lt.s32.totalorder %s9, 1
        %s132 = scalar_select %p131, %s9, 1
        %s133 = smul.addr %s132, 32
        %s134 = smul.addr %s133, 8
        %s135 = scalar_lea.vmem %s0, %s134
      $region28: #{cnn_basic_block_forward.3} parent=23 // pred_fallthru
        _
    $region24: #{cnn_basic_block_forward.3} parent=5 // pred_fallthru
      _
    %p136 = scmp.le.s32.totalorder 1, %s9
    %p137 = scmp.lt.s32.totalorder %s9, 3
    %p138 = pnand %p136, %p137
    %p139 = pneg %p138
    // Predicated region
    $region29: #{cnn_basic_block_forward.3} parent=5 // pred_check
      _
    $region30: #{cnn_basic_block_forward.3} parent=5 // pred_check_branch
      %141 = sbr.rel (%p138) target = $region32
    $region31: #{cnn_basic_block_forward.3} parent=5 // pred_region
      %s142 = ssub.s32 %s9, 1
      %p143 = scmp.lt.s32.totalorder %s14, 1
      %s144 = scalar_select %p143, %s14, 1
      %s145 = smul.addr %s144, 32
      %s146 = smul.addr %s145, 8
      %s147 = scalar_lea.vmem %s0, %s146
      %p148 = pneg %p35
      %p149 = pneg %p32
      %p150 = pneg %p56
      %p151 = pneg %p53
      %p152 = pneg %p77
      %p153 = pneg %p74
      %p154 = pneg %p103
      %p155 = pneg %p100
      %p156 = scmp.lt.s32.totalorder %s14, 1
      %s157 = scalar_select %p156, %s14, 1
      %s158 = smul.addr %s157, 32
      %s159 = smul.addr %s158, 8
      %s160 = scalar_lea.vmem %s3, %s159
      %p161 = scmp.lt.s32.totalorder %s14, 1
      %s162 = scalar_select %p161, %s14, 1
      %s163 = smul.addr %s162, 32
      %s164 = smul.addr %s163, 8
      %s165 = scalar_lea.vmem %s0, %s164
      %p166 = scmp.lt.s32.totalorder %s14, 1
      %s167 = scalar_select %p166, %s14, 1
      %s168 = smul.addr %s167, 32
      %s169 = smul.addr %s168, 8
      %s170 = scalar_lea.vmem %s3, %s169
      %v171 = vld [vmem:[%s1] sm:$0x1]
      %v172 = vld [vmem:[%s2] sm:$0x1]
      %v173 = vld [vmem:[%s165] sm:$0xff]
      %v174 = vld [vmem:[%s165 + $0x8] sm:$0xff]
      %v175 = vld [vmem:[%s165 + $0x10] sm:$0xff]
      %v176 = vld [vmem:[%s165 + $0x18] sm:$0xff]
      %v177 = vld [vmem:[%s165 + $0x20] sm:$0xff]
      %v178 = vld [vmem:[%s165 + $0x28] sm:$0xff]
      %v179 = vld [vmem:[%s165 + $0x30] sm:$0xff]
      %v180 = vld [vmem:[%s165 + $0x38] sm:$0xff]
      %v181 = vld [vmem:[%s165 + $0x40] sm:$0xff]
      %v182 = vld [vmem:[%s165 + $0x48] sm:$0xff]
      %v183 = vld [vmem:[%s165 + $0x50] sm:$0xff]
      %v184 = vld [vmem:[%s165 + $0x58] sm:$0xff]
      %v185 = vld [vmem:[%s165 + $0x60] sm:$0xff]
      %v186 = vld [vmem:[%s165 + $0x68] sm:$0xff]
      %v187 = vld [vmem:[%s165 + $0x70] sm:$0xff]
      %v188 = vld [vmem:[%s165 + $0x78] sm:$0xff]
      %v189 = vld [vmem:[%s165 + $0x80] sm:$0xff]
      %v190 = vld [vmem:[%s165 + $0x88] sm:$0xff]
      %v191 = vld [vmem:[%s165 + $0x90] sm:$0xff]
      %v192 = vld [vmem:[%s165 + $0x98] sm:$0xff]
      %v193 = vld [vmem:[%s165 + $0xa0] sm:$0xff]
      %v194 = vld [vmem:[%s165 + $0xa8] sm:$0xff]
      %v195 = vld [vmem:[%s165 + $0xb0] sm:$0xff]
      %v196 = vld [vmem:[%s165 + $0xb8] sm:$0xff]
      %v197 = vld [vmem:[%s165 + $0xc0] sm:$0xff]
      %v198 = vld [vmem:[%s165 + $0xc8] sm:$0xff]
      %v199 = vld [vmem:[%s165 + $0xd0] sm:$0xff]
      %v200 = vld [vmem:[%s165 + $0xd8] sm:$0xff]
      %v201 = vld [vmem:[%s165 + $0xe0] sm:$0xff]
      %v202 = vld [vmem:[%s165 + $0xe8] sm:$0xff]
      %v203 = vld [vmem:[%s165 + $0xf0] sm:$0xff]
      %v204 = vld [vmem:[%s165 + $0xf8] sm:$0xff]
      %v206 = vlaneseq
      %v207 = vshrl.u32 %v206, 7
      %v208 = vsub.s32 0, %v207
      %v209 = vrot.slane %v171, %v208
      %v211 = vmul.f32 %v173, %v209
      %v212 = vmul.f32 %v174, %v209
      %v213 = vmul.f32 %v175, %v209
      %v214 = vmul.f32 %v176, %v209
      %v215 = vmul.f32 %v177, %v209
      %v216 = vmul.f32 %v178, %v209
      %v217 = vmul.f32 %v179, %v209
      %v218 = vmul.f32 %v180, %v209
      %v219 = vmul.f32 %v181, %v209
      %v220 = vmul.f32 %v182, %v209
      %v221 = vmul.f32 %v183, %v209
      %v222 = vmul.f32 %v184, %v209
      %v223 = vmul.f32 %v185, %v209
      %v224 = vmul.f32 %v186, %v209
      %v225 = vmul.f32 %v187, %v209
      %v226 = vmul.f32 %v188, %v209
      %v227 = vmul.f32 %v189, %v209
      %v228 = vmul.f32 %v190, %v209
      %v229 = vmul.f32 %v191, %v209
      %v230 = vmul.f32 %v192, %v209
      %v231 = vmul.f32 %v193, %v209
      %v232 = vmul.f32 %v194, %v209
      %v233 = vmul.f32 %v195, %v209
      %v234 = vmul.f32 %v196, %v209
      %v235 = vmul.f32 %v197, %v209
      %v236 = vmul.f32 %v198, %v209
      %v237 = vmul.f32 %v199, %v209
      %v238 = vmul.f32 %v200, %v209
      %v239 = vmul.f32 %v201, %v209
      %v240 = vmul.f32 %v202, %v209
      %v241 = vmul.f32 %v203, %v209
      %v242 = vmul.f32 %v204, %v209
      %v244 = vlaneseq
      %v245 = vshrl.u32 %v244, 7
      %v246 = vsub.s32 0, %v245
      %v247 = vrot.slane %v172, %v246
      %v249 = vadd.f32 %v211, %v247
      %v250 = vadd.f32 %v212, %v247
      %v251 = vadd.f32 %v213, %v247
      %v252 = vadd.f32 %v214, %v247
      %v253 = vadd.f32 %v215, %v247
      %v254 = vadd.f32 %v216, %v247
      %v255 = vadd.f32 %v217, %v247
      %v256 = vadd.f32 %v218, %v247
      %v257 = vadd.f32 %v219, %v247
      %v258 = vadd.f32 %v220, %v247
      %v259 = vadd.f32 %v221, %v247
      %v260 = vadd.f32 %v222, %v247
      %v261 = vadd.f32 %v223, %v247
      %v262 = vadd.f32 %v224, %v247
      %v263 = vadd.f32 %v225, %v247
      %v264 = vadd.f32 %v226, %v247
      %v265 = vadd.f32 %v227, %v247
      %v266 = vadd.f32 %v228, %v247
      %v267 = vadd.f32 %v229, %v247
      %v268 = vadd.f32 %v230, %v247
      %v269 = vadd.f32 %v231, %v247
      %v270 = vadd.f32 %v232, %v247
      %v271 = vadd.f32 %v233, %v247
      %v272 = vadd.f32 %v234, %v247
      %v273 = vadd.f32 %v235, %v247
      %v274 = vadd.f32 %v236, %v247
      %v275 = vadd.f32 %v237, %v247
      %v276 = vadd.f32 %v238, %v247
      %v277 = vadd.f32 %v239, %v247
      %v278 = vadd.f32 %v240, %v247
      %v279 = vadd.f32 %v241, %v247
      %v280 = vadd.f32 %v242, %v247
      %v281 = vmax.f32 %v249, 0.0
      %v282 = vmax.f32 %v250, 0.0
      %v283 = vmax.f32 %v251, 0.0
      %v284 = vmax.f32 %v252, 0.0
      %v285 = vmax.f32 %v253, 0.0
      %v286 = vmax.f32 %v254, 0.0
      %v287 = vmax.f32 %v255, 0.0
      %v288 = vmax.f32 %v256, 0.0
      %v289 = vmax.f32 %v257, 0.0
      %v290 = vmax.f32 %v258, 0.0
      %v291 = vmax.f32 %v259, 0.0
      %v292 = vmax.f32 %v260, 0.0
      %v293 = vmax.f32 %v261, 0.0
      %v294 = vmax.f32 %v262, 0.0
      %v295 = vmax.f32 %v263, 0.0
      %v296 = vmax.f32 %v264, 0.0
      %v297 = vmax.f32 %v265, 0.0
      %v298 = vmax.f32 %v266, 0.0
      %v299 = vmax.f32 %v267, 0.0
      %v300 = vmax.f32 %v268, 0.0
      %v301 = vmax.f32 %v269, 0.0
      %v302 = vmax.f32 %v270, 0.0
      %v303 = vmax.f32 %v271, 0.0
      %v304 = vmax.f32 %v272, 0.0
      %v305 = vmax.f32 %v273, 0.0
      %v306 = vmax.f32 %v274, 0.0
      %v307 = vmax.f32 %v275, 0.0
      %v308 = vmax.f32 %v276, 0.0
      %v309 = vmax.f32 %v277, 0.0
      %v310 = vmax.f32 %v278, 0.0
      %v311 = vmax.f32 %v279, 0.0
      %v312 = vmax.f32 %v280, 0.0
      %vm345 = vcmask 1040384
      %v346 = vrot.slane %v281, 7
      %v347 = vrot.slane %v282, 7
      %v348 = vsel %vm345, %v346, %v347
      %v349 = vrot.slane %v283, 7
      %v350 = vrot.slane %v284, 7
      %v351 = vsel %vm345, %v349, %v350
      %v352 = vrot.slane %v285, 7
      %v353 = vrot.slane %v286, 7
      %v354 = vsel %vm345, %v352, %v353
      %v355 = vrot.slane %v287, 7
      %v356 = vrot.slane %v288, 7
      %v357 = vsel %vm345, %v355, %v356
      %v358 = vrot.slane %v289, 7
      %v359 = vrot.slane %v290, 7
      %v360 = vsel %vm345, %v358, %v359
      %v361 = vrot.slane %v291, 7
      %v362 = vrot.slane %v292, 7
      %v363 = vsel %vm345, %v361, %v362
      %v364 = vrot.slane %v293, 7
      %v365 = vrot.slane %v294, 7
      %v366 = vsel %vm345, %v364, %v365
      %v367 = vrot.slane %v295, 7
      %v368 = vrot.slane %v296, 7
      %v369 = vsel %vm345, %v367, %v368
      %v370 = vrot.slane %v297, 7
      %v371 = vrot.slane %v298, 7
      %v372 = vsel %vm345, %v370, %v371
      %v373 = vrot.slane %v299, 7
      %v374 = vrot.slane %v300, 7
      %v375 = vsel %vm345, %v373, %v374
      %v376 = vrot.slane %v301, 7
      %v377 = vrot.slane %v302, 7
      %v378 = vsel %vm345, %v376, %v377
      %v379 = vrot.slane %v303, 7
      %v380 = vrot.slane %v304, 7
      %v381 = vsel %vm345, %v379, %v380
      %v382 = vrot.slane %v305, 7
      %v383 = vrot.slane %v306, 7
      %v384 = vsel %vm345, %v382, %v383
      %v385 = vrot.slane %v307, 7
      %v386 = vrot.slane %v308, 7
      %v387 = vsel %vm345, %v385, %v386
      %v388 = vrot.slane %v309, 7
      %v389 = vrot.slane %v310, 7
      %v390 = vsel %vm345, %v388, %v389
      %v391 = vrot.slane %v311, 7
      %v392 = vrot.slane %v312, 7
      %v393 = vsel %vm345, %v391, %v392
      %v442 = vsel %vm345, 0.0, %v346
      %v443 = vsel %vm345, 0.0, %v349
      %v444 = vsel %vm345, 0.0, %v352
      %v445 = vsel %vm345, 0.0, %v355
      %v446 = vsel %vm345, 0.0, %v358
      %v447 = vsel %vm345, 0.0, %v361
      %v448 = vsel %vm345, 0.0, %v364
      %v449 = vsel %vm345, 0.0, %v367
      %v450 = vsel %vm345, 0.0, %v370
      %v451 = vsel %vm345, 0.0, %v373
      %v452 = vsel %vm345, 0.0, %v376
      %v453 = vsel %vm345, 0.0, %v379
      %v454 = vsel %vm345, 0.0, %v382
      %v455 = vsel %vm345, 0.0, %v385
      %v456 = vsel %vm345, 0.0, %v388
      %v457 = vsel %vm345, 0.0, %v391
      %v458 = vsel %vm345, %v347, 0.0
      %v459 = vsel %vm345, %v350, 0.0
      %v460 = vsel %vm345, %v353, 0.0
      %v461 = vsel %vm345, %v356, 0.0
      %v462 = vsel %vm345, %v359, 0.0
      %v463 = vsel %vm345, %v362, 0.0
      %v464 = vsel %vm345, %v365, 0.0
      %v465 = vsel %vm345, %v368, 0.0
      %v466 = vsel %vm345, %v371, 0.0
      %v467 = vsel %vm345, %v374, 0.0
      %v468 = vsel %vm345, %v377, 0.0
      %v469 = vsel %vm345, %v380, 0.0
      %v470 = vsel %vm345, %v383, 0.0
      %v471 = vsel %vm345, %v386, 0.0
      %v472 = vsel %vm345, %v389, 0.0
      %v473 = vsel %vm345, %v392, 0.0
      %vm506 = vcmask 1046528
      %v507 = vrot.slane %v442, 1
      %v508 = vrot.slane %v348, 1
      %v509 = vsel %vm506, %v507, %v508
      %v510 = vrot.slane %v458, 1
      %v511 = vsel %vm506, %v508, %v510
      %v512 = vrot.slane %v443, 1
      %v513 = vrot.slane %v351, 1
      %v514 = vsel %vm506, %v512, %v513
      %v515 = vrot.slane %v459, 1
      %v516 = vsel %vm506, %v513, %v515
      %v517 = vrot.slane %v444, 1
      %v518 = vrot.slane %v354, 1
      %v519 = vsel %vm506, %v517, %v518
      %v520 = vrot.slane %v460, 1
      %v521 = vsel %vm506, %v518, %v520
      %v522 = vrot.slane %v445, 1
      %v523 = vrot.slane %v357, 1
      %v524 = vsel %vm506, %v522, %v523
      %v525 = vrot.slane %v461, 1
      %v526 = vsel %vm506, %v523, %v525
      %v527 = vrot.slane %v446, 1
      %v528 = vrot.slane %v360, 1
      %v529 = vsel %vm506, %v527, %v528
      %v530 = vrot.slane %v462, 1
      %v531 = vsel %vm506, %v528, %v530
      %v532 = vrot.slane %v447, 1
      %v533 = vrot.slane %v363, 1
      %v534 = vsel %vm506, %v532, %v533
      %v535 = vrot.slane %v463, 1
      %v536 = vsel %vm506, %v533, %v535
      %v537 = vrot.slane %v448, 1
      %v538 = vrot.slane %v366, 1
      %v539 = vsel %vm506, %v537, %v538
      %v540 = vrot.slane %v464, 1
      %v541 = vsel %vm506, %v538, %v540
      %v542 = vrot.slane %v449, 1
      %v543 = vrot.slane %v369, 1
      %v544 = vsel %vm506, %v542, %v543
      %v545 = vrot.slane %v465, 1
      %v546 = vsel %vm506, %v543, %v545
      %v547 = vrot.slane %v450, 1
      %v548 = vrot.slane %v372, 1
      %v549 = vsel %vm506, %v547, %v548
      %v550 = vrot.slane %v466, 1
      %v551 = vsel %vm506, %v548, %v550
      %v552 = vrot.slane %v451, 1
      %v553 = vrot.slane %v375, 1
      %v554 = vsel %vm506, %v552, %v553
      %v555 = vrot.slane %v467, 1
      %v556 = vsel %vm506, %v553, %v555
      %v557 = vrot.slane %v452, 1
      %v558 = vrot.slane %v378, 1
      %v559 = vsel %vm506, %v557, %v558
      %v560 = vrot.slane %v468, 1
      %v561 = vsel %vm506, %v558, %v560
      %v562 = vrot.slane %v453, 1
      %v563 = vrot.slane %v381, 1
      %v564 = vsel %vm506, %v562, %v563
      %v565 = vrot.slane %v469, 1
      %v566 = vsel %vm506, %v563, %v565
      %v567 = vrot.slane %v454, 1
      %v568 = vrot.slane %v384, 1
      %v569 = vsel %vm506, %v567, %v568
      %v570 = vrot.slane %v470, 1
      %v571 = vsel %vm506, %v568, %v570
      %v572 = vrot.slane %v455, 1
      %v573 = vrot.slane %v387, 1
      %v574 = vsel %vm506, %v572, %v573
      %v575 = vrot.slane %v471, 1
      %v576 = vsel %vm506, %v573, %v575
      %v577 = vrot.slane %v456, 1
      %v578 = vrot.slane %v390, 1
      %v579 = vsel %vm506, %v577, %v578
      %v580 = vrot.slane %v472, 1
      %v581 = vsel %vm506, %v578, %v580
      %v582 = vrot.slane %v457, 1
      %v583 = vrot.slane %v393, 1
      %v584 = vsel %vm506, %v582, %v583
      %v585 = vrot.slane %v473, 1
      %v586 = vsel %vm506, %v583, %v585
      %v619 = vmax.f32 %v442, %v509
      %v620 = vmax.f32 %v348, %v511
      %v621 = vmax.f32 %v443, %v514
      %v622 = vmax.f32 %v351, %v516
      %v623 = vmax.f32 %v444, %v519
      %v624 = vmax.f32 %v354, %v521
      %v625 = vmax.f32 %v445, %v524
      %v626 = vmax.f32 %v357, %v526
      %v627 = vmax.f32 %v446, %v529
      %v628 = vmax.f32 %v360, %v531
      %v629 = vmax.f32 %v447, %v534
      %v630 = vmax.f32 %v363, %v536
      %v631 = vmax.f32 %v448, %v539
      %v632 = vmax.f32 %v366, %v541
      %v633 = vmax.f32 %v449, %v544
      %v634 = vmax.f32 %v369, %v546
      %v635 = vmax.f32 %v450, %v549
      %v636 = vmax.f32 %v372, %v551
      %v637 = vmax.f32 %v451, %v554
      %v638 = vmax.f32 %v375, %v556
      %v639 = vmax.f32 %v452, %v559
      %v640 = vmax.f32 %v378, %v561
      %v641 = vmax.f32 %v453, %v564
      %v642 = vmax.f32 %v381, %v566
      %v643 = vmax.f32 %v454, %v569
      %v644 = vmax.f32 %v384, %v571
      %v645 = vmax.f32 %v455, %v574
      %v646 = vmax.f32 %v387, %v576
      %v647 = vmax.f32 %v456, %v579
      %v648 = vmax.f32 %v390, %v581
      %v649 = vmax.f32 %v457, %v584
      %v650 = vmax.f32 %v393, %v586
      %vm651 = vcmask 1045504
      %v652 = vrot.slane %v442, 2
      %v653 = vrot.slane %v348, 2
      %v654 = vsel %vm651, %v652, %v653
      %v655 = vrot.slane %v458, 2
      %v656 = vsel %vm651, %v653, %v655
      %v657 = vrot.slane %v443, 2
      %v658 = vrot.slane %v351, 2
      %v659 = vsel %vm651, %v657, %v658
      %v660 = vrot.slane %v459, 2
      %v661 = vsel %vm651, %v658, %v660
      %v662 = vrot.slane %v444, 2
      %v663 = vrot.slane %v354, 2
      %v664 = vsel %vm651, %v662, %v663
      %v665 = vrot.slane %v460, 2
      %v666 = vsel %vm651, %v663, %v665
      %v667 = vrot.slane %v445, 2
      %v668 = vrot.slane %v357, 2
      %v669 = vsel %vm651, %v667, %v668
      %v670 = vrot.slane %v461, 2
      %v671 = vsel %vm651, %v668, %v670
      %v672 = vrot.slane %v446, 2
      %v673 = vrot.slane %v360, 2
      %v674 = vsel %vm651, %v672, %v673
      %v675 = vrot.slane %v462, 2
      %v676 = vsel %vm651, %v673, %v675
      %v677 = vrot.slane %v447, 2
      %v678 = vrot.slane %v363, 2
      %v679 = vsel %vm651, %v677, %v678
      %v680 = vrot.slane %v463, 2
      %v681 = vsel %vm651, %v678, %v680
      %v682 = vrot.slane %v448, 2
      %v683 = vrot.slane %v366, 2
      %v684 = vsel %vm651, %v682, %v683
      %v685 = vrot.slane %v464, 2
      %v686 = vsel %vm651, %v683, %v685
      %v687 = vrot.slane %v449, 2
      %v688 = vrot.slane %v369, 2
      %v689 = vsel %vm651, %v687, %v688
      %v690 = vrot.slane %v465, 2
      %v691 = vsel %vm651, %v688, %v690
      %v692 = vrot.slane %v450, 2
      %v693 = vrot.slane %v372, 2
      %v694 = vsel %vm651, %v692, %v693
      %v695 = vrot.slane %v466, 2
      %v696 = vsel %vm651, %v693, %v695
      %v697 = vrot.slane %v451, 2
      %v698 = vrot.slane %v375, 2
      %v699 = vsel %vm651, %v697, %v698
      %v700 = vrot.slane %v467, 2
      %v701 = vsel %vm651, %v698, %v700
      %v702 = vrot.slane %v452, 2
      %v703 = vrot.slane %v378, 2
      %v704 = vsel %vm651, %v702, %v703
      %v705 = vrot.slane %v468, 2
      %v706 = vsel %vm651, %v703, %v705
      %v707 = vrot.slane %v453, 2
      %v708 = vrot.slane %v381, 2
      %v709 = vsel %vm651, %v707, %v708
      %v710 = vrot.slane %v469, 2
      %v711 = vsel %vm651, %v708, %v710
      %v712 = vrot.slane %v454, 2
      %v713 = vrot.slane %v384, 2
      %v714 = vsel %vm651, %v712, %v713
      %v715 = vrot.slane %v470, 2
      %v716 = vsel %vm651, %v713, %v715
      %v717 = vrot.slane %v455, 2
      %v718 = vrot.slane %v387, 2
      %v719 = vsel %vm651, %v717, %v718
      %v720 = vrot.slane %v471, 2
      %v721 = vsel %vm651, %v718, %v720
      %v722 = vrot.slane %v456, 2
      %v723 = vrot.slane %v390, 2
      %v724 = vsel %vm651, %v722, %v723
      %v725 = vrot.slane %v472, 2
      %v726 = vsel %vm651, %v723, %v725
      %v727 = vrot.slane %v457, 2
      %v728 = vrot.slane %v393, 2
      %v729 = vsel %vm651, %v727, %v728
      %v730 = vrot.slane %v473, 2
      %v731 = vsel %vm651, %v728, %v730
      %v764 = vmax.f32 %v619, %v654
      %v765 = vmax.f32 %v620, %v656
      %v766 = vmax.f32 %v621, %v659
      %v767 = vmax.f32 %v622, %v661
      %v768 = vmax.f32 %v623, %v664
      %v769 = vmax.f32 %v624, %v666
      %v770 = vmax.f32 %v625, %v669
      %v771 = vmax.f32 %v626, %v671
      %v772 = vmax.f32 %v627, %v674
      %v773 = vmax.f32 %v628, %v676
      %v774 = vmax.f32 %v629, %v679
      %v775 = vmax.f32 %v630, %v681
      %v776 = vmax.f32 %v631, %v684
      %v777 = vmax.f32 %v632, %v686
      %v778 = vmax.f32 %v633, %v689
      %v779 = vmax.f32 %v634, %v691
      %v780 = vmax.f32 %v635, %v694
      %v781 = vmax.f32 %v636, %v696
      %v782 = vmax.f32 %v637, %v699
      %v783 = vmax.f32 %v638, %v701
      %v784 = vmax.f32 %v639, %v704
      %v785 = vmax.f32 %v640, %v706
      %v786 = vmax.f32 %v641, %v709
      %v787 = vmax.f32 %v642, %v711
      %v788 = vmax.f32 %v643, %v714
      %v789 = vmax.f32 %v644, %v716
      %v790 = vmax.f32 %v645, %v719
      %v791 = vmax.f32 %v646, %v721
      %v792 = vmax.f32 %v647, %v724
      %v793 = vmax.f32 %v648, %v726
      %v794 = vmax.f32 %v649, %v729
      %v795 = vmax.f32 %v650, %v731
      %v796 = vmax.f32 %v764, 0.0
      %v797 = vmax.f32 %v765, 0.0
      %v798 = vmax.f32 %v764, %v766
      %v799 = vmax.f32 %v765, %v767
      %v800 = vmax.f32 %v766, %v768
      %v801 = vmax.f32 %v767, %v769
      %v802 = vmax.f32 %v768, %v770
      %v803 = vmax.f32 %v769, %v771
      %v804 = vmax.f32 %v770, %v772
      %v805 = vmax.f32 %v771, %v773
      %v806 = vmax.f32 %v772, %v774
      %v807 = vmax.f32 %v773, %v775
      %v808 = vmax.f32 %v774, %v776
      %v809 = vmax.f32 %v775, %v777
      %v810 = vmax.f32 %v776, %v778
      %v811 = vmax.f32 %v777, %v779
      %v812 = vmax.f32 %v778, %v780
      %v813 = vmax.f32 %v779, %v781
      %v814 = vmax.f32 %v780, %v782
      %v815 = vmax.f32 %v781, %v783
      %v816 = vmax.f32 %v782, %v784
      %v817 = vmax.f32 %v783, %v785
      %v818 = vmax.f32 %v784, %v786
      %v819 = vmax.f32 %v785, %v787
      %v820 = vmax.f32 %v786, %v788
      %v821 = vmax.f32 %v787, %v789
      %v822 = vmax.f32 %v788, %v790
      %v823 = vmax.f32 %v789, %v791
      %v824 = vmax.f32 %v790, %v792
      %v825 = vmax.f32 %v791, %v793
      %v826 = vmax.f32 %v792, %v794
      %v827 = vmax.f32 %v793, %v795
      %v828 = vmax.f32 %v796, %v766
      %v829 = vmax.f32 %v797, %v767
      %v830 = vmax.f32 %v798, %v768
      %v831 = vmax.f32 %v799, %v769
      %v832 = vmax.f32 %v800, %v770
      %v833 = vmax.f32 %v801, %v771
      %v834 = vmax.f32 %v802, %v772
      %v835 = vmax.f32 %v803, %v773
      %v836 = vmax.f32 %v804, %v774
      %v837 = vmax.f32 %v805, %v775
      %v838 = vmax.f32 %v806, %v776
      %v839 = vmax.f32 %v807, %v777
      %v840 = vmax.f32 %v808, %v778
      %v841 = vmax.f32 %v809, %v779
      %v842 = vmax.f32 %v810, %v780
      %v843 = vmax.f32 %v811, %v781
      %v844 = vmax.f32 %v812, %v782
      %v845 = vmax.f32 %v813, %v783
      %v846 = vmax.f32 %v814, %v784
      %v847 = vmax.f32 %v815, %v785
      %v848 = vmax.f32 %v816, %v786
      %v849 = vmax.f32 %v817, %v787
      %v850 = vmax.f32 %v818, %v788
      %v851 = vmax.f32 %v819, %v789
      %v852 = vmax.f32 %v820, %v790
      %v853 = vmax.f32 %v821, %v791
      %v854 = vmax.f32 %v822, %v792
      %v855 = vmax.f32 %v823, %v793
      %v856 = vmax.f32 %v824, %v794
      %v857 = vmax.f32 %v825, %v795
      %v858 = vmax.f32 %v826, 0.0
      %v859 = vmax.f32 %v827, 0.0
      %860 = vst [vmem:[%s170] sm:$0xff] %v828
      %861 = vst [vmem:[%s170 + $0x8] sm:$0xff] %v829
      %862 = vst [vmem:[%s170 + $0x10] sm:$0xff] %v830
      %863 = vst [vmem:[%s170 + $0x18] sm:$0xff] %v831
      %864 = vst [vmem:[%s170 + $0x20] sm:$0xff] %v832
      %865 = vst [vmem:[%s170 + $0x28] sm:$0xff] %v833
      %866 = vst [vmem:[%s170 + $0x30] sm:$0xff] %v834
      %867 = vst [vmem:[%s170 + $0x38] sm:$0xff] %v835
      %868 = vst [vmem:[%s170 + $0x40] sm:$0xff] %v836
      %869 = vst [vmem:[%s170 + $0x48] sm:$0xff] %v837
      %870 = vst [vmem:[%s170 + $0x50] sm:$0xff] %v838
      %871 = vst [vmem:[%s170 + $0x58] sm:$0xff] %v839
      %872 = vst [vmem:[%s170 + $0x60] sm:$0xff] %v840
      %873 = vst [vmem:[%s170 + $0x68] sm:$0xff] %v841
      %874 = vst [vmem:[%s170 + $0x70] sm:$0xff] %v842
      %875 = vst [vmem:[%s170 + $0x78] sm:$0xff] %v843
      %876 = vst [vmem:[%s170 + $0x80] sm:$0xff] %v844
      %877 = vst [vmem:[%s170 + $0x88] sm:$0xff] %v845
      %878 = vst [vmem:[%s170 + $0x90] sm:$0xff] %v846
      %879 = vst [vmem:[%s170 + $0x98] sm:$0xff] %v847
      %880 = vst [vmem:[%s170 + $0xa0] sm:$0xff] %v848
      %881 = vst [vmem:[%s170 + $0xa8] sm:$0xff] %v849
      %882 = vst [vmem:[%s170 + $0xb0] sm:$0xff] %v850
      %883 = vst [vmem:[%s170 + $0xb8] sm:$0xff] %v851
      %884 = vst [vmem:[%s170 + $0xc0] sm:$0xff] %v852
      %885 = vst [vmem:[%s170 + $0xc8] sm:$0xff] %v853
      %886 = vst [vmem:[%s170 + $0xd0] sm:$0xff] %v854
      %887 = vst [vmem:[%s170 + $0xd8] sm:$0xff] %v855
      %888 = vst [vmem:[%s170 + $0xe0] sm:$0xff] %v856
      %889 = vst [vmem:[%s170 + $0xe8] sm:$0xff] %v857
      %890 = vst [vmem:[%s170 + $0xf0] sm:$0xff] %v858
      %891 = vst [vmem:[%s170 + $0xf8] sm:$0xff] %v859
      %p892 = scmp.lt.s32.totalorder %s14, 1
      %s893 = scalar_select %p892, %s14, 1
      %s894 = smul.addr %s893, 32
      %s895 = smul.addr %s894, 8
      %s896 = scalar_lea.vmem %s3, %s895
      // Predicated region
      $region33: #{cnn_basic_block_forward.3} parent=31 // pred_check
        %p897 = pneg %p100
      $region34: #{cnn_basic_block_forward.3} parent=31 // pred_check_branch
        %899 = sbr.rel (%p897) target = $region36
      $region35: #{cnn_basic_block_forward.3} parent=31 // pred_region
        _
      $region36: #{cnn_basic_block_forward.3} parent=31 // pred_fallthru
        _
    $region32: #{cnn_basic_block_forward.3} parent=5 // pred_fallthru
      _
    %p900 = scmp.le.s32.totalorder 2, %s9
    // Predicated region
    $region37: #{cnn_basic_block_forward.3} parent=5 // pred_check
      %p901 = pneg %p900
    $region38: #{cnn_basic_block_forward.3} parent=5 // pred_check_branch
      %903 = sbr.rel (%p901) target = $region40
    $region39: #{cnn_basic_block_forward.3} parent=5 // pred_region
      %s904 = ssub.s32 %s9, 2
      // Predicated region
      $region41: #{cnn_basic_block_forward.3} parent=39 // pred_check
        %p905 = pneg %p106
      $region42: #{cnn_basic_block_forward.3} parent=39 // pred_check_branch
        %907 = sbr.rel (%p905) target = $region44
      $region43: #{cnn_basic_block_forward.3} parent=39 // pred_region
        %p908 = scmp.lt.s32.totalorder %s15, 1
        %s909 = scalar_select %p908, %s15, 1
        %s910 = smul.addr %s909, 32
        %s911 = smul.addr %s910, 8
        %s912 = scalar_lea.vmem %s3, %s911
      $region44: #{cnn_basic_block_forward.3} parent=39 // pred_fallthru
        _
    $region40: #{cnn_basic_block_forward.3} parent=5 // pred_fallthru
      _
  $region6: #{cnn_basic_block_forward.3} parent=0 // loop_footer
    %s13 = sadd.s32 1, %s9
  $region7: #{cnn_basic_block_forward.3} parent=0 // loop_footer_branch
    %8 = sbr.rel target = $region3
  $region8: #{cnn_basic_block_forward.3} parent=0 // loop_exit
    _

// kernel: cnn_basic_block_forward.2
$region0: #{cnn_basic_block_forward.2}
  #allocation0 [shape = 'u32[]', space=smem, size = 0x4, offset = 0x4, fixed_abs, tag = 'smem constant byte address 0x4 - core index']
  #allocation1 [shape = 'u32[144,128]{1,0:T(1,128)}', space=vmem, size = 0x12000, scoped, tag = 'internal scratch']
  %s0 = inlined_call_operand.vmem [shape: f32[2,18,18,4], index: 0, kind: input, shape index: {}]
  %s1 = inlined_call_operand.vmem [shape: bf16[36,128], index: 1, kind: input, shape index: {}]
  %s2 = inlined_call_operand.vmem [shape: f32[512,128], index: 2, kind: output, shape index: {0}]
  %s3 = inlined_call_operand.vmem [shape: f32[16,128], index: 3, kind: output, shape index: {1}]
  %4 = xla_tuple %s2, %s3
  %s5 = sld [smem:[#allocation0]]
  $region49: #{cnn_basic_block_forward.2} parent=0
    _
  %s7 = ssub.s32 1, %s5
  %s8 = scalar_select 0, %s7, %s5
  loop: start=0, step=1, limit=4
  $region2: #{cnn_basic_block_forward.2} parent=0 // loop_pre_header
    _
  $region3: #{cnn_basic_block_forward.2} parent=0 // loop_header
    %s10 = sphi 0, %s14
    %p11 = scmp.ge.s32.totalorder %s10, 4
    %s20 = sphi 0, %s22
    %s23 = sphi 0, %s20
    %s24 = sphi 0, %s23
    %s40 = sphi 0, %s24
    %s44 = sphi 0, %s44
    %s46 = sphi 0, %s44
    %s47 = sphi 0, %s46
    %s61 = sphi 0, %s47
    %s67 = sphi 0, %s69
    %s70 = sphi 0, %s67
    %s71 = sphi 0, %s70
    %s87 = sphi 0, %s71
    %s93 = sphi 0, %s95
    %s96 = sphi 0, %s93
    %s97 = sphi 0, %s96
    %s113 = sphi 0, %s97
  $region4: #{cnn_basic_block_forward.2} parent=0 // loop_header_branch
    %13 = sbr.rel (%p11) target = $region8
  $region5: #{cnn_basic_block_forward.2} parent=0 // loop_body
    %s15 = ssub.s32 %s10, 1
    %s16 = ssub.s32 %s10, 2
    %s17 = sadd.s32 %s10, 1
    %s18 = ssub.s32 %s10, %s17
    %p19 = scmp.eq.s32.totalorder %s18, 0
    %s21 = sadd.s32 %s20, 1
    %s22 = scalar_select %p19, %s20, %s21
    %p25 = pneg %p19
    %p26 = scmp.eq.s32.totalorder %s10, 1
    %p27 = por %p25, %p26
    %p28 = scmp.ne.s32.totalorder %s20, %s23
    %p29 = scmp.eq.s32.totalorder %s10, 0
    %p30 = por %p28, %p29
    %p31 = scmp.ne.s32.totalorder %s20, %s23
    %p32 = scmp.eq.s32.totalorder %s15, 1
    %p33 = por %p31, %p32
    %p34 = scmp.ne.s32.totalorder %s23, %s24
    %p35 = scmp.eq.s32.totalorder %s15, 0
    %p36 = por %p34, %p35
    %p37 = scmp.ne.s32.totalorder %s23, %s24
    %p38 = scmp.eq.s32.totalorder %s16, 1
    %p39 = por %p37, %p38
    %p41 = scmp.ne.s32.totalorder %s24, %s40
    %p42 = scmp.eq.s32.totalorder %s16, 0
    %p43 = por %p41, %p42
    %s45 = sadd.s32 %s44, 1
    %p48 = scmp.eq.s32.totalorder %s10, 1
    %p49 = scmp.ne.s32.totalorder %s44, %s46
    %p50 = scmp.eq.s32.totalorder %s10, 0
    %p51 = por %p49, %p50
    %p52 = scmp.ne.s32.totalorder %s44, %s46
    %p53 = scmp.eq.s32.totalorder %s15, 1
    %p54 = por %p52, %p53
    %p55 = scmp.ne.s32.totalorder %s46, %s47
    %p56 = scmp.eq.s32.totalorder %s15, 0
    %p57 = por %p55, %p56
    %p58 = scmp.ne.s32.totalorder %s46, %s47
    %p59 = scmp.eq.s32.totalorder %s16, 1
    %p60 = por %p58, %p59
    %p62 = scmp.ne.s32.totalorder %s47, %s61
    %p63 = scmp.eq.s32.totalorder %s16, 0
    %p64 = por %p62, %p63
    %s65 = ssub.s32 %s10, %s17
    %p66 = scmp.eq.s32.totalorder %s65, 0
    %s68 = sadd.s32 %s67, 1
    %s69 = scalar_select %p66, %s67, %s68
    %p72 = pneg %p66
    %p73 = scmp.eq.s32.totalorder %s10, 1
    %p74 = por %p72, %p73
    %p75 = scmp.ne.s32.totalorder %s67, %s70
    %p76 = scmp.eq.s32.totalorder %s10, 0
    %p77 = por %p75, %p76
    %p78 = scmp.ne.s32.totalorder %s67, %s70
    %p79 = scmp.eq.s32.totalorder %s15, 1
    %p80 = por %p78, %p79
    %p81 = scmp.ne.s32.totalorder %s70, %s71
    %p82 = scmp.eq.s32.totalorder %s15, 0
    %p83 = por %p81, %p82
    %p84 = scmp.ne.s32.totalorder %s70, %s71
    %p85 = scmp.eq.s32.totalorder %s16, 1
    %p86 = por %p84, %p85
    %p88 = scmp.ne.s32.totalorder %s71, %s87
    %p89 = scmp.eq.s32.totalorder %s16, 0
    %p90 = por %p88, %p89
    %s91 = ssub.s32 %s10, %s17
    %p92 = scmp.eq.s32.totalorder %s91, 0
    %s94 = sadd.s32 %s93, 1
    %s95 = scalar_select %p92, %s93, %s94
    %p98 = pneg %p92
    %p99 = scmp.eq.s32.totalorder %s10, 1
    %p100 = por %p98, %p99
    %p101 = scmp.ne.s32.totalorder %s93, %s96
    %p102 = scmp.eq.s32.totalorder %s10, 0
    %p103 = por %p101, %p102
    %p104 = scmp.ne.s32.totalorder %s93, %s96
    %p105 = scmp.eq.s32.totalorder %s15, 1
    %p106 = por %p104, %p105
    %p107 = scmp.ne.s32.totalorder %s96, %s97
    %p108 = scmp.eq.s32.totalorder %s15, 0
    %p109 = por %p107, %p108
    %p110 = scmp.ne.s32.totalorder %s96, %s97
    %p111 = scmp.eq.s32.totalorder %s16, 1
    %p112 = por %p110, %p111
    %p114 = scmp.ne.s32.totalorder %s97, %s113
    %p115 = scmp.eq.s32.totalorder %s16, 0
    %p116 = por %p114, %p115
    %p117 = scmp.le.s32.totalorder 1, %s10
    %p118 = scmp.lt.s32.totalorder %s10, 3
    %p119 = pnand %p117, %p118
    %p120 = pneg %p119
    // Predicated region
    $region9: #{cnn_basic_block_forward.2} parent=5 // pred_check
      _
    $region10: #{cnn_basic_block_forward.2} parent=5 // pred_check_branch
      %122 = sbr.rel (%p119) target = $region12
    $region11: #{cnn_basic_block_forward.2} parent=5 // pred_region
      %s123 = ssub.s32 %s10, 1
      // Predicated region
      $region13: #{cnn_basic_block_forward.2} parent=11 // pred_check
        %p124 = pneg %p57
      $region14: #{cnn_basic_block_forward.2} parent=11 // pred_check_branch
        %126 = sbr.rel (%p124) target = $region16
      $region15: #{cnn_basic_block_forward.2} parent=11 // pred_region
        _
      $region16: #{cnn_basic_block_forward.2} parent=11 // pred_fallthru
        _
    $region12: #{cnn_basic_block_forward.2} parent=5 // pred_fallthru
      _
    %p127 = scmp.lt.s32.totalorder %s10, 2
    // Predicated region
    $region17: #{cnn_basic_block_forward.2} parent=5 // pred_check
      %p128 = pneg %p127
    $region18: #{cnn_basic_block_forward.2} parent=5 // pred_check_branch
      %130 = sbr.rel (%p128) target = $region20
    $region19: #{cnn_basic_block_forward.2} parent=5 // pred_region
      // Predicated region
      $region21: #{cnn_basic_block_forward.2} parent=19 // pred_check
        %p131 = pneg %p30
      $region22: #{cnn_basic_block_forward.2} parent=19 // pred_check_branch
        %133 = sbr.rel (%p131) target = $region24
      $region23: #{cnn_basic_block_forward.2} parent=19 // pred_region
        %p134 = scmp.lt.s32.totalorder %s10, 1
        %s135 = scalar_select %p134, %s10, 1
        %s136 = smul.addr %s135, 54
        %s137 = smul.addr %s136, 8
        %s138 = scalar_lea.vmem %s0, %s137
      $region24: #{cnn_basic_block_forward.2} parent=19 // pred_fallthru
        _
    $region20: #{cnn_basic_block_forward.2} parent=5 // pred_fallthru
      _
    %p139 = scmp.le.s32.totalorder 1, %s10
    %p140 = scmp.lt.s32.totalorder %s10, 3
    %p141 = pnand %p139, %p140
    %p142 = pneg %p141
    // Predicated region
    $region25: #{cnn_basic_block_forward.2} parent=5 // pred_check
      _
    $region26: #{cnn_basic_block_forward.2} parent=5 // pred_check_branch
      %144 = sbr.rel (%p141) target = $region28
    $region27: #{cnn_basic_block_forward.2} parent=5 // pred_region
      %s145 = ssub.s32 %s10, 1
      %p146 = scmp.lt.s32.totalorder %s15, 1
      %s147 = scalar_select %p146, %s15, 1
      %s148 = smul.addr %s147, 54
      %s149 = smul.addr %s148, 8
      %s150 = scalar_lea.vmem %s0, %s149
      %p151 = pneg %p36
      %p152 = pneg %p33
      %p153 = pneg %p57
      %p154 = pneg %p54
      %p155 = pneg %p83
      %p156 = pneg %p80
      %s157 = smul.u32 32, %s15
      %p158 = scmp.lt.s32.totalorder %s157, 63
      %s159 = scalar_select %p158, %s157, 63
      %s160 = smul.addr %s159, 8
      %s161 = scalar_lea.vmem %s2, %s160
      %p162 = pneg %p109
      %p163 = pneg %p106
      %p164 = scmp.lt.s32.totalorder %s15, 1
      %s165 = scalar_select %p164, %s15, 1
      %s166 = smul.addr %s165, 8
      %s167 = scalar_lea.vmem %s3, %s166
      %p168 = scmp.lt.s32.totalorder %s15, 1
      %s169 = scalar_select %p168, %s15, 1
      %s170 = smul.addr %s169, 54
      %s171 = smul.addr %s170, 8
      %s172 = scalar_lea.vmem %s0, %s171
      %s173 = smul.u32 32, %s15
      %p174 = scmp.lt.s32.totalorder %s173, 63
      %s175 = scalar_select %p174, %s173, 63
      %s176 = smul.addr %s175, 8
      %s177 = scalar_lea.vmem %s2, %s176
      %s178 = smul.u32 32, %s15
      %p179 = scmp.lt.s32.totalorder %s15, 1
      %s180 = scalar_select %p179, %s15, 1
      %s181 = smul.addr %s180, 8
      %s182 = scalar_lea.vmem %s3, %s181
      %v184 = vld [vmem:[%s172] sm:$0xff]
      %v185 = vld [vmem:[%s172 + $0x8] sm:$0xff]
      %v186 = vld [vmem:[%s172 + $0x10] sm:$0x3]
      %v187 = vld [vmem:[%s172 + $0x18] sm:$0xff]
      %v188 = vld [vmem:[%s172 + $0x20] sm:$0xff]
      %v189 = vld [vmem:[%s172 + $0x28] sm:$0x3]
      %v190 = vld [vmem:[%s172 + $0x30] sm:$0xff]
      %v191 = vld [vmem:[%s172 + $0x38] sm:$0xff]
      %v192 = vld [vmem:[%s172 + $0x40] sm:$0x3]
      %v193 = vld [vmem:[%s172 + $0x48] sm:$0xff]
      %v194 = vld [vmem:[%s172 + $0x50] sm:$0xff]
      %v195 = vld [vmem:[%s172 + $0x58] sm:$0x3]
      %v196 = vld [vmem:[%s172 + $0x60] sm:$0xff]
      %v197 = vld [vmem:[%s172 + $0x68] sm:$0xff]
      %v198 = vld [vmem:[%s172 + $0x70] sm:$0x3]
      %v199 = vld [vmem:[%s172 + $0x78] sm:$0xff]
      %v200 = vld [vmem:[%s172 + $0x80] sm:$0xff]
      %v201 = vld [vmem:[%s172 + $0x88] sm:$0x3]
      %v202 = vld [vmem:[%s172 + $0x90] sm:$0xff]
      %v203 = vld [vmem:[%s172 + $0x98] sm:$0xff]
      %v204 = vld [vmem:[%s172 + $0xa0] sm:$0x3]
      %v205 = vld [vmem:[%s172 + $0xa8] sm:$0xff]
      %v206 = vld [vmem:[%s172 + $0xb0] sm:$0xff]
      %v207 = vld [vmem:[%s172 + $0xb8] sm:$0x3]
      %v208 = vld [vmem:[%s172 + $0xc0] sm:$0xff]
      %v209 = vld [vmem:[%s172 + $0xc8] sm:$0xff]
      %v210 = vld [vmem:[%s172 + $0xd0] sm:$0x3]
      %v211 = vld [vmem:[%s172 + $0xd8] sm:$0xff]
      %v212 = vld [vmem:[%s172 + $0xe0] sm:$0xff]
      %v213 = vld [vmem:[%s172 + $0xe8] sm:$0x3]
      %v214 = vld [vmem:[%s172 + $0xf0] sm:$0xff]
      %v215 = vld [vmem:[%s172 + $0xf8] sm:$0xff]
      %v216 = vld [vmem:[%s172 + $0x100] sm:$0x3]
      %v217 = vld [vmem:[%s172 + $0x108] sm:$0xff]
      %v218 = vld [vmem:[%s172 + $0x110] sm:$0xff]
      %v219 = vld [vmem:[%s172 + $0x118] sm:$0x3]
      %v220 = vld [vmem:[%s172 + $0x120] sm:$0xff]
      %v221 = vld [vmem:[%s172 + $0x128] sm:$0xff]
      %v222 = vld [vmem:[%s172 + $0x130] sm:$0x3]
      %v223 = vld [vmem:[%s172 + $0x138] sm:$0xff]
      %v224 = vld [vmem:[%s172 + $0x140] sm:$0xff]
      %v225 = vld [vmem:[%s172 + $0x148] sm:$0x3]
      %v226 = vld [vmem:[%s172 + $0x150] sm:$0xff]
      %v227 = vld [vmem:[%s172 + $0x158] sm:$0xff]
      %v228 = vld [vmem:[%s172 + $0x160] sm:$0x3]
      %v229 = vld [vmem:[%s172 + $0x168] sm:$0xff]
      %v230 = vld [vmem:[%s172 + $0x170] sm:$0xff]
      %v231 = vld [vmem:[%s172 + $0x178] sm:$0x3]
      %v232 = vld [vmem:[%s172 + $0x180] sm:$0xff]
      %v233 = vld [vmem:[%s172 + $0x188] sm:$0xff]
      %v234 = vld [vmem:[%s172 + $0x190] sm:$0x3]
      %v235 = vld [vmem:[%s172 + $0x198] sm:$0xff]
      %v236 = vld [vmem:[%s172 + $0x1a0] sm:$0xff]
      %v237 = vld [vmem:[%s172 + $0x1a8] sm:$0x3]
      %v238 = vpack.c.bf16 %v185, %v184
      %v239 = vpack.c.bf16 %v188, %v187
      %v240 = vpack.c.bf16 %v191, %v190
      %v241 = vpack.c.bf16 %v194, %v193
      %v242 = vpack.c.bf16 %v197, %v196
      %v243 = vpack.c.bf16 %v200, %v199
      %v244 = vpack.c.bf16 %v203, %v202
      %v245 = vpack.c.bf16 %v206, %v205
      %v246 = vpack.c.bf16 %v209, %v208
      %v247 = vpack.c.bf16 %v212, %v211
      %v248 = vpack.c.bf16 %v215, %v214
      %v249 = vpack.c.bf16 %v218, %v217
      %v250 = vpack.c.bf16 %v221, %v220
      %v251 = vpack.c.bf16 %v224, %v223
      %v252 = vpack.c.bf16 %v227, %v226
      %v253 = vpack.c.bf16 %v230, %v229
      %v254 = vld [vmem:[%s1] sm:$0x3]
      %vm303 = vcmask 1046528
      %v304 = vrot.slane %v184, 1
      %v305 = vrot.slane %v185, 1
      %v306 = vsel %vm303, %v304, %v305
      %v307 = vrot.slane %v186, 1
      %v308 = vsel %vm303, %v305, %v307
      %v309 = vrot.slane %v187, 1
      %v310 = vrot.slane %v188, 1
      %v311 = vsel %vm303, %v309, %v310
      %v312 = vrot.slane %v189, 1
      %v313 = vsel %vm303, %v310, %v312
      %v314 = vrot.slane %v190, 1
      %v315 = vrot.slane %v191, 1
      %v316 = vsel %vm303, %v314, %v315
      %v317 = vrot.slane %v192, 1
      %v318 = vsel %vm303, %v315, %v317
      %v319 = vrot.slane %v193, 1
      %v320 = vrot.slane %v194, 1
      %v321 = vsel %vm303, %v319, %v320
      %v322 = vrot.slane %v195, 1
      %v323 = vsel %vm303, %v320, %v322
      %v324 = vrot.slane %v196, 1
      %v325 = vrot.slane %v197, 1
      %v326 = vsel %vm303, %v324, %v325
      %v327 = vrot.slane %v198, 1
      %v328 = vsel %vm303, %v325, %v327
      %v329 = vrot.slane %v199, 1
      %v330 = vrot.slane %v200, 1
      %v331 = vsel %vm303, %v329, %v330
      %v332 = vrot.slane %v201, 1
      %v333 = vsel %vm303, %v330, %v332
      %v334 = vrot.slane %v202, 1
      %v335 = vrot.slane %v203, 1
      %v336 = vsel %vm303, %v334, %v335
      %v337 = vrot.slane %v204, 1
      %v338 = vsel %vm303, %v335, %v337
      %v339 = vrot.slane %v205, 1
      %v340 = vrot.slane %v206, 1
      %v341 = vsel %vm303, %v339, %v340
      %v342 = vrot.slane %v207, 1
      %v343 = vsel %vm303, %v340, %v342
      %v344 = vrot.slane %v208, 1
      %v345 = vrot.slane %v209, 1
      %v346 = vsel %vm303, %v344, %v345
      %v347 = vrot.slane %v210, 1
      %v348 = vsel %vm303, %v345, %v347
      %v349 = vrot.slane %v211, 1
      %v350 = vrot.slane %v212, 1
      %v351 = vsel %vm303, %v349, %v350
      %v352 = vrot.slane %v213, 1
      %v353 = vsel %vm303, %v350, %v352
      %v354 = vrot.slane %v214, 1
      %v355 = vrot.slane %v215, 1
      %v356 = vsel %vm303, %v354, %v355
      %v357 = vrot.slane %v216, 1
      %v358 = vsel %vm303, %v355, %v357
      %v359 = vrot.slane %v217, 1
      %v360 = vrot.slane %v218, 1
      %v361 = vsel %vm303, %v359, %v360
      %v362 = vrot.slane %v219, 1
      %v363 = vsel %vm303, %v360, %v362
      %v364 = vrot.slane %v220, 1
      %v365 = vrot.slane %v221, 1
      %v366 = vsel %vm303, %v364, %v365
      %v367 = vrot.slane %v222, 1
      %v368 = vsel %vm303, %v365, %v367
      %v369 = vrot.slane %v223, 1
      %v370 = vrot.slane %v224, 1
      %v371 = vsel %vm303, %v369, %v370
      %v372 = vrot.slane %v225, 1
      %v373 = vsel %vm303, %v370, %v372
      %v374 = vrot.slane %v226, 1
      %v375 = vrot.slane %v227, 1
      %v376 = vsel %vm303, %v374, %v375
      %v377 = vrot.slane %v228, 1
      %v378 = vsel %vm303, %v375, %v377
      %v379 = vrot.slane %v229, 1
      %v380 = vrot.slane %v230, 1
      %v381 = vsel %vm303, %v379, %v380
      %v382 = vrot.slane %v231, 1
      %v383 = vsel %vm303, %v380, %v382
      %v416 = vpack.c.bf16 %v308, %v306
      %v417 = vpack.c.bf16 %v313, %v311
      %v418 = vpack.c.bf16 %v318, %v316
      %v419 = vpack.c.bf16 %v323, %v321
      %v420 = vpack.c.bf16 %v328, %v326
      %v421 = vpack.c.bf16 %v333, %v331
      %v422 = vpack.c.bf16 %v338, %v336
      %v423 = vpack.c.bf16 %v343, %v341
      %v424 = vpack.c.bf16 %v348, %v346
      %v425 = vpack.c.bf16 %v353, %v351
      %v426 = vpack.c.bf16 %v358, %v356
      %v427 = vpack.c.bf16 %v363, %v361
      %v428 = vpack.c.bf16 %v368, %v366
      %v429 = vpack.c.bf16 %v373, %v371
      %v430 = vpack.c.bf16 %v378, %v376
      %v431 = vpack.c.bf16 %v383, %v381
      %v432 = vld [vmem:[%s1] sm:$0xc]
      %v434 = vunpack.c.l.b16 %v432
      %v435 = vpack.c.b16 %v434, %v434
      %v436 = vrot.slane %v435, 2
      %vm437 = vcmask 31744
      %v439 = vsel %vm437, %v416, 0
      %v442 = vsel %vm437, %v417, 0
      %v445 = vsel %vm437, %v418, 0
      %v448 = vsel %vm437, %v419, 0
      %v451 = vsel %vm437, %v420, 0
      %v454 = vsel %vm437, %v421, 0
      %v457 = vsel %vm437, %v422, 0
      %v460 = vsel %vm437, %v423, 0
      %v463 = vsel %vm437, %v424, 0
      %v466 = vsel %vm437, %v425, 0
      %v469 = vsel %vm437, %v426, 0
      %v472 = vsel %vm437, %v427, 0
      %v475 = vsel %vm437, %v428, 0
      %v478 = vsel %vm437, %v429, 0
      %v481 = vsel %vm437, %v430, 0
      %v484 = vsel %vm437, %v431, 0
      %vm486 = vcmask 1041408
      %v488 = vsel %vm486, %v436, 0
      %490 = vmatprep.subr.bf16.mxu0 0
      %491 = vmatpush1.bf16.msra.mxu0 %v488
      %492 = vmatprep.subr.bf16.mxu0 0
      %493 = vmatpush1.bf16.msra.mxu0 0
      %494 = vmatprep.subr.bf16.mxu0 0
      %495 = vmatpush1.bf16.msra.mxu0 0
      %496 = vmatprep.subr.bf16.mxu0 0
      %497 = vmatpush1.bf16.msra.mxu0 0
      %498 = vmatprep.subr.bf16.mxu0 0
      %499 = vmatpush1.bf16.msra.mxu0 0
      %500 = vmatprep.subr.bf16.mxu0 0
      %501 = vmatpush1.bf16.msra.mxu0 0
      %502 = vmatprep.subr.bf16.mxu0 0
      %503 = vmatpush1.bf16.msra.mxu0 0
      %504 = vmatprep.subr.bf16.mxu0 0
      %505 = vmatpush1.bf16.msra.mxu0 0
      %506 = vmatprep.subr.bf16.mxu0 0
      %507 = vmatpush1.bf16.msra.mxu0 0
      %508 = vmatprep.subr.bf16.mxu0 0
      %509 = vmatpush1.bf16.msra.mxu0 0
      %510 = vmatprep.subr.bf16.mxu0 0
      %511 = vmatpush1.bf16.msra.mxu0 0
      %512 = vmatprep.subr.bf16.mxu0 0
      %513 = vmatpush1.bf16.msra.mxu0 0
      %514 = vmatprep.subr.bf16.mxu0 0
      %515 = vmatpush1.bf16.msra.mxu0 0
      %516 = vmatprep.subr.bf16.mxu0 0
      %517 = vmatpush1.bf16.msra.mxu0 0
      %518 = vmatprep.subr.bf16.mxu0 0
      %519 = vmatpush1.bf16.msra.mxu0 0
      %520 = vmatprep.subr.bf16.mxu0 0
      %521 = vmatpush1.bf16.msra.mxu0 0
      %522 = vmatprep.mubr.bf16.mxu0 0
      %523 = vmatmul.mubr.bf16.gmra.mrb[0].mxu0 %v439
      %v524 = vpop.f32.mrb[0].mxu0
      %v525 = vadd.f32 0.0, %v524
      %v526 = vpop.f32.mrb[0].mxu0
      %v527 = vpop.f32.mrb[0].mxu0
      %v528 = vadd.f32 0.0, %v527
      %v529 = vpop.f32.mrb[0].mxu0
      %530 = vmatprep.mubr.bf16.mxu0 0
      %531 = vmatmul.mubr.bf16.gmra.mrb[0].mxu0 %v442
      %v532 = vpop.f32.mrb[0].mxu0
      %v533 = vadd.f32 0.0, %v532
      %v534 = vpop.f32.mrb[0].mxu0
      %v535 = vpop.f32.mrb[0].mxu0
      %v536 = vadd.f32 0.0, %v535
      %v537 = vpop.f32.mrb[0].mxu0
      %538 = vmatprep.mubr.bf16.mxu0 0
      %539 = vmatmul.mubr.bf16.gmra.mrb[0].mxu0 %v445
      %v540 = vpop.f32.mrb[0].mxu0
      %v541 = vadd.f32 0.0, %v540
      %v542 = vpop.f32.mrb[0].mxu0
      %v543 = vpop.f32.mrb[0].mxu0
      %v544 = vadd.f32 0.0, %v543
      %v545 = vpop.f32.mrb[0].mxu0
      %546 = vmatprep.mubr.bf16.mxu0 0
      %547 = vmatmul.mubr.bf16.gmra.mrb[0].mxu0 %v448
      %v548 = vpop.f32.mrb[0].mxu0
      %v549 = vadd.f32 0.0, %v548
      %v550 = vpop.f32.mrb[0].mxu0
      %v551 = vpop.f32.mrb[0].mxu0
      %v552 = vadd.f32 0.0, %v551
      %v553 = vpop.f32.mrb[0].mxu0
      %554 = vmatprep.mubr.bf16.mxu0 0
      %555 = vmatmul.mubr.bf16.gmra.mrb[0].mxu0 %v451
      %v556 = vpop.f32.mrb[0].mxu0
      %v557 = vadd.f32 0.0, %v556
      %v558 = vpop.f32.mrb[0].mxu0
      %v559 = vpop.f32.mrb[0].mxu0
      %v560 = vadd.f32 0.0, %v559
      %v561 = vpop.f32.mrb[0].mxu0
      %562 = vmatprep.mubr.bf16.mxu0 0
      %563 = vmatmul.mubr.bf16.gmra.mrb[0].mxu0 %v454
      %v564 = vpop.f32.mrb[0].mxu0
      %v565 = vadd.f32 0.0, %v564
      %v566 = vpop.f32.mrb[0].mxu0
      %v567 = vpop.f32.mrb[0].mxu0
      %v568 = vadd.f32 0.0, %v567
      %v569 = vpop.f32.mrb[0].mxu0
      %570 = vmatprep.mubr.bf16.mxu0 0
      %571 = vmatmul.mubr.bf16.gmra.mrb[0].mxu0 %v457
      %v572 = vpop.f32.mrb[0].mxu0
      %v573 = vadd.f32 0.0, %v572
      %v574 = vpop.f32.mrb[0].mxu0
      %v575 = vpop.f32.mrb[0].mxu0
      %v576 = vadd.f32 0.0, %v575
      %v577 = vpop.f32.mrb[0].mxu0
      %578 = vmatprep.mubr.bf16.mxu0 0
      %579 = vmatmul.mubr.bf16.gmra.mrb[0].mxu0 %v460
      %v580 = vpop.f32.mrb[0].mxu0
      %v581 = vadd.f32 0.0, %v580
      %v582 = vpop.f32.mrb[0].mxu0
      %v583 = vpop.f32.mrb[0].mxu0
      %v584 = vadd.f32 0.0, %v583
      %v585 = vpop.f32.mrb[0].mxu0
      %586 = vmatprep.mubr.bf16.mxu0 0
      %587 = vmatmul.mubr.bf16.gmra.mrb[0].mxu0 %v463
      %v588 = vpop.f32.mrb[0].mxu0
      %v589 = vadd.f32 0.0, %v588
      %v590 = vpop.f32.mrb[0].mxu0
      %v591 = vpop.f32.mrb[0].mxu0
      %v592 = vadd.f32 0.0, %v591
      %v593 = vpop.f32.mrb[0].mxu0
      %594 = vmatprep.mubr.bf16.mxu0 0
      %595 = vmatmul.mubr.bf16.gmra.mrb[0].mxu0 %v466
      %v596 = vpop.f32.mrb[0].mxu0
      %v597 = vadd.f32 0.0, %v596
      %v598 = vpop.f32.mrb[0].mxu0
      %v599 = vpop.f32.mrb[0].mxu0
      %v600 = vadd.f32 0.0, %v599
      %v601 = vpop.f32.mrb[0].mxu0
      %602 = vmatprep.mubr.bf16.mxu0 0
      %603 = vmatmul.mubr.bf16.gmra.mrb[0].mxu0 %v469
      %v604 = vpop.f32.mrb[0].mxu0
      %v605 = vadd.f32 0.0, %v604
      %v606 = vpop.f32.mrb[0].mxu0
      %v607 = vpop.f32.mrb[0].mxu0
      %v608 = vadd.f32 0.0, %v607
      %v609 = vpop.f32.mrb[0].mxu0
      %610 = vmatprep.mubr.bf16.mxu0 0
      %611 = vmatmul.mubr.bf16.gmra.mrb[0].mxu0 %v472
      %v612 = vpop.f32.mrb[0].mxu0
      %v613 = vadd.f32 0.0, %v612
      %v614 = vpop.f32.mrb[0].mxu0
      %v615 = vpop.f32.mrb[0].mxu0
      %v616 = vadd.f32 0.0, %v615
      %v617 = vpop.f32.mrb[0].mxu0
      %618 = vmatprep.mubr.bf16.mxu0 0
      %619 = vmatmul.mubr.bf16.gmra.mrb[0].mxu0 %v475
      %v620 = vpop.f32.mrb[0].mxu0
      %v621 = vadd.f32 0.0, %v620
      %v622 = vpop.f32.mrb[0].mxu0
      %v623 = vpop.f32.mrb[0].mxu0
      %v624 = vadd.f32 0.0, %v623
      %v625 = vpop.f32.mrb[0].mxu0
      %626 = vmatprep.mubr.bf16.mxu0 0
      %627 = vmatmul.mubr.bf16.gmra.mrb[0].mxu0 %v478
      %v628 = vpop.f32.mrb[0].mxu0
      %v629 = vadd.f32 0.0, %v628
      %v630 = vpop.f32.mrb[0].mxu0
      %v631 = vpop.f32.mrb[0].mxu0
      %v632 = vadd.f32 0.0, %v631
      %v633 = vpop.f32.mrb[0].mxu0
      %634 = vmatprep.mubr.bf16.mxu0 0
      %635 = vmatmul.mubr.bf16.gmra.mrb[0].mxu0 %v481
      %v636 = vpop.f32.mrb[0].mxu0
      %v637 = vadd.f32 0.0, %v636
      %v638 = vpop.f32.mrb[0].mxu0
      %v639 = vpop.f32.mrb[0].mxu0
      %v640 = vadd.f32 0.0, %v639
      %v641 = vpop.f32.mrb[0].mxu0
      %642 = vmatprep.mubr.bf16.mxu0 0
      %643 = vmatmul.mubr.bf16.gmra.mrb[0].mxu0 %v484
      %v644 = vpop.f32.mrb[0].mxu0
      %v645 = vadd.f32 0.0, %v644
      %v646 = vpop.f32.mrb[0].mxu0
      %v647 = vpop.f32.mrb[0].mxu0
      %v648 = vadd.f32 0.0, %v647
      %v649 = vpop.f32.mrb[0].mxu0
      %650 = vdwg.mxu0
      %v652 = vsel %vm437, %v238, 0
      %v655 = vsel %vm437, %v239, 0
      %v658 = vsel %vm437, %v240, 0
      %v661 = vsel %vm437, %v241, 0
      %v664 = vsel %vm437, %v242, 0
      %v667 = vsel %vm437, %v243, 0
      %v670 = vsel %vm437, %v244, 0
      %v673 = vsel %vm437, %v245, 0
      %v676 = vsel %vm437, %v246, 0
      %v679 = vsel %vm437, %v247, 0
      %v682 = vsel %vm437, %v248, 0
      %v685 = vsel %vm437, %v249, 0
      %v688 = vsel %vm437, %v250, 0
      %v691 = vsel %vm437, %v251, 0
      %v694 = vsel %vm437, %v252, 0
      %v697 = vsel %vm437, %v253, 0
      %v700 = vsel %vm486, %v254, 0
      %702 = vmatprep.subr.bf16.mxu0 0
      %703 = vmatpush1.bf16.msra.mxu0 %v700
      %704 = vmatprep.subr.bf16.mxu0 0
      %705 = vmatpush1.bf16.msra.mxu0 0
      %706 = vmatprep.subr.bf16.mxu0 0
      %707 = vmatpush1.bf16.msra.mxu0 0
      %708 = vmatprep.subr.bf16.mxu0 0
      %709 = vmatpush1.bf16.msra.mxu0 0
      %710 = vmatprep.subr.bf16.mxu0 0
      %711 = vmatpush1.bf16.msra.mxu0 0
      %712 = vmatprep.subr.bf16.mxu0 0
      %713 = vmatpush1.bf16.msra.mxu0 0
      %714 = vmatprep.subr.bf16.mxu0 0
      %715 = vmatpush1.bf16.msra.mxu0 0
      %716 = vmatprep.subr.bf16.mxu0 0
      %717 = vmatpush1.bf16.msra.mxu0 0
      %718 = vmatprep.subr.bf16.mxu0 0
      %719 = vmatpush1.bf16.msra.mxu0 0
      %720 = vmatprep.subr.bf16.mxu0 0
      %721 = vmatpush1.bf16.msra.mxu0 0
      %722 = vmatprep.subr.bf16.mxu0 0
      %723 = vmatpush1.bf16.msra.mxu0 0
      %724 = vmatprep.subr.bf16.mxu0 0
      %725 = vmatpush1.bf16.msra.mxu0 0
      %726 = vmatprep.subr.bf16.mxu0 0
      %727 = vmatpush1.bf16.msra.mxu0 0
      %728 = vmatprep.subr.bf16.mxu0 0
      %729 = vmatpush1.bf16.msra.mxu0 0
      %730 = vmatprep.subr.bf16.mxu0 0
      %731 = vmatpush1.bf16.msra.mxu0 0
      %732 = vmatprep.subr.bf16.mxu0 0
      %733 = vmatpush1.bf16.msra.mxu0 0
      %734 = vmatprep.mubr.bf16.mxu0 0
      %735 = vmatmul.mubr.bf16.gmra.mrb[0].mxu0 %v652
      %v736 = vpop.f32.mrb[0].mxu0
      %v737 = vadd.f32 %v525, %v736
      %v738 = vpop.f32.mrb[0].mxu0
      %v739 = vpop.f32.mrb[0].mxu0
      %v740 = vadd.f32 %v528, %v739
      %v741 = vpop.f32.mrb[0].mxu0
      %742 = vmatprep.mubr.bf16.mxu0 0
      %743 = vmatmul.mubr.bf16.gmra.mrb[0].mxu0 %v655
      %v744 = vpop.f32.mrb[0].mxu0
      %v745 = vadd.f32 %v533, %v744
      %v746 = vpop.f32.mrb[0].mxu0
      %v747 = vpop.f32.mrb[0].mxu0
      %v748 = vadd.f32 %v536, %v747
      %v749 = vpop.f32.mrb[0].mxu0
      %750 = vmatprep.mubr.bf16.mxu0 0
      %751 = vmatmul.mubr.bf16.gmra.mrb[0].mxu0 %v658
      %v752 = vpop.f32.mrb[0].mxu0
      %v753 = vadd.f32 %v541, %v752
      %v754 = vpop.f32.mrb[0].mxu0
      %v755 = vpop.f32.mrb[0].mxu0
      %v756 = vadd.f32 %v544, %v755
      %v757 = vpop.f32.mrb[0].mxu0
      %758 = vmatprep.mubr.bf16.mxu0 0
      %759 = vmatmul.mubr.bf16.gmra.mrb[0].mxu0 %v661
      %v760 = vpop.f32.mrb[0].mxu0
      %v761 = vadd.f32 %v549, %v760
      %v762 = vpop.f32.mrb[0].mxu0
      %v763 = vpop.f32.mrb[0].mxu0
      %v764 = vadd.f32 %v552, %v763
      %v765 = vpop.f32.mrb[0].mxu0
      %766 = vmatprep.mubr.bf16.mxu0 0
      %767 = vmatmul.mubr.bf16.gmra.mrb[0].mxu0 %v664
      %v768 = vpop.f32.mrb[0].mxu0
      %v769 = vadd.f32 %v557, %v768
      %v770 = vpop.f32.mrb[0].mxu0
      %v771 = vpop.f32.mrb[0].mxu0
      %v772 = vadd.f32 %v560, %v771
      %v773 = vpop.f32.mrb[0].mxu0
      %774 = vmatprep.mubr.bf16.mxu0 0
      %775 = vmatmul.mubr.bf16.gmra.mrb[0].mxu0 %v667
      %v776 = vpop.f32.mrb[0].mxu0
      %v777 = vadd.f32 %v565, %v776
      %v778 = vpop.f32.mrb[0].mxu0
      %v779 = vpop.f32.mrb[0].mxu0
      %v780 = vadd.f32 %v568, %v779
      %v781 = vpop.f32.mrb[0].mxu0
      %782 = vmatprep.mubr.bf16.mxu0 0
      %783 = vmatmul.mubr.bf16.gmra.mrb[0].mxu0 %v670
      %v784 = vpop.f32.mrb[0].mxu0
      %v785 = vadd.f32 %v573, %v784
      %v786 = vpop.f32.mrb[0].mxu0
      %v787 = vpop.f32.mrb[0].mxu0
      %v788 = vadd.f32 %v576, %v787
      %v789 = vpop.f32.mrb[0].mxu0
      %790 = vmatprep.mubr.bf16.mxu0 0
      %791 = vmatmul.mubr.bf16.gmra.mrb[0].mxu0 %v673
      %v792 = vpop.f32.mrb[0].mxu0
      %v793 = vadd.f32 %v581, %v792
      %v794 = vpop.f32.mrb[0].mxu0
      %v795 = vpop.f32.mrb[0].mxu0
      %v796 = vadd.f32 %v584, %v795
      %v797 = vpop.f32.mrb[0].mxu0
      %798 = vmatprep.mubr.bf16.mxu0 0
      %799 = vmatmul.mubr.bf16.gmra.mrb[0].mxu0 %v676
      %v800 = vpop.f32.mrb[0].mxu0
      %v801 = vadd.f32 %v589, %v800
      %v802 = vpop.f32.mrb[0].mxu0
      %v803 = vpop.f32.mrb[0].mxu0
      %v804 = vadd.f32 %v592, %v803
      %v805 = vpop.f32.mrb[0].mxu0
      %806 = vmatprep.mubr.bf16.mxu0 0
      %807 = vmatmul.mubr.bf16.gmra.mrb[0].mxu0 %v679
      %v808 = vpop.f32.mrb[0].mxu0
      %v809 = vadd.f32 %v597, %v808
      %v810 = vpop.f32.mrb[0].mxu0
      %v811 = vpop.f32.mrb[0].mxu0
      %v812 = vadd.f32 %v600, %v811
      %v813 = vpop.f32.mrb[0].mxu0
      %814 = vmatprep.mubr.bf16.mxu0 0
      %815 = vmatmul.mubr.bf16.gmra.mrb[0].mxu0 %v682
      %v816 = vpop.f32.mrb[0].mxu0
      %v817 = vadd.f32 %v605, %v816
      %v818 = vpop.f32.mrb[0].mxu0
      %v819 = vpop.f32.mrb[0].mxu0
      %v820 = vadd.f32 %v608, %v819
      %v821 = vpop.f32.mrb[0].mxu0
      %822 = vmatprep.mubr.bf16.mxu0 0
      %823 = vmatmul.mubr.bf16.gmra.mrb[0].mxu0 %v685
      %v824 = vpop.f32.mrb[0].mxu0
      %v825 = vadd.f32 %v613, %v824
      %v826 = vpop.f32.mrb[0].mxu0
      %v827 = vpop.f32.mrb[0].mxu0
      %v828 = vadd.f32 %v616, %v827
      %v829 = vpop.f32.mrb[0].mxu0
      %830 = vmatprep.mubr.bf16.mxu0 0
      %831 = vmatmul.mubr.bf16.gmra.mrb[0].mxu0 %v688
      %v832 = vpop.f32.mrb[0].mxu0
      %v833 = vadd.f32 %v621, %v832
      %v834 = vpop.f32.mrb[0].mxu0
      %v835 = vpop.f32.mrb[0].mxu0
      %v836 = vadd.f32 %v624, %v835
      %v837 = vpop.f32.mrb[0].mxu0
      %838 = vmatprep.mubr.bf16.mxu0 0
      %839 = vmatmul.mubr.bf16.gmra.mrb[0].mxu0 %v691
      %v840 = vpop.f32.mrb[0].mxu0
      %v841 = vadd.f32 %v629, %v840
      %v842 = vpop.f32.mrb[0].mxu0
      %v843 = vpop.f32.mrb[0].mxu0
      %v844 = vadd.f32 %v632, %v843
      %v845 = vpop.f32.mrb[0].mxu0
      %846 = vmatprep.mubr.bf16.mxu0 0
      %847 = vmatmul.mubr.bf16.gmra.mrb[0].mxu0 %v694
      %v848 = vpop.f32.mrb[0].mxu0
      %v849 = vadd.f32 %v637, %v848
      %v850 = vpop.f32.mrb[0].mxu0
      %v851 = vpop.f32.mrb[0].mxu0
      %v852 = vadd.f32 %v640, %v851
      %v853 = vpop.f32.mrb[0].mxu0
      %854 = vmatprep.mubr.bf16.mxu0 0
      %855 = vmatmul.mubr.bf16.gmra.mrb[0].mxu0 %v697
      %v856 = vpop.f32.mrb[0].mxu0
      %v857 = vadd.f32 %v645, %v856
      %v858 = vpop.f32.mrb[0].mxu0
      %v859 = vpop.f32.mrb[0].mxu0
      %v860 = vadd.f32 %v648, %v859
      %v861 = vpop.f32.mrb[0].mxu0
      %862 = vdwg.mxu0
      %vm863 = vcmask 1045504
      %v864 = vrot.slane %v184, 2
      %v865 = vrot.slane %v185, 2
      %v866 = vsel %vm863, %v864, %v865
      %v867 = vrot.slane %v186, 2
      %v868 = vsel %vm863, %v865, %v867
      %v869 = vrot.slane %v187, 2
      %v870 = vrot.slane %v188, 2
      %v871 = vsel %vm863, %v869, %v870
      %v872 = vrot.slane %v189, 2
      %v873 = vsel %vm863, %v870, %v872
      %v874 = vrot.slane %v190, 2
      %v875 = vrot.slane %v191, 2
      %v876 = vsel %vm863, %v874, %v875
      %v877 = vrot.slane %v192, 2
      %v878 = vsel %vm863, %v875, %v877
      %v879 = vrot.slane %v193, 2
      %v880 = vrot.slane %v194, 2
      %v881 = vsel %vm863, %v879, %v880
      %v882 = vrot.slane %v195, 2
      %v883 = vsel %vm863, %v880, %v882
      %v884 = vrot.slane %v196, 2
      %v885 = vrot.slane %v197, 2
      %v886 = vsel %vm863, %v884, %v885
      %v887 = vrot.slane %v198, 2
      %v888 = vsel %vm863, %v885, %v887
      %v889 = vrot.slane %v199, 2
      %v890 = vrot.slane %v200, 2
      %v891 = vsel %vm863, %v889, %v890
      %v892 = vrot.slane %v201, 2
      %v893 = vsel %vm863, %v890, %v892
      %v894 = vrot.slane %v202, 2
      %v895 = vrot.slane %v203, 2
      %v896 = vsel %vm863, %v894, %v895
      %v897 = vrot.slane %v204, 2
      %v898 = vsel %vm863, %v895, %v897
      %v899 = vrot.slane %v205, 2
      %v900 = vrot.slane %v206, 2
      %v901 = vsel %vm863, %v899, %v900
      %v902 = vrot.slane %v207, 2
      %v903 = vsel %vm863, %v900, %v902
      %v904 = vrot.slane %v208, 2
      %v905 = vrot.slane %v209, 2
      %v906 = vsel %vm863, %v904, %v905
      %v907 = vrot.slane %v210, 2
      %v908 = vsel %vm863, %v905, %v907
      %v909 = vrot.slane %v211, 2
      %v910 = vrot.slane %v212, 2
      %v911 = vsel %vm863, %v909, %v910
      %v912 = vrot.slane %v213, 2
      %v913 = vsel %vm863, %v910, %v912
      %v914 = vrot.slane %v214, 2
      %v915 = vrot.slane %v215, 2
      %v916 = vsel %vm863, %v914, %v915
      %v917 = vrot.slane %v216, 2
      %v918 = vsel %vm863, %v915, %v917
      %v919 = vrot.slane %v217, 2
      %v920 = vrot.slane %v218, 2
      %v921 = vsel %vm863, %v919, %v920
      %v922 = vrot.slane %v219, 2
      %v923 = vsel %vm863, %v920, %v922
      %v924 = vrot.slane %v220, 2
      %v925 = vrot.slane %v221, 2
      %v926 = vsel %vm863, %v924, %v925
      %v927 = vrot.slane %v222, 2
      %v928 = vsel %vm863, %v925, %v927
      %v929 = vrot.slane %v223, 2
      %v930 = vrot.slane %v224, 2
      %v931 = vsel %vm863, %v929, %v930
      %v932 = vrot.slane %v225, 2
      %v933 = vsel %vm863, %v930, %v932
      %v934 = vrot.slane %v226, 2
      %v935 = vrot.slane %v227, 2
      %v936 = vsel %vm863, %v934, %v935
      %v937 = vrot.slane %v228, 2
      %v938 = vsel %vm863, %v935, %v937
      %v939 = vrot.slane %v229, 2
      %v940 = vrot.slane %v230, 2
      %v941 = vsel %vm863, %v939, %v940
      %v942 = vrot.slane %v231, 2
      %v943 = vsel %vm863, %v940, %v942
      %v976 = vpack.c.bf16 %v868, %v866
      %v977 = vpack.c.bf16 %v873, %v871
      %v978 = vpack.c.bf16 %v878, %v876
      %v979 = vpack.c.bf16 %v883, %v881
      %v980 = vpack.c.bf16 %v888, %v886
      %v981 = vpack.c.bf16 %v893, %v891
      %v982 = vpack.c.bf16 %v898, %v896
      %v983 = vpack.c.bf16 %v903, %v901
      %v984 = vpack.c.bf16 %v908, %v906
      %v985 = vpack.c.bf16 %v913, %v911
      %v986 = vpack.c.bf16 %v918, %v916
      %v987 = vpack.c.bf16 %v923, %v921
      %v988 = vpack.c.bf16 %v928, %v926
      %v989 = vpack.c.bf16 %v933, %v931
      %v990 = vpack.c.bf16 %v938, %v936
      %v991 = vpack.c.bf16 %v943, %v941
      %v992 = vld [vmem:[%s1 + $0x4] sm:$0x3]
      %v994 = vsel %vm437, %v976, 0
      %v997 = vsel %vm437, %v977, 0
      %v1000 = vsel %vm437, %v978, 0
      %v1003 = vsel %vm437, %v979, 0
      %v1006 = vsel %vm437, %v980, 0
      %v1009 = vsel %vm437, %v981, 0
      %v1012 = vsel %vm437, %v982, 0
      %v1015 = vsel %vm437, %v983, 0
      %v1018 = vsel %vm437, %v984, 0
      %v1021 = vsel %vm437, %v985, 0
      %v1024 = vsel %vm437, %v986, 0
      %v1027 = vsel %vm437, %v987, 0
      %v1030 = vsel %vm437, %v988, 0
      %v1033 = vsel %vm437, %v989, 0
      %v1036 = vsel %vm437, %v990, 0
      %v1039 = vsel %vm437, %v991, 0
      %v1042 = vsel %vm486, %v992, 0
      %1044 = vmatprep.subr.bf16.mxu0 0
      %1045 = vmatpush1.bf16.msra.mxu0 %v1042
      %1046 = vmatprep.subr.bf16.mxu0 0
      %1047 = vmatpush1.bf16.msra.mxu0 0
      %1048 = vmatprep.subr.bf16.mxu0 0
      %1049 = vmatpush1.bf16.msra.mxu0 0
      %1050 = vmatprep.subr.bf16.mxu0 0
      %1051 = vmatpush1.bf16.msra.mxu0 0
      %1052 = vmatprep.subr.bf16.mxu0 0
      %1053 = vmatpush1.bf16.msra.mxu0 0
      %1054 = vmatprep.subr.bf16.mxu0 0
      %1055 = vmatpush1.bf16.msra.mxu0 0
      %1056 = vmatprep.subr.bf16.mxu0 0
      %1057 = vmatpush1.bf16.msra.mxu0 0
      %1058 = vmatprep.subr.bf16.mxu0 0
      %1059 = vmatpush1.bf16.msra.mxu0 0
      %1060 = vmatprep.subr.bf16.mxu0 0
      %1061 = vmatpush1.bf16.msra.mxu0 0
      %1062 = vmatprep.subr.bf16.mxu0 0
      %1063 = vmatpush1.bf16.msra.mxu0 0
      %1064 = vmatprep.subr.bf16.mxu0 0
      %1065 = vmatpush1.bf16.msra.mxu0 0
      %1066 = vmatprep.subr.bf16.mxu0 0
      %1067 = vmatpush1.bf16.msra.mxu0 0
      %1068 = vmatprep.subr.bf16.mxu0 0
      %1069 = vmatpush1.bf16.msra.mxu0 0
      %1070 = vmatprep.subr.bf16.mxu0 0
      %1071 = vmatpush1.bf16.msra.mxu0 0
      %1072 = vmatprep.subr.bf16.mxu0 0
      %1073 = vmatpush1.bf16.msra.mxu0 0
      %1074 = vmatprep.subr.bf16.mxu0 0
      %1075 = vmatpush1.bf16.msra.mxu0 0
      %1076 = vmatprep.mubr.bf16.mxu0 0
      %1077 = vmatmul.mubr.bf16.gmra.mrb[0].mxu0 %v994
      %v1078 = vpop.f32.mrb[0].mxu0
      %v1079 = vadd.f32 0.0, %v1078
      %v1080 = vpop.f32.mrb[0].mxu0
      %v1081 = vpop.f32.mrb[0].mxu0
      %v1082 = vadd.f32 0.0, %v1081
      %v1083 = vpop.f32.mrb[0].mxu0
      %1084 = vmatprep.mubr.bf16.mxu0 0
      %1085 = vmatmul.mubr.bf16.gmra.mrb[0].mxu0 %v997
      %v1086 = vpop.f32.mrb[0].mxu0
      %v1087 = vadd.f32 0.0, %v1086
      %v1088 = vpop.f32.mrb[0].mxu0
      %v1089 = vpop.f32.mrb[0].mxu0
      %v1090 = vadd.f32 0.0, %v1089
      %v1091 = vpop.f32.mrb[0].mxu0
      %1092 = vmatprep.mubr.bf16.mxu0 0
      %1093 = vmatmul.mubr.bf16.gmra.mrb[0].mxu0 %v1000
      %v1094 = vpop.f32.mrb[0].mxu0
      %v1095 = vadd.f32 0.0, %v1094
      %v1096 = vpop.f32.mrb[0].mxu0
      %v1097 = vpop.f32.mrb[0].mxu0
      %v1098 = vadd.f32 0.0, %v1097
      %v1099 = vpop.f32.mrb[0].mxu0
      %1100 = vmatprep.mubr.bf16.mxu0 0
      %1101 = vmatmul.mubr.bf16.gmra.mrb[0].mxu0 %v1003
      %v1102 = vpop.f32.mrb[0].mxu0
      %v1103 = vadd.f32 0.0, %v1102
      %v1104 = vpop.f32.mrb[0].mxu0
      %v1105 = vpop.f32.mrb[0].mxu0
      %v1106 = vadd.f32 0.0, %v1105
      %v1107 = vpop.f32.mrb[0].mxu0
      %1108 = vmatprep.mubr.bf16.mxu0 0
      %1109 = vmatmul.mubr.bf16.gmra.mrb[0].mxu0 %v1006
      %v1110 = vpop.f32.mrb[0].mxu0
      %v1111 = vadd.f32 0.0, %v1110
      %v1112 = vpop.f32.mrb[0].mxu0
      %v1113 = vpop.f32.mrb[0].mxu0
      %v1114 = vadd.f32 0.0, %v1113
      %v1115 = vpop.f32.mrb[0].mxu0
      %1116 = vmatprep.mubr.bf16.mxu0 0
      %1117 = vmatmul.mubr.bf16.gmra.mrb[0].mxu0 %v1009
      %v1118 = vpop.f32.mrb[0].mxu0
      %v1119 = vadd.f32 0.0, %v1118
      %v1120 = vpop.f32.mrb[0].mxu0
      %v1121 = vpop.f32.mrb[0].mxu0
      %v1122 = vadd.f32 0.0, %v1121
      %v1123 = vpop.f32.mrb[0].mxu0
      %1124 = vmatprep.mubr.bf16.mxu0 0
      %1125 = vmatmul.mubr.bf16.gmra.mrb[0].mxu0 %v1012
      %v1126 = vpop.f32.mrb[0].mxu0
      %v1127 = vadd.f32 0.0, %v1126
      %v1128 = vpop.f32.mrb[0].mxu0
      %v1129 = vpop.f32.mrb[0].mxu0
      %v1130 = vadd.f32 0.0, %v1129
      %v1131 = vpop.f32.mrb[0].mxu0
      %1132 = vmatprep.mubr.bf16.mxu0 0
      %1133 = vmatmul.mubr.bf16.gmra.mrb[0].mxu0 %v1015
      %v1134 = vpop.f32.mrb[0].mxu0
      %v1135 = vadd.f32 0.0, %v1134
      %v1136 = vpop.f32.mrb[0].mxu0
      %v1137 = vpop.f32.mrb[0].mxu0
      %v1138 = vadd.f32 0.0, %v1137
      %v1139 = vpop.f32.mrb[0].mxu0
      %1140 = vmatprep.mubr.bf16.mxu0 0
      %1141 = vmatmul.mubr.bf16.gmra.mrb[0].mxu0 %v1018
      %v1142 = vpop.f32.mrb[0].mxu0
      %v1143 = vadd.f32 0.0, %v1142
      %v1144 = vpop.f32.mrb[0].mxu0
      %v1145 = vpop.f32.mrb[0].mxu0
      %v1146 = vadd.f32 0.0, %v1145
      %v1147 = vpop.f32.mrb[0].mxu0
      %1148 = vmatprep.mubr.bf16.mxu0 0
      %1149 = vmatmul.mubr.bf16.gmra.mrb[0].mxu0 %v1021
      %v1150 = vpop.f32.mrb[0].mxu0
      %v1151 = vadd.f32 0.0, %v1150
      %v1152 = vpop.f32.mrb[0].mxu0
      %v1153 = vpop.f32.mrb[0].mxu0
      %v1154 = vadd.f32 0.0, %v1153
      %v1155 = vpop.f32.mrb[0].mxu0
      %1156 = vmatprep.mubr.bf16.mxu0 0
      %1157 = vmatmul.mubr.bf16.gmra.mrb[0].mxu0 %v1024
      %v1158 = vpop.f32.mrb[0].mxu0
      %v1159 = vadd.f32 0.0, %v1158
      %v1160 = vpop.f32.mrb[0].mxu0
      %v1161 = vpop.f32.mrb[0].mxu0
      %v1162 = vadd.f32 0.0, %v1161
      %v1163 = vpop.f32.mrb[0].mxu0
      %1164 = vmatprep.mubr.bf16.mxu0 0
      %1165 = vmatmul.mubr.bf16.gmra.mrb[0].mxu0 %v1027
      %v1166 = vpop.f32.mrb[0].mxu0
      %v1167 = vadd.f32 0.0, %v1166
      %v1168 = vpop.f32.mrb[0].mxu0
      %v1169 = vpop.f32.mrb[0].mxu0
      %v1170 = vadd.f32 0.0, %v1169
      %v1171 = vpop.f32.mrb[0].mxu0
      %1172 = vmatprep.mubr.bf16.mxu0 0
      %1173 = vmatmul.mubr.bf16.gmra.mrb[0].mxu0 %v1030
      %v1174 = vpop.f32.mrb[0].mxu0
      %v1175 = vadd.f32 0.0, %v1174
      %v1176 = vpop.f32.mrb[0].mxu0
      %v1177 = vpop.f32.mrb[0].mxu0
      %v1178 = vadd.f32 0.0, %v1177
      %v1179 = vpop.f32.mrb[0].mxu0
      %1180 = vmatprep.mubr.bf16.mxu0 0
      %1181 = vmatmul.mubr.bf16.gmra.mrb[0].mxu0 %v1033
      %v1182 = vpop.f32.mrb[0].mxu0
      %v1183 = vadd.f32 0.0, %v1182
      %v1184 = vpop.f32.mrb[0].mxu0
      %v1185 = vpop.f32.mrb[0].mxu0
      %v1186 = vadd.f32 0.0, %v1185
      %v1187 = vpop.f32.mrb[0].mxu0
      %1188 = vmatprep.mubr.bf16.mxu0 0
      %1189 = vmatmul.mubr.bf16.gmra.mrb[0].mxu0 %v1036
      %v1190 = vpop.f32.mrb[0].mxu0
      %v1191 = vadd.f32 0.0, %v1190
      %v1192 = vpop.f32.mrb[0].mxu0
      %v1193 = vpop.f32.mrb[0].mxu0
      %v1194 = vadd.f32 0.0, %v1193
      %v1195 = vpop.f32.mrb[0].mxu0
      %1196 = vmatprep.mubr.bf16.mxu0 0
      %1197 = vmatmul.mubr.bf16.gmra.mrb[0].mxu0 %v1039
      %v1198 = vpop.f32.mrb[0].mxu0
      %v1199 = vadd.f32 0.0, %v1198
      %v1200 = vpop.f32.mrb[0].mxu0
      %v1201 = vpop.f32.mrb[0].mxu0
      %v1202 = vadd.f32 0.0, %v1201
      %v1203 = vpop.f32.mrb[0].mxu0
      %1204 = vdwg.mxu0
      %v1205 = vadd.f32 %v737, %v1079
      %v1206 = vadd.f32 %v740, %v1082
      %v1207 = vadd.f32 %v745, %v1087
      %v1208 = vadd.f32 %v748, %v1090
      %v1209 = vadd.f32 %v753, %v1095
      %v1210 = vadd.f32 %v756, %v1098
      %v1211 = vadd.f32 %v761, %v1103
      %v1212 = vadd.f32 %v764, %v1106
      %v1213 = vadd.f32 %v769, %v1111
      %v1214 = vadd.f32 %v772, %v1114
      %v1215 = vadd.f32 %v777, %v1119
      %v1216 = vadd.f32 %v780, %v1122
      %v1217 = vadd.f32 %v785, %v1127
      %v1218 = vadd.f32 %v788, %v1130
      %v1219 = vadd.f32 %v793, %v1135
      %v1220 = vadd.f32 %v796, %v1138
      %v1221 = vadd.f32 %v801, %v1143
      %v1222 = vadd.f32 %v804, %v1146
      %v1223 = vadd.f32 %v809, %v1151
      %v1224 = vadd.f32 %v812, %v1154
      %v1225 = vadd.f32 %v817, %v1159
      %v1226 = vadd.f32 %v820, %v1162
      %v1227 = vadd.f32 %v825, %v1167
      %v1228 = vadd.f32 %v828, %v1170
      %v1229 = vadd.f32 %v833, %v1175
      %v1230 = vadd.f32 %v836, %v1178
      %v1231 = vadd.f32 %v841, %v1183
      %v1232 = vadd.f32 %v844, %v1186
      %v1233 = vadd.f32 %v849, %v1191
      %v1234 = vadd.f32 %v852, %v1194
      %v1235 = vadd.f32 %v857, %v1199
      %v1236 = vadd.f32 %v860, %v1202
      %v1237 = vpack.c.bf16 %v233, %v232
      %v1238 = vld [vmem:[%s1 + $0x4] sm:$0xc]
      %v1240 = vunpack.c.l.b16 %v1238
      %v1241 = vpack.c.b16 %v1240, %v1240
      %v1242 = vrot.slane %v1241, 2
      %v1244 = vsel %vm437, %v1237, 0
      %v1247 = vsel %vm486, %v1242, 0
      %1249 = vmatprep.subr.bf16.mxu0 0
      %1250 = vmatpush1.bf16.msra.mxu0 %v1247
      %1251 = vmatprep.subr.bf16.mxu0 0
      %1252 = vmatpush1.bf16.msra.mxu0 0
      %1253 = vmatprep.subr.bf16.mxu0 0
      %1254 = vmatpush1.bf16.msra.mxu0 0
      %1255 = vmatprep.subr.bf16.mxu0 0
      %1256 = vmatpush1.bf16.msra.mxu0 0
      %1257 = vmatprep.subr.bf16.mxu0 0
      %1258 = vmatpush1.bf16.msra.mxu0 0
      %1259 = vmatprep.subr.bf16.mxu0 0
      %1260 = vmatpush1.bf16.msra.mxu0 0
      %1261 = vmatprep.subr.bf16.mxu0 0
      %1262 = vmatpush1.bf16.msra.mxu0 0
      %1263 = vmatprep.subr.bf16.mxu0 0
      %1264 = vmatpush1.bf16.msra.mxu0 0
      %1265 = vmatprep.subr.bf16.mxu0 0
      %1266 = vmatpush1.bf16.msra.mxu0 0
      %1267 = vmatprep.subr.bf16.mxu0 0
      %1268 = vmatpush1.bf16.msra.mxu0 0
      %1269 = vmatprep.subr.bf16.mxu0 0
      %1270 = vmatpush1.bf16.msra.mxu0 0
      %1271 = vmatprep.subr.bf16.mxu0 0
      %1272 = vmatpush1.bf16.msra.mxu0 0
      %1273 = vmatprep.subr.bf16.mxu0 0
      %1274 = vmatpush1.bf16.msra.mxu0 0
      %1275 = vmatprep.subr.bf16.mxu0 0
      %1276 = vmatpush1.bf16.msra.mxu0 0
      %1277 = vmatprep.subr.bf16.mxu0 0
      %1278 = vmatpush1.bf16.msra.mxu0 0
      %1279 = vmatprep.subr.bf16.mxu0 0
      %1280 = vmatpush1.bf16.msra.mxu0 0
      %1281 = vmatprep.mubr.bf16.mxu0 0
      %1282 = vmatmul.mubr.bf16.gmra.mrb[0].mxu0 %v655
      %v1283 = vpop.f32.mrb[0].mxu0
      %v1284 = vadd.f32 0.0, %v1283
      %v1285 = vpop.f32.mrb[0].mxu0
      %v1286 = vpop.f32.mrb[0].mxu0
      %v1287 = vadd.f32 0.0, %v1286
      %v1288 = vpop.f32.mrb[0].mxu0
      %1289 = vmatprep.mubr.bf16.mxu0 0
      %1290 = vmatmul.mubr.bf16.gmra.mrb[0].mxu0 %v658
      %v1291 = vpop.f32.mrb[0].mxu0
      %v1292 = vadd.f32 0.0, %v1291
      %v1293 = vpop.f32.mrb[0].mxu0
      %v1294 = vpop.f32.mrb[0].mxu0
      %v1295 = vadd.f32 0.0, %v1294
      %v1296 = vpop.f32.mrb[0].mxu0
      %1297 = vmatprep.mubr.bf16.mxu0 0
      %1298 = vmatmul.mubr.bf16.gmra.mrb[0].mxu0 %v661
      %v1299 = vpop.f32.mrb[0].mxu0
      %v1300 = vadd.f32 0.0, %v1299
      %v1301 = vpop.f32.mrb[0].mxu0
      %v1302 = vpop.f32.mrb[0].mxu0
      %v1303 = vadd.f32 0.0, %v1302
      %v1304 = vpop.f32.mrb[0].mxu0
      %1305 = vmatprep.mubr.bf16.mxu0 0
      %1306 = vmatmul.mubr.bf16.gmra.mrb[0].mxu0 %v664
      %v1307 = vpop.f32.mrb[0].mxu0
      %v1308 = vadd.f32 0.0, %v1307
      %v1309 = vpop.f32.mrb[0].mxu0
      %v1310 = vpop.f32.mrb[0].mxu0
      %v1311 = vadd.f32 0.0, %v1310
      %v1312 = vpop.f32.mrb[0].mxu0
      %1313 = vmatprep.mubr.bf16.mxu0 0
      %1314 = vmatmul.mubr.bf16.gmra.mrb[0].mxu0 %v667
      %v1315 = vpop.f32.mrb[0].mxu0
      %v1316 = vadd.f32 0.0, %v1315
      %v1317 = vpop.f32.mrb[0].mxu0
      %v1318 = vpop.f32.mrb[0].mxu0
      %v1319 = vadd.f32 0.0, %v1318
      %v1320 = vpop.f32.mrb[0].mxu0
      %1321 = vmatprep.mubr.bf16.mxu0 0
      %1322 = vmatmul.mubr.bf16.gmra.mrb[0].mxu0 %v670
      %v1323 = vpop.f32.mrb[0].mxu0
      %v1324 = vadd.f32 0.0, %v1323
      %v1325 = vpop.f32.mrb[0].mxu0
      %v1326 = vpop.f32.mrb[0].mxu0
      %v1327 = vadd.f32 0.0, %v1326
      %v1328 = vpop.f32.mrb[0].mxu0
      %1329 = vmatprep.mubr.bf16.mxu0 0
      %1330 = vmatmul.mubr.bf16.gmra.mrb[0].mxu0 %v673
      %v1331 = vpop.f32.mrb[0].mxu0
      %v1332 = vadd.f32 0.0, %v1331
      %v1333 = vpop.f32.mrb[0].mxu0
      %v1334 = vpop.f32.mrb[0].mxu0
      %v1335 = vadd.f32 0.0, %v1334
      %v1336 = vpop.f32.mrb[0].mxu0
      %1337 = vmatprep.mubr.bf16.mxu0 0
      %1338 = vmatmul.mubr.bf16.gmra.mrb[0].mxu0 %v676
      %v1339 = vpop.f32.mrb[0].mxu0
      %v1340 = vadd.f32 0.0, %v1339
      %v1341 = vpop.f32.mrb[0].mxu0
      %v1342 = vpop.f32.mrb[0].mxu0
      %v1343 = vadd.f32 0.0, %v1342
      %v1344 = vpop.f32.mrb[0].mxu0
      %1345 = vmatprep.mubr.bf16.mxu0 0
      %1346 = vmatmul.mubr.bf16.gmra.mrb[0].mxu0 %v679
      %v1347 = vpop.f32.mrb[0].mxu0
      %v1348 = vadd.f32 0.0, %v1347
      %v1349 = vpop.f32.mrb[0].mxu0
      %v1350 = vpop.f32.mrb[0].mxu0
      %v1351 = vadd.f32 0.0, %v1350
      %v1352 = vpop.f32.mrb[0].mxu0
      %1353 = vmatprep.mubr.bf16.mxu0 0
      %1354 = vmatmul.mubr.bf16.gmra.mrb[0].mxu0 %v682
      %v1355 = vpop.f32.mrb[0].mxu0
      %v1356 = vadd.f32 0.0, %v1355
      %v1357 = vpop.f32.mrb[0].mxu0
      %v1358 = vpop.f32.mrb[0].mxu0
      %v1359 = vadd.f32 0.0, %v1358
      %v1360 = vpop.f32.mrb[0].mxu0
      %1361 = vmatprep.mubr.bf16.mxu0 0
      %1362 = vmatmul.mubr.bf16.gmra.mrb[0].mxu0 %v685
      %v1363 = vpop.f32.mrb[0].mxu0
      %v1364 = vadd.f32 0.0, %v1363
      %v1365 = vpop.f32.mrb[0].mxu0
      %v1366 = vpop.f32.mrb[0].mxu0
      %v1367 = vadd.f32 0.0, %v1366
      %v1368 = vpop.f32.mrb[0].mxu0
      %1369 = vmatprep.mubr.bf16.mxu0 0
      %1370 = vmatmul.mubr.bf16.gmra.mrb[0].mxu0 %v688
      %v1371 = vpop.f32.mrb[0].mxu0
      %v1372 = vadd.f32 0.0, %v1371
      %v1373 = vpop.f32.mrb[0].mxu0
      %v1374 = vpop.f32.mrb[0].mxu0
      %v1375 = vadd.f32 0.0, %v1374
      %v1376 = vpop.f32.mrb[0].mxu0
      %1377 = vmatprep.mubr.bf16.mxu0 0
      %1378 = vmatmul.mubr.bf16.gmra.mrb[0].mxu0 %v691
      %v1379 = vpop.f32.mrb[0].mxu0
      %v1380 = vadd.f32 0.0, %v1379
      %v1381 = vpop.f32.mrb[0].mxu0
      %v1382 = vpop.f32.mrb[0].mxu0
      %v1383 = vadd.f32 0.0, %v1382
      %v1384 = vpop.f32.mrb[0].mxu0
      %1385 = vmatprep.mubr.bf16.mxu0 0
      %1386 = vmatmul.mubr.bf16.gmra.mrb[0].mxu0 %v694
      %v1387 = vpop.f32.mrb[0].mxu0
      %v1388 = vadd.f32 0.0, %v1387
      %v1389 = vpop.f32.mrb[0].mxu0
      %v1390 = vpop.f32.mrb[0].mxu0
      %v1391 = vadd.f32 0.0, %v1390
      %v1392 = vpop.f32.mrb[0].mxu0
      %1393 = vmatprep.mubr.bf16.mxu0 0
      %1394 = vmatmul.mubr.bf16.gmra.mrb[0].mxu0 %v697
      %v1395 = vpop.f32.mrb[0].mxu0
      %v1396 = vadd.f32 0.0, %v1395
      %v1397 = vpop.f32.mrb[0].mxu0
      %v1398 = vpop.f32.mrb[0].mxu0
      %v1399 = vadd.f32 0.0, %v1398
      %v1400 = vpop.f32.mrb[0].mxu0
      %1401 = vmatprep.mubr.bf16.mxu0 0
      %1402 = vmatmul.mubr.bf16.gmra.mrb[0].mxu0 %v1244
      %v1403 = vpop.f32.mrb[0].mxu0
      %v1404 = vadd.f32 0.0, %v1403
      %v1405 = vpop.f32.mrb[0].mxu0
      %v1406 = vpop.f32.mrb[0].mxu0
      %v1407 = vadd.f32 0.0, %v1406
      %v1408 = vpop.f32.mrb[0].mxu0
      %1409 = vdwg.mxu0
      %v1410 = vadd.f32 %v1205, %v1284
      %v1411 = vadd.f32 %v1206, %v1287
      %v1412 = vadd.f32 %v1207, %v1292
      %v1413 = vadd.f32 %v1208, %v1295
      %v1414 = vadd.f32 %v1209, %v1300
      %v1415 = vadd.f32 %v1210, %v1303
      %v1416 = vadd.f32 %v1211, %v1308
      %v1417 = vadd.f32 %v1212, %v1311
      %v1418 = vadd.f32 %v1213, %v1316
      %v1419 = vadd.f32 %v1214, %v1319
      %v1420 = vadd.f32 %v1215, %v1324
      %v1421 = vadd.f32 %v1216, %v1327
      %v1422 = vadd.f32 %v1217, %v1332
      %v1423 = vadd.f32 %v1218, %v1335
      %v1424 = vadd.f32 %v1219, %v1340
      %v1425 = vadd.f32 %v1220, %v1343
      %v1426 = vadd.f32 %v1221, %v1348
      %v1427 = vadd.f32 %v1222, %v1351
      %v1428 = vadd.f32 %v1223, %v1356
      %v1429 = vadd.f32 %v1224, %v1359
      %v1430 = vadd.f32 %v1225, %v1364
      %v1431 = vadd.f32 %v1226, %v1367
      %v1432 = vadd.f32 %v1227, %v1372
      %v1433 = vadd.f32 %v1228, %v1375
      %v1434 = vadd.f32 %v1229, %v1380
      %v1435 = vadd.f32 %v1230, %v1383
      %v1436 = vadd.f32 %v1231, %v1388
      %v1437 = vadd.f32 %v1232, %v1391
      %v1438 = vadd.f32 %v1233, %v1396
      %v1439 = vadd.f32 %v1234, %v1399
      %v1440 = vadd.f32 %v1235, %v1404
      %v1441 = vadd.f32 %v1236, %v1407
      %v1445 = vrot.slane %v232, 1
      %v1446 = vrot.slane %v233, 1
      %v1447 = vsel %vm303, %v1445, %v1446
      %v1448 = vrot.slane %v234, 1
      %v1449 = vsel %vm303, %v1446, %v1448
      %v1452 = vpack.c.bf16 %v1449, %v1447
      %v1453 = vld [vmem:[%s1 + $0x8] sm:$0x3]
      %v1455 = vsel %vm437, %v1452, 0
      %v1458 = vsel %vm486, %v1453, 0
      %1460 = vmatprep.subr.bf16.mxu0 0
      %1461 = vmatpush1.bf16.msra.mxu0 %v1458
      %1462 = vmatprep.subr.bf16.mxu0 0
      %1463 = vmatpush1.bf16.msra.mxu0 0
      %1464 = vmatprep.subr.bf16.mxu0 0
      %1465 = vmatpush1.bf16.msra.mxu0 0
      %1466 = vmatprep.subr.bf16.mxu0 0
      %1467 = vmatpush1.bf16.msra.mxu0 0
      %1468 = vmatprep.subr.bf16.mxu0 0
      %1469 = vmatpush1.bf16.msra.mxu0 0
      %1470 = vmatprep.subr.bf16.mxu0 0
      %1471 = vmatpush1.bf16.msra.mxu0 0
      %1472 = vmatprep.subr.bf16.mxu0 0
      %1473 = vmatpush1.bf16.msra.mxu0 0
      %1474 = vmatprep.subr.bf16.mxu0 0
      %1475 = vmatpush1.bf16.msra.mxu0 0
      %1476 = vmatprep.subr.bf16.mxu0 0
      %1477 = vmatpush1.bf16.msra.mxu0 0
      %1478 = vmatprep.subr.bf16.mxu0 0
      %1479 = vmatpush1.bf16.msra.mxu0 0
      %1480 = vmatprep.subr.bf16.mxu0 0
      %1481 = vmatpush1.bf16.msra.mxu0 0
      %1482 = vmatprep.subr.bf16.mxu0 0
      %1483 = vmatpush1.bf16.msra.mxu0 0
      %1484 = vmatprep.subr.bf16.mxu0 0
      %1485 = vmatpush1.bf16.msra.mxu0 0
      %1486 = vmatprep.subr.bf16.mxu0 0
      %1487 = vmatpush1.bf16.msra.mxu0 0
      %1488 = vmatprep.subr.bf16.mxu0 0
      %1489 = vmatpush1.bf16.msra.mxu0 0
      %1490 = vmatprep.subr.bf16.mxu0 0
      %1491 = vmatpush1.bf16.msra.mxu0 0
      %1492 = vmatprep.mubr.bf16.mxu0 0
      %1493 = vmatmul.mubr.bf16.gmra.mrb[0].mxu0 %v442
      %v1494 = vpop.f32.mrb[0].mxu0
      %v1495 = vadd.f32 0.0, %v1494
      %v1496 = vpop.f32.mrb[0].mxu0
      %v1497 = vpop.f32.mrb[0].mxu0
      %v1498 = vadd.f32 0.0, %v1497
      %v1499 = vpop.f32.mrb[0].mxu0
      %1500 = vmatprep.mubr.bf16.mxu0 0
      %1501 = vmatmul.mubr.bf16.gmra.mrb[0].mxu0 %v445
      %v1502 = vpop.f32.mrb[0].mxu0
      %v1503 = vadd.f32 0.0, %v1502
      %v1504 = vpop.f32.mrb[0].mxu0
      %v1505 = vpop.f32.mrb[0].mxu0
      %v1506 = vadd.f32 0.0, %v1505
      %v1507 = vpop.f32.mrb[0].mxu0
      %1508 = vmatprep.mubr.bf16.mxu0 0
      %1509 = vmatmul.mubr.bf16.gmra.mrb[0].mxu0 %v448
      %v1510 = vpop.f32.mrb[0].mxu0
      %v1511 = vadd.f32 0.0, %v1510
      %v1512 = vpop.f32.mrb[0].mxu0
      %v1513 = vpop.f32.mrb[0].mxu0
      %v1514 = vadd.f32 0.0, %v1513
      %v1515 = vpop.f32.mrb[0].mxu0
      %1516 = vmatprep.mubr.bf16.mxu0 0
      %1517 = vmatmul.mubr.bf16.gmra.mrb[0].mxu0 %v451
      %v1518 = vpop.f32.mrb[0].mxu0
      %v1519 = vadd.f32 0.0, %v1518
      %v1520 = vpop.f32.mrb[0].mxu0
      %v1521 = vpop.f32.mrb[0].mxu0
      %v1522 = vadd.f32 0.0, %v1521
      %v1523 = vpop.f32.mrb[0].mxu0
      %1524 = vmatprep.mubr.bf16.mxu0 0
      %1525 = vmatmul.mubr.bf16.gmra.mrb[0].mxu0 %v454
      %v1526 = vpop.f32.mrb[0].mxu0
      %v1527 = vadd.f32 0.0, %v1526
      %v1528 = vpop.f32.mrb[0].mxu0
      %v1529 = vpop.f32.mrb[0].mxu0
      %v1530 = vadd.f32 0.0, %v1529
      %v1531 = vpop.f32.mrb[0].mxu0
      %1532 = vmatprep.mubr.bf16.mxu0 0
      %1533 = vmatmul.mubr.bf16.gmra.mrb[0].mxu0 %v457
      %v1534 = vpop.f32.mrb[0].mxu0
      %v1535 = vadd.f32 0.0, %v1534
      %v1536 = vpop.f32.mrb[0].mxu0
      %v1537 = vpop.f32.mrb[0].mxu0
      %v1538 = vadd.f32 0.0, %v1537
      %v1539 = vpop.f32.mrb[0].mxu0
      %1540 = vmatprep.mubr.bf16.mxu0 0
      %1541 = vmatmul.mubr.bf16.gmra.mrb[0].mxu0 %v460
      %v1542 = vpop.f32.mrb[0].mxu0
      %v1543 = vadd.f32 0.0, %v1542
      %v1544 = vpop.f32.mrb[0].mxu0
      %v1545 = vpop.f32.mrb[0].mxu0
      %v1546 = vadd.f32 0.0, %v1545
      %v1547 = vpop.f32.mrb[0].mxu0
      %1548 = vmatprep.mubr.bf16.mxu0 0
      %1549 = vmatmul.mubr.bf16.gmra.mrb[0].mxu0 %v463
      %v1550 = vpop.f32.mrb[0].mxu0
      %v1551 = vadd.f32 0.0, %v1550
      %v1552 = vpop.f32.mrb[0].mxu0
      %v1553 = vpop.f32.mrb[0].mxu0
      %v1554 = vadd.f32 0.0, %v1553
      %v1555 = vpop.f32.mrb[0].mxu0
      %1556 = vmatprep.mubr.bf16.mxu0 0
      %1557 = vmatmul.mubr.bf16.gmra.mrb[0].mxu0 %v466
      %v1558 = vpop.f32.mrb[0].mxu0
      %v1559 = vadd.f32 0.0, %v1558
      %v1560 = vpop.f32.mrb[0].mxu0
      %v1561 = vpop.f32.mrb[0].mxu0
      %v1562 = vadd.f32 0.0, %v1561
      %v1563 = vpop.f32.mrb[0].mxu0
      %1564 = vmatprep.mubr.bf16.mxu0 0
      %1565 = vmatmul.mubr.bf16.gmra.mrb[0].mxu0 %v469
      %v1566 = vpop.f32.mrb[0].mxu0
      %v1567 = vadd.f32 0.0, %v1566
      %v1568 = vpop.f32.mrb[0].mxu0
      %v1569 = vpop.f32.mrb[0].mxu0
      %v1570 = vadd.f32 0.0, %v1569
      %v1571 = vpop.f32.mrb[0].mxu0
      %1572 = vmatprep.mubr.bf16.mxu0 0
      %1573 = vmatmul.mubr.bf16.gmra.mrb[0].mxu0 %v472
      %v1574 = vpop.f32.mrb[0].mxu0
      %v1575 = vadd.f32 0.0, %v1574
      %v1576 = vpop.f32.mrb[0].mxu0
      %v1577 = vpop.f32.mrb[0].mxu0
      %v1578 = vadd.f32 0.0, %v1577
      %v1579 = vpop.f32.mrb[0].mxu0
      %1580 = vmatprep.mubr.bf16.mxu0 0
      %1581 = vmatmul.mubr.bf16.gmra.mrb[0].mxu0 %v475
      %v1582 = vpop.f32.mrb[0].mxu0
      %v1583 = vadd.f32 0.0, %v1582
      %v1584 = vpop.f32.mrb[0].mxu0
      %v1585 = vpop.f32.mrb[0].mxu0
      %v1586 = vadd.f32 0.0, %v1585
      %v1587 = vpop.f32.mrb[0].mxu0
      %1588 = vmatprep.mubr.bf16.mxu0 0
      %1589 = vmatmul.mubr.bf16.gmra.mrb[0].mxu0 %v478
      %v1590 = vpop.f32.mrb[0].mxu0
      %v1591 = vadd.f32 0.0, %v1590
      %v1592 = vpop.f32.mrb[0].mxu0
      %v1593 = vpop.f32.mrb[0].mxu0
      %v1594 = vadd.f32 0.0, %v1593
      %v1595 = vpop.f32.mrb[0].mxu0
      %1596 = vmatprep.mubr.bf16.mxu0 0
      %1597 = vmatmul.mubr.bf16.gmra.mrb[0].mxu0 %v481
      %v1598 = vpop.f32.mrb[0].mxu0
      %v1599 = vadd.f32 0.0, %v1598
      %v1600 = vpop.f32.mrb[0].mxu0
      %v1601 = vpop.f32.mrb[0].mxu0
      %v1602 = vadd.f32 0.0, %v1601
      %v1603 = vpop.f32.mrb[0].mxu0
      %1604 = vmatprep.mubr.bf16.mxu0 0
      %1605 = vmatmul.mubr.bf16.gmra.mrb[0].mxu0 %v484
      %v1606 = vpop.f32.mrb[0].mxu0
      %v1607 = vadd.f32 0.0, %v1606
      %v1608 = vpop.f32.mrb[0].mxu0
      %v1609 = vpop.f32.mrb[0].mxu0
      %v1610 = vadd.f32 0.0, %v1609
      %v1611 = vpop.f32.mrb[0].mxu0
      %1612 = vmatprep.mubr.bf16.mxu0 0
      %1613 = vmatmul.mubr.bf16.gmra.mrb[0].mxu0 %v1455
      %v1614 = vpop.f32.mrb[0].mxu0
      %v1615 = vadd.f32 0.0, %v1614
      %v1616 = vpop.f32.mrb[0].mxu0
      %v1617 = vpop.f32.mrb[0].mxu0
      %v1618 = vadd.f32 0.0, %v1617
      %v1619 = vpop.f32.mrb[0].mxu0
      %1620 = vdwg.mxu0
      %v1621 = vadd.f32 %v1410, %v1495
      %v1622 = vadd.f32 %v1411, %v1498
      %v1623 = vadd.f32 %v1412, %v1503
      %v1624 = vadd.f32 %v1413, %v1506
      %v1625 = vadd.f32 %v1414, %v1511
      %v1626 = vadd.f32 %v1415, %v1514
      %v1627 = vadd.f32 %v1416, %v1519
      %v1628 = vadd.f32 %v1417, %v1522
      %v1629 = vadd.f32 %v1418, %v1527
      %v1630 = vadd.f32 %v1419, %v1530
      %v1631 = vadd.f32 %v1420, %v1535
      %v1632 = vadd.f32 %v1421, %v1538
      %v1633 = vadd.f32 %v1422, %v1543
      %v1634 = vadd.f32 %v1423, %v1546
      %v1635 = vadd.f32 %v1424, %v1551
      %v1636 = vadd.f32 %v1425, %v1554
      %v1637 = vadd.f32 %v1426, %v1559
      %v1638 = vadd.f32 %v1427, %v1562
      %v1639 = vadd.f32 %v1428, %v1567
      %v1640 = vadd.f32 %v1429, %v1570
      %v1641 = vadd.f32 %v1430, %v1575
      %v1642 = vadd.f32 %v1431, %v1578
      %v1643 = vadd.f32 %v1432, %v1583
      %v1644 = vadd.f32 %v1433, %v1586
      %v1645 = vadd.f32 %v1434, %v1591
      %v1646 = vadd.f32 %v1435, %v1594
      %v1647 = vadd.f32 %v1436, %v1599
      %v1648 = vadd.f32 %v1437, %v1602
      %v1649 = vadd.f32 %v1438, %v1607
      %v1650 = vadd.f32 %v1439, %v1610
      %v1651 = vadd.f32 %v1440, %v1615
      %v1652 = vadd.f32 %v1441, %v1618
      %v1653 = vrot.slane %v232, 2
      %v1654 = vrot.slane %v233, 2
      %v1655 = vsel %vm863, %v1653, %v1654
      %v1656 = vrot.slane %v234, 2
      %v1657 = vsel %vm863, %v1654, %v1656
      %v1660 = vpack.c.bf16 %v1657, %v1655
      %v1661 = vld [vmem:[%s1 + $0x8] sm:$0xc]
      %v1663 = vunpack.c.l.b16 %v1661
      %v1664 = vpack.c.b16 %v1663, %v1663
      %v1665 = vrot.slane %v1664, 2
      %v1667 = vsel %vm437, %v1660, 0
      %v1670 = vsel %vm486, %v1665, 0
      %1672 = vmatprep.subr.bf16.mxu0 0
      %1673 = vmatpush1.bf16.msra.mxu0 %v1670
      %1674 = vmatprep.subr.bf16.mxu0 0
      %1675 = vmatpush1.bf16.msra.mxu0 0
      %1676 = vmatprep.subr.bf16.mxu0 0
      %1677 = vmatpush1.bf16.msra.mxu0 0
      %1678 = vmatprep.subr.bf16.mxu0 0
      %1679 = vmatpush1.bf16.msra.mxu0 0
      %1680 = vmatprep.subr.bf16.mxu0 0
      %1681 = vmatpush1.bf16.msra.mxu0 0
      %1682 = vmatprep.subr.bf16.mxu0 0
      %1683 = vmatpush1.bf16.msra.mxu0 0
      %1684 = vmatprep.subr.bf16.mxu0 0
      %1685 = vmatpush1.bf16.msra.mxu0 0
      %1686 = vmatprep.subr.bf16.mxu0 0
      %1687 = vmatpush1.bf16.msra.mxu0 0
      %1688 = vmatprep.subr.bf16.mxu0 0
      %1689 = vmatpush1.bf16.msra.mxu0 0
      %1690 = vmatprep.subr.bf16.mxu0 0
      %1691 = vmatpush1.bf16.msra.mxu0 0
      %1692 = vmatprep.subr.bf16.mxu0 0
      %1693 = vmatpush1.bf16.msra.mxu0 0
      %1694 = vmatprep.subr.bf16.mxu0 0
      %1695 = vmatpush1.bf16.msra.mxu0 0
      %1696 = vmatprep.subr.bf16.mxu0 0
      %1697 = vmatpush1.bf16.msra.mxu0 0
      %1698 = vmatprep.subr.bf16.mxu0 0
      %1699 = vmatpush1.bf16.msra.mxu0 0
      %1700 = vmatprep.subr.bf16.mxu0 0
      %1701 = vmatpush1.bf16.msra.mxu0 0
      %1702 = vmatprep.subr.bf16.mxu0 0
      %1703 = vmatpush1.bf16.msra.mxu0 0
      %1704 = vmatprep.mubr.bf16.mxu0 0
      %1705 = vmatmul.mubr.bf16.gmra.mrb[0].mxu0 %v997
      %v1706 = vpop.f32.mrb[0].mxu0
      %v1707 = vadd.f32 0.0, %v1706
      %v1708 = vpop.f32.mrb[0].mxu0
      %v1709 = vpop.f32.mrb[0].mxu0
      %v1710 = vadd.f32 0.0, %v1709
      %v1711 = vpop.f32.mrb[0].mxu0
      %1712 = vmatprep.mubr.bf16.mxu0 0
      %1713 = vmatmul.mubr.bf16.gmra.mrb[0].mxu0 %v1000
      %v1714 = vpop.f32.mrb[0].mxu0
      %v1715 = vadd.f32 0.0, %v1714
      %v1716 = vpop.f32.mrb[0].mxu0
      %v1717 = vpop.f32.mrb[0].mxu0
      %v1718 = vadd.f32 0.0, %v1717
      %v1719 = vpop.f32.mrb[0].mxu0
      %1720 = vmatprep.mubr.bf16.mxu0 0
      %1721 = vmatmul.mubr.bf16.gmra.mrb[0].mxu0 %v1003
      %v1722 = vpop.f32.mrb[0].mxu0
      %v1723 = vadd.f32 0.0, %v1722
      %v1724 = vpop.f32.mrb[0].mxu0
      %v1725 = vpop.f32.mrb[0].mxu0
      %v1726 = vadd.f32 0.0, %v1725
      %v1727 = vpop.f32.mrb[0].mxu0
      %1728 = vmatprep.mubr.bf16.mxu0 0
      %1729 = vmatmul.mubr.bf16.gmra.mrb[0].mxu0 %v1006
      %v1730 = vpop.f32.mrb[0].mxu0
      %v1731 = vadd.f32 0.0, %v1730
      %v1732 = vpop.f32.mrb[0].mxu0
      %v1733 = vpop.f32.mrb[0].mxu0
      %v1734 = vadd.f32 0.0, %v1733
      %v1735 = vpop.f32.mrb[0].mxu0
      %1736 = vmatprep.mubr.bf16.mxu0 0
      %1737 = vmatmul.mubr.bf16.gmra.mrb[0].mxu0 %v1009
      %v1738 = vpop.f32.mrb[0].mxu0
      %v1739 = vadd.f32 0.0, %v1738
      %v1740 = vpop.f32.mrb[0].mxu0
      %v1741 = vpop.f32.mrb[0].mxu0
      %v1742 = vadd.f32 0.0, %v1741
      %v1743 = vpop.f32.mrb[0].mxu0
      %1744 = vmatprep.mubr.bf16.mxu0 0
      %1745 = vmatmul.mubr.bf16.gmra.mrb[0].mxu0 %v1012
      %v1746 = vpop.f32.mrb[0].mxu0
      %v1747 = vadd.f32 0.0, %v1746
      %v1748 = vpop.f32.mrb[0].mxu0
      %v1749 = vpop.f32.mrb[0].mxu0
      %v1750 = vadd.f32 0.0, %v1749
      %v1751 = vpop.f32.mrb[0].mxu0
      %1752 = vmatprep.mubr.bf16.mxu0 0
      %1753 = vmatmul.mubr.bf16.gmra.mrb[0].mxu0 %v1015
      %v1754 = vpop.f32.mrb[0].mxu0
      %v1755 = vadd.f32 0.0, %v1754
      %v1756 = vpop.f32.mrb[0].mxu0
      %v1757 = vpop.f32.mrb[0].mxu0
      %v1758 = vadd.f32 0.0, %v1757
      %v1759 = vpop.f32.mrb[0].mxu0
      %1760 = vmatprep.mubr.bf16.mxu0 0
      %1761 = vmatmul.mubr.bf16.gmra.mrb[0].mxu0 %v1018
      %v1762 = vpop.f32.mrb[0].mxu0
      %v1763 = vadd.f32 0.0, %v1762
      %v1764 = vpop.f32.mrb[0].mxu0
      %v1765 = vpop.f32.mrb[0].mxu0
      %v1766 = vadd.f32 0.0, %v1765
      %v1767 = vpop.f32.mrb[0].mxu0
      %1768 = vmatprep.mubr.bf16.mxu0 0
      %1769 = vmatmul.mubr.bf16.gmra.mrb[0].mxu0 %v1021
      %v1770 = vpop.f32.mrb[0].mxu0
      %v1771 = vadd.f32 0.0, %v1770
      %v1772 = vpop.f32.mrb[0].mxu0
      %v1773 = vpop.f32.mrb[0].mxu0
      %v1774 = vadd.f32 0.0, %v1773
      %v1775 = vpop.f32.mrb[0].mxu0
      %1776 = vmatprep.mubr.bf16.mxu0 0
      %1777 = vmatmul.mubr.bf16.gmra.mrb[0].mxu0 %v1024
      %v1778 = vpop.f32.mrb[0].mxu0
      %v1779 = vadd.f32 0.0, %v1778
      %v1780 = vpop.f32.mrb[0].mxu0
      %v1781 = vpop.f32.mrb[0].mxu0
      %v1782 = vadd.f32 0.0, %v1781
      %v1783 = vpop.f32.mrb[0].mxu0
      %1784 = vmatprep.mubr.bf16.mxu0 0
      %1785 = vmatmul.mubr.bf16.gmra.mrb[0].mxu0 %v1027
      %v1786 = vpop.f32.mrb[0].mxu0
      %v1787 = vadd.f32 0.0, %v1786
      %v1788 = vpop.f32.mrb[0].mxu0
      %v1789 = vpop.f32.mrb[0].mxu0
      %v1790 = vadd.f32 0.0, %v1789
      %v1791 = vpop.f32.mrb[0].mxu0
      %1792 = vmatprep.mubr.bf16.mxu0 0
      %1793 = vmatmul.mubr.bf16.gmra.mrb[0].mxu0 %v1030
      %v1794 = vpop.f32.mrb[0].mxu0
      %v1795 = vadd.f32 0.0, %v1794
      %v1796 = vpop.f32.mrb[0].mxu0
      %v1797 = vpop.f32.mrb[0].mxu0
      %v1798 = vadd.f32 0.0, %v1797
      %v1799 = vpop.f32.mrb[0].mxu0
      %1800 = vmatprep.mubr.bf16.mxu0 0
      %1801 = vmatmul.mubr.bf16.gmra.mrb[0].mxu0 %v1033
      %v1802 = vpop.f32.mrb[0].mxu0
      %v1803 = vadd.f32 0.0, %v1802
      %v1804 = vpop.f32.mrb[0].mxu0
      %v1805 = vpop.f32.mrb[0].mxu0
      %v1806 = vadd.f32 0.0, %v1805
      %v1807 = vpop.f32.mrb[0].mxu0
      %1808 = vmatprep.mubr.bf16.mxu0 0
      %1809 = vmatmul.mubr.bf16.gmra.mrb[0].mxu0 %v1036
      %v1810 = vpop.f32.mrb[0].mxu0
      %v1811 = vadd.f32 0.0, %v1810
      %v1812 = vpop.f32.mrb[0].mxu0
      %v1813 = vpop.f32.mrb[0].mxu0
      %v1814 = vadd.f32 0.0, %v1813
      %v1815 = vpop.f32.mrb[0].mxu0
      %1816 = vmatprep.mubr.bf16.mxu0 0
      %1817 = vmatmul.mubr.bf16.gmra.mrb[0].mxu0 %v1039
      %v1818 = vpop.f32.mrb[0].mxu0
      %v1819 = vadd.f32 0.0, %v1818
      %v1820 = vpop.f32.mrb[0].mxu0
      %v1821 = vpop.f32.mrb[0].mxu0
      %v1822 = vadd.f32 0.0, %v1821
      %v1823 = vpop.f32.mrb[0].mxu0
      %1824 = vmatprep.mubr.bf16.mxu0 0
      %1825 = vmatmul.mubr.bf16.gmra.mrb[0].mxu0 %v1667
      %v1826 = vpop.f32.mrb[0].mxu0
      %v1827 = vadd.f32 0.0, %v1826
      %v1828 = vpop.f32.mrb[0].mxu0
      %v1829 = vpop.f32.mrb[0].mxu0
      %v1830 = vadd.f32 0.0, %v1829
      %v1831 = vpop.f32.mrb[0].mxu0
      %1832 = vdwg.mxu0
      %v1833 = vadd.f32 %v1621, %v1707
      %v1834 = vadd.f32 %v1622, %v1710
      %v1835 = vadd.f32 %v1623, %v1715
      %v1836 = vadd.f32 %v1624, %v1718
      %v1837 = vadd.f32 %v1625, %v1723
      %v1838 = vadd.f32 %v1626, %v1726
      %v1839 = vadd.f32 %v1627, %v1731
      %v1840 = vadd.f32 %v1628, %v1734
      %v1841 = vadd.f32 %v1629, %v1739
      %v1842 = vadd.f32 %v1630, %v1742
      %v1843 = vadd.f32 %v1631, %v1747
      %v1844 = vadd.f32 %v1632, %v1750
      %v1845 = vadd.f32 %v1633, %v1755
      %v1846 = vadd.f32 %v1634, %v1758
      %v1847 = vadd.f32 %v1635, %v1763
      %v1848 = vadd.f32 %v1636, %v1766
      %v1849 = vadd.f32 %v1637, %v1771
      %v1850 = vadd.f32 %v1638, %v1774
      %v1851 = vadd.f32 %v1639, %v1779
      %v1852 = vadd.f32 %v1640, %v1782
      %v1853 = vadd.f32 %v1641, %v1787
      %v1854 = vadd.f32 %v1642, %v1790
      %v1855 = vadd.f32 %v1643, %v1795
      %v1856 = vadd.f32 %v1644, %v1798
      %v1857 = vadd.f32 %v1645, %v1803
      %v1858 = vadd.f32 %v1646, %v1806
      %v1859 = vadd.f32 %v1647, %v1811
      %v1860 = vadd.f32 %v1648, %v1814
      %v1861 = vadd.f32 %v1649, %v1819
      %v1862 = vadd.f32 %v1650, %v1822
      %v1863 = vadd.f32 %v1651, %v1827
      %v1864 = vadd.f32 %v1652, %v1830
      %v1865 = vpack.c.bf16 %v236, %v235
      %v1866 = vld [vmem:[%s1 + $0xc] sm:$0x3]
      %v1868 = vsel %vm437, %v1865, 0
      %v1871 = vsel %vm486, %v1866, 0
      %1873 = vmatprep.subr.bf16.mxu0 0
      %1874 = vmatpush1.bf16.msra.mxu0 %v1871
      %1875 = vmatprep.subr.bf16.mxu0 0
      %1876 = vmatpush1.bf16.msra.mxu0 0
      %1877 = vmatprep.subr.bf16.mxu0 0
      %1878 = vmatpush1.bf16.msra.mxu0 0
      %1879 = vmatprep.subr.bf16.mxu0 0
      %1880 = vmatpush1.bf16.msra.mxu0 0
      %1881 = vmatprep.subr.bf16.mxu0 0
      %1882 = vmatpush1.bf16.msra.mxu0 0
      %1883 = vmatprep.subr.bf16.mxu0 0
      %1884 = vmatpush1.bf16.msra.mxu0 0
      %1885 = vmatprep.subr.bf16.mxu0 0
      %1886 = vmatpush1.bf16.msra.mxu0 0
      %1887 = vmatprep.subr.bf16.mxu0 0
      %1888 = vmatpush1.bf16.msra.mxu0 0
      %1889 = vmatprep.subr.bf16.mxu0 0
      %1890 = vmatpush1.bf16.msra.mxu0 0
      %1891 = vmatprep.subr.bf16.mxu0 0
      %1892 = vmatpush1.bf16.msra.mxu0 0
      %1893 = vmatprep.subr.bf16.mxu0 0
      %1894 = vmatpush1.bf16.msra.mxu0 0
      %1895 = vmatprep.subr.bf16.mxu0 0
      %1896 = vmatpush1.bf16.msra.mxu0 0
      %1897 = vmatprep.subr.bf16.mxu0 0
      %1898 = vmatpush1.bf16.msra.mxu0 0
      %1899 = vmatprep.subr.bf16.mxu0 0
      %1900 = vmatpush1.bf16.msra.mxu0 0
      %1901 = vmatprep.subr.bf16.mxu0 0
      %1902 = vmatpush1.bf16.msra.mxu0 0
      %1903 = vmatprep.subr.bf16.mxu0 0
      %1904 = vmatpush1.bf16.msra.mxu0 0
      %1905 = vmatprep.mubr.bf16.mxu0 0
      %1906 = vmatmul.mubr.bf16.gmra.mrb[0].mxu0 %v658
      %v1907 = vpop.f32.mrb[0].mxu0
      %v1908 = vadd.f32 0.0, %v1907
      %v1909 = vpop.f32.mrb[0].mxu0
      %v1910 = vpop.f32.mrb[0].mxu0
      %v1911 = vadd.f32 0.0, %v1910
      %v1912 = vpop.f32.mrb[0].mxu0
      %1913 = vmatprep.mubr.bf16.mxu0 0
      %1914 = vmatmul.mubr.bf16.gmra.mrb[0].mxu0 %v661
      %v1915 = vpop.f32.mrb[0].mxu0
      %v1916 = vadd.f32 0.0, %v1915
      %v1917 = vpop.f32.mrb[0].mxu0
      %v1918 = vpop.f32.mrb[0].mxu0
      %v1919 = vadd.f32 0.0, %v1918
      %v1920 = vpop.f32.mrb[0].mxu0
      %1921 = vmatprep.mubr.bf16.mxu0 0
      %1922 = vmatmul.mubr.bf16.gmra.mrb[0].mxu0 %v664
      %v1923 = vpop.f32.mrb[0].mxu0
      %v1924 = vadd.f32 0.0, %v1923
      %v1925 = vpop.f32.mrb[0].mxu0
      %v1926 = vpop.f32.mrb[0].mxu0
      %v1927 = vadd.f32 0.0, %v1926
      %v1928 = vpop.f32.mrb[0].mxu0
      %1929 = vmatprep.mubr.bf16.mxu0 0
      %1930 = vmatmul.mubr.bf16.gmra.mrb[0].mxu0 %v667
      %v1931 = vpop.f32.mrb[0].mxu0
      %v1932 = vadd.f32 0.0, %v1931
      %v1933 = vpop.f32.mrb[0].mxu0
      %v1934 = vpop.f32.mrb[0].mxu0
      %v1935 = vadd.f32 0.0, %v1934
      %v1936 = vpop.f32.mrb[0].mxu0
      %1937 = vmatprep.mubr.bf16.mxu0 0
      %1938 = vmatmul.mubr.bf16.gmra.mrb[0].mxu0 %v670
      %v1939 = vpop.f32.mrb[0].mxu0
      %v1940 = vadd.f32 0.0, %v1939
      %v1941 = vpop.f32.mrb[0].mxu0
      %v1942 = vpop.f32.mrb[0].mxu0
      %v1943 = vadd.f32 0.0, %v1942
      %v1944 = vpop.f32.mrb[0].mxu0
      %1945 = vmatprep.mubr.bf16.mxu0 0
      %1946 = vmatmul.mubr.bf16.gmra.mrb[0].mxu0 %v673
      %v1947 = vpop.f32.mrb[0].mxu0
      %v1948 = vadd.f32 0.0, %v1947
      %v1949 = vpop.f32.mrb[0].mxu0
      %v1950 = vpop.f32.mrb[0].mxu0
      %v1951 = vadd.f32 0.0, %v1950
      %v1952 = vpop.f32.mrb[0].mxu0
      %1953 = vmatprep.mubr.bf16.mxu0 0
      %1954 = vmatmul.mubr.bf16.gmra.mrb[0].mxu0 %v676
      %v1955 = vpop.f32.mrb[0].mxu0
      %v1956 = vadd.f32 0.0, %v1955
      %v1957 = vpop.f32.mrb[0].mxu0
      %v1958 = vpop.f32.mrb[0].mxu0
      %v1959 = vadd.f32 0.0, %v1958
      %v1960 = vpop.f32.mrb[0].mxu0
      %1961 = vmatprep.mubr.bf16.mxu0 0
      %1962 = vmatmul.mubr.bf16.gmra.mrb[0].mxu0 %v679
      %v1963 = vpop.f32.mrb[0].mxu0
      %v1964 = vadd.f32 0.0, %v1963
      %v1965 = vpop.f32.mrb[0].mxu0
      %v1966 = vpop.f32.mrb[0].mxu0
      %v1967 = vadd.f32 0.0, %v1966
      %v1968 = vpop.f32.mrb[0].mxu0
      %1969 = vmatprep.mubr.bf16.mxu0 0
      %1970 = vmatmul.mubr.bf16.gmra.mrb[0].mxu0 %v682
      %v1971 = vpop.f32.mrb[0].mxu0
      %v1972 = vadd.f32 0.0, %v1971
      %v1973 = vpop.f32.mrb[0].mxu0
      %v1974 = vpop.f32.mrb[0].mxu0
      %v1975 = vadd.f32 0.0, %v1974
      %v1976 = vpop.f32.mrb[0].mxu0
      %1977 = vmatprep.mubr.bf16.mxu0 0
      %1978 = vmatmul.mubr.bf16.gmra.mrb[0].mxu0 %v685
      %v1979 = vpop.f32.mrb[0].mxu0
      %v1980 = vadd.f32 0.0, %v1979
      %v1981 = vpop.f32.mrb[0].mxu0
      %v1982 = vpop.f32.mrb[0].mxu0
      %v1983 = vadd.f32 0.0, %v1982
      %v1984 = vpop.f32.mrb[0].mxu0
      %1985 = vmatprep.mubr.bf16.mxu0 0
      %1986 = vmatmul.mubr.bf16.gmra.mrb[0].mxu0 %v688
      %v1987 = vpop.f32.mrb[0].mxu0
      %v1988 = vadd.f32 0.0, %v1987
      %v1989 = vpop.f32.mrb[0].mxu0
      %v1990 = vpop.f32.mrb[0].mxu0
      %v1991 = vadd.f32 0.0, %v1990
      %v1992 = vpop.f32.mrb[0].mxu0
      %1993 = vmatprep.mubr.bf16.mxu0 0
      %1994 = vmatmul.mubr.bf16.gmra.mrb[0].mxu0 %v691
      %v1995 = vpop.f32.mrb[0].mxu0
      %v1996 = vadd.f32 0.0, %v1995
      %v1997 = vpop.f32.mrb[0].mxu0
      %v1998 = vpop.f32.mrb[0].mxu0
      %v1999 = vadd.f32 0.0, %v1998
      %v2000 = vpop.f32.mrb[0].mxu0
      %2001 = vmatprep.mubr.bf16.mxu0 0
      %2002 = vmatmul.mubr.bf16.gmra.mrb[0].mxu0 %v694
      %v2003 = vpop.f32.mrb[0].mxu0
      %v2004 = vadd.f32 0.0, %v2003
      %v2005 = vpop.f32.mrb[0].mxu0
      %v2006 = vpop.f32.mrb[0].mxu0
      %v2007 = vadd.f32 0.0, %v2006
      %v2008 = vpop.f32.mrb[0].mxu0
      %2009 = vmatprep.mubr.bf16.mxu0 0
      %2010 = vmatmul.mubr.bf16.gmra.mrb[0].mxu0 %v697
      %v2011 = vpop.f32.mrb[0].mxu0
      %v2012 = vadd.f32 0.0, %v2011
      %v2013 = vpop.f32.mrb[0].mxu0
      %v2014 = vpop.f32.mrb[0].mxu0
      %v2015 = vadd.f32 0.0, %v2014
      %v2016 = vpop.f32.mrb[0].mxu0
      %2017 = vmatprep.mubr.bf16.mxu0 0
      %2018 = vmatmul.mubr.bf16.gmra.mrb[0].mxu0 %v1244
      %v2019 = vpop.f32.mrb[0].mxu0
      %v2020 = vadd.f32 0.0, %v2019
      %v2021 = vpop.f32.mrb[0].mxu0
      %v2022 = vpop.f32.mrb[0].mxu0
      %v2023 = vadd.f32 0.0, %v2022
      %v2024 = vpop.f32.mrb[0].mxu0
      %2025 = vmatprep.mubr.bf16.mxu0 0
      %2026 = vmatmul.mubr.bf16.gmra.mrb[0].mxu0 %v1868
      %v2027 = vpop.f32.mrb[0].mxu0
      %v2028 = vadd.f32 0.0, %v2027
      %v2029 = vpop.f32.mrb[0].mxu0
      %v2030 = vpop.f32.mrb[0].mxu0
      %v2031 = vadd.f32 0.0, %v2030
      %v2032 = vpop.f32.mrb[0].mxu0
      %2033 = vdwg.mxu0
      %v2034 = vadd.f32 %v1833, %v1908
      %v2035 = vadd.f32 %v1834, %v1911
      %v2036 = vadd.f32 %v1835, %v1916
      %v2037 = vadd.f32 %v1836, %v1919
      %v2038 = vadd.f32 %v1837, %v1924
      %v2039 = vadd.f32 %v1838, %v1927
      %v2040 = vadd.f32 %v1839, %v1932
      %v2041 = vadd.f32 %v1840, %v1935
      %v2042 = vadd.f32 %v1841, %v1940
      %v2043 = vadd.f32 %v1842, %v1943
      %v2044 = vadd.f32 %v1843, %v1948
      %v2045 = vadd.f32 %v1844, %v1951
      %v2046 = vadd.f32 %v1845, %v1956
      %v2047 = vadd.f32 %v1846, %v1959
      %v2048 = vadd.f32 %v1847, %v1964
      %v2049 = vadd.f32 %v1848, %v1967
      %v2050 = vadd.f32 %v1849, %v1972
      %v2051 = vadd.f32 %v1850, %v1975
      %v2052 = vadd.f32 %v1851, %v1980
      %v2053 = vadd.f32 %v1852, %v1983
      %v2054 = vadd.f32 %v1853, %v1988
      %v2055 = vadd.f32 %v1854, %v1991
      %v2056 = vadd.f32 %v1855, %v1996
      %v2057 = vadd.f32 %v1856, %v1999
      %v2058 = vadd.f32 %v1857, %v2004
      %v2059 = vadd.f32 %v1858, %v2007
      %v2060 = vadd.f32 %v1859, %v2012
      %v2061 = vadd.f32 %v1860, %v2015
      %v2062 = vadd.f32 %v1861, %v2020
      %v2063 = vadd.f32 %v1862, %v2023
      %v2064 = vadd.f32 %v1863, %v2028
      %v2065 = vadd.f32 %v1864, %v2031
      %v2069 = vrot.slane %v235, 1
      %v2070 = vrot.slane %v236, 1
      %v2071 = vsel %vm303, %v2069, %v2070
      %v2072 = vrot.slane %v237, 1
      %v2073 = vsel %vm303, %v2070, %v2072
      %v2076 = vpack.c.bf16 %v2073, %v2071
      %v2077 = vld [vmem:[%s1 + $0xc] sm:$0xc]
      %v2079 = vunpack.c.l.b16 %v2077
      %v2080 = vpack.c.b16 %v2079, %v2079
      %v2081 = vrot.slane %v2080, 2
      %v2083 = vsel %vm437, %v2076, 0
      %v2086 = vsel %vm486, %v2081, 0
      %2088 = vmatprep.subr.bf16.mxu0 0
      %2089 = vmatpush1.bf16.msra.mxu0 %v2086
      %2090 = vmatprep.subr.bf16.mxu0 0
      %2091 = vmatpush1.bf16.msra.mxu0 0
      %2092 = vmatprep.subr.bf16.mxu0 0
      %2093 = vmatpush1.bf16.msra.mxu0 0
      %2094 = vmatprep.subr.bf16.mxu0 0
      %2095 = vmatpush1.bf16.msra.mxu0 0
      %2096 = vmatprep.subr.bf16.mxu0 0
      %2097 = vmatpush1.bf16.msra.mxu0 0
      %2098 = vmatprep.subr.bf16.mxu0 0
      %2099 = vmatpush1.bf16.msra.mxu0 0
      %2100 = vmatprep.subr.bf16.mxu0 0
      %2101 = vmatpush1.bf16.msra.mxu0 0
      %2102 = vmatprep.subr.bf16.mxu0 0
      %2103 = vmatpush1.bf16.msra.mxu0 0
      %2104 = vmatprep.subr.bf16.mxu0 0
      %2105 = vmatpush1.bf16.msra.mxu0 0
      %2106 = vmatprep.subr.bf16.mxu0 0
      %2107 = vmatpush1.bf16.msra.mxu0 0
      %2108 = vmatprep.subr.bf16.mxu0 0
      %2109 = vmatpush1.bf16.msra.mxu0 0
      %2110 = vmatprep.subr.bf16.mxu0 0
      %2111 = vmatpush1.bf16.msra.mxu0 0
      %2112 = vmatprep.subr.bf16.mxu0 0
      %2113 = vmatpush1.bf16.msra.mxu0 0
      %2114 = vmatprep.subr.bf16.mxu0 0
      %2115 = vmatpush1.bf16.msra.mxu0 0
      %2116 = vmatprep.subr.bf16.mxu0 0
      %2117 = vmatpush1.bf16.msra.mxu0 0
      %2118 = vmatprep.subr.bf16.mxu0 0
      %2119 = vmatpush1.bf16.msra.mxu0 0
      %2120 = vmatprep.mubr.bf16.mxu0 0
      %2121 = vmatmul.mubr.bf16.gmra.mrb[0].mxu0 %v445
      %v2122 = vpop.f32.mrb[0].mxu0
      %v2123 = vadd.f32 0.0, %v2122
      %v2124 = vpop.f32.mrb[0].mxu0
      %v2125 = vpop.f32.mrb[0].mxu0
      %v2126 = vadd.f32 0.0, %v2125
      %v2127 = vpop.f32.mrb[0].mxu0
      %2128 = vmatprep.mubr.bf16.mxu0 0
      %2129 = vmatmul.mubr.bf16.gmra.mrb[0].mxu0 %v448
      %v2130 = vpop.f32.mrb[0].mxu0
      %v2131 = vadd.f32 0.0, %v2130
      %v2132 = vpop.f32.mrb[0].mxu0
      %v2133 = vpop.f32.mrb[0].mxu0
      %v2134 = vadd.f32 0.0, %v2133
      %v2135 = vpop.f32.mrb[0].mxu0
      %2136 = vmatprep.mubr.bf16.mxu0 0
      %2137 = vmatmul.mubr.bf16.gmra.mrb[0].mxu0 %v451
      %v2138 = vpop.f32.mrb[0].mxu0
      %v2139 = vadd.f32 0.0, %v2138
      %v2140 = vpop.f32.mrb[0].mxu0
      %v2141 = vpop.f32.mrb[0].mxu0
      %v2142 = vadd.f32 0.0, %v2141
      %v2143 = vpop.f32.mrb[0].mxu0
      %2144 = vmatprep.mubr.bf16.mxu0 0
      %2145 = vmatmul.mubr.bf16.gmra.mrb[0].mxu0 %v454
      %v2146 = vpop.f32.mrb[0].mxu0
      %v2147 = vadd.f32 0.0, %v2146
      %v2148 = vpop.f32.mrb[0].mxu0
      %v2149 = vpop.f32.mrb[0].mxu0
      %v2150 = vadd.f32 0.0, %v2149
      %v2151 = vpop.f32.mrb[0].mxu0
      %2152 = vmatprep.mubr.bf16.mxu0 0
      %2153 = vmatmul.mubr.bf16.gmra.mrb[0].mxu0 %v457
      %v2154 = vpop.f32.mrb[0].mxu0
      %v2155 = vadd.f32 0.0, %v2154
      %v2156 = vpop.f32.mrb[0].mxu0
      %v2157 = vpop.f32.mrb[0].mxu0
      %v2158 = vadd.f32 0.0, %v2157
      %v2159 = vpop.f32.mrb[0].mxu0
      %2160 = vmatprep.mubr.bf16.mxu0 0
      %2161 = vmatmul.mubr.bf16.gmra.mrb[0].mxu0 %v460
      %v2162 = vpop.f32.mrb[0].mxu0
      %v2163 = vadd.f32 0.0, %v2162
      %v2164 = vpop.f32.mrb[0].mxu0
      %v2165 = vpop.f32.mrb[0].mxu0
      %v2166 = vadd.f32 0.0, %v2165
      %v2167 = vpop.f32.mrb[0].mxu0
      %2168 = vmatprep.mubr.bf16.mxu0 0
      %2169 = vmatmul.mubr.bf16.gmra.mrb[0].mxu0 %v463
      %v2170 = vpop.f32.mrb[0].mxu0
      %v2171 = vadd.f32 0.0, %v2170
      %v2172 = vpop.f32.mrb[0].mxu0
      %v2173 = vpop.f32.mrb[0].mxu0
      %v2174 = vadd.f32 0.0, %v2173
      %v2175 = vpop.f32.mrb[0].mxu0
      %2176 = vmatprep.mubr.bf16.mxu0 0
      %2177 = vmatmul.mubr.bf16.gmra.mrb[0].mxu0 %v466
      %v2178 = vpop.f32.mrb[0].mxu0
      %v2179 = vadd.f32 0.0, %v2178
      %v2180 = vpop.f32.mrb[0].mxu0
      %v2181 = vpop.f32.mrb[0].mxu0
      %v2182 = vadd.f32 0.0, %v2181
      %v2183 = vpop.f32.mrb[0].mxu0
      %2184 = vmatprep.mubr.bf16.mxu0 0
      %2185 = vmatmul.mubr.bf16.gmra.mrb[0].mxu0 %v469
      %v2186 = vpop.f32.mrb[0].mxu0
      %v2187 = vadd.f32 0.0, %v2186
      %v2188 = vpop.f32.mrb[0].mxu0
      %v2189 = vpop.f32.mrb[0].mxu0
      %v2190 = vadd.f32 0.0, %v2189
      %v2191 = vpop.f32.mrb[0].mxu0
      %2192 = vmatprep.mubr.bf16.mxu0 0
      %2193 = vmatmul.mubr.bf16.gmra.mrb[0].mxu0 %v472
      %v2194 = vpop.f32.mrb[0].mxu0
      %v2195 = vadd.f32 0.0, %v2194
      %v2196 = vpop.f32.mrb[0].mxu0
      %v2197 = vpop.f32.mrb[0].mxu0
      %v2198 = vadd.f32 0.0, %v2197
      %v2199 = vpop.f32.mrb[0].mxu0
      %2200 = vmatprep.mubr.bf16.mxu0 0
      %2201 = vmatmul.mubr.bf16.gmra.mrb[0].mxu0 %v475
      %v2202 = vpop.f32.mrb[0].mxu0
      %v2203 = vadd.f32 0.0, %v2202
      %v2204 = vpop.f32.mrb[0].mxu0
      %v2205 = vpop.f32.mrb[0].mxu0
      %v2206 = vadd.f32 0.0, %v2205
      %v2207 = vpop.f32.mrb[0].mxu0
      %2208 = vmatprep.mubr.bf16.mxu0 0
      %2209 = vmatmul.mubr.bf16.gmra.mrb[0].mxu0 %v478
      %v2210 = vpop.f32.mrb[0].mxu0
      %v2211 = vadd.f32 0.0, %v2210
      %v2212 = vpop.f32.mrb[0].mxu0
      %v2213 = vpop.f32.mrb[0].mxu0
      %v2214 = vadd.f32 0.0, %v2213
      %v2215 = vpop.f32.mrb[0].mxu0
      %2216 = vmatprep.mubr.bf16.mxu0 0
      %2217 = vmatmul.mubr.bf16.gmra.mrb[0].mxu0 %v481
      %v2218 = vpop.f32.mrb[0].mxu0
      %v2219 = vadd.f32 0.0, %v2218
      %v2220 = vpop.f32.mrb[0].mxu0
      %v2221 = vpop.f32.mrb[0].mxu0
      %v2222 = vadd.f32 0.0, %v2221
      %v2223 = vpop.f32.mrb[0].mxu0
      %2224 = vmatprep.mubr.bf16.mxu0 0
      %2225 = vmatmul.mubr.bf16.gmra.mrb[0].mxu0 %v484
      %v2226 = vpop.f32.mrb[0].mxu0
      %v2227 = vadd.f32 0.0, %v2226
      %v2228 = vpop.f32.mrb[0].mxu0
      %v2229 = vpop.f32.mrb[0].mxu0
      %v2230 = vadd.f32 0.0, %v2229
      %v2231 = vpop.f32.mrb[0].mxu0
      %2232 = vmatprep.mubr.bf16.mxu0 0
      %2233 = vmatmul.mubr.bf16.gmra.mrb[0].mxu0 %v1455
      %v2234 = vpop.f32.mrb[0].mxu0
      %v2235 = vadd.f32 0.0, %v2234
      %v2236 = vpop.f32.mrb[0].mxu0
      %v2237 = vpop.f32.mrb[0].mxu0
      %v2238 = vadd.f32 0.0, %v2237
      %v2239 = vpop.f32.mrb[0].mxu0
      %2240 = vmatprep.mubr.bf16.mxu0 0
      %2241 = vmatmul.mubr.bf16.gmra.mrb[0].mxu0 %v2083
      %v2242 = vpop.f32.mrb[0].mxu0
      %v2243 = vadd.f32 0.0, %v2242
      %v2244 = vpop.f32.mrb[0].mxu0
      %v2245 = vpop.f32.mrb[0].mxu0
      %v2246 = vadd.f32 0.0, %v2245
      %v2247 = vpop.f32.mrb[0].mxu0
      %2248 = vdwg.mxu0
      %v2249 = vadd.f32 %v2034, %v2123
      %v2250 = vadd.f32 %v2035, %v2126
      %v2251 = vadd.f32 %v2036, %v2131
      %v2252 = vadd.f32 %v2037, %v2134
      %v2253 = vadd.f32 %v2038, %v2139
      %v2254 = vadd.f32 %v2039, %v2142
      %v2255 = vadd.f32 %v2040, %v2147
      %v2256 = vadd.f32 %v2041, %v2150
      %v2257 = vadd.f32 %v2042, %v2155
      %v2258 = vadd.f32 %v2043, %v2158
      %v2259 = vadd.f32 %v2044, %v2163
      %v2260 = vadd.f32 %v2045, %v2166
      %v2261 = vadd.f32 %v2046, %v2171
      %v2262 = vadd.f32 %v2047, %v2174
      %v2263 = vadd.f32 %v2048, %v2179
      %v2264 = vadd.f32 %v2049, %v2182
      %v2265 = vadd.f32 %v2050, %v2187
      %v2266 = vadd.f32 %v2051, %v2190
      %v2267 = vadd.f32 %v2052, %v2195
      %v2268 = vadd.f32 %v2053, %v2198
      %v2269 = vadd.f32 %v2054, %v2203
      %v2270 = vadd.f32 %v2055, %v2206
      %v2271 = vadd.f32 %v2056, %v2211
      %v2272 = vadd.f32 %v2057, %v2214
      %v2273 = vadd.f32 %v2058, %v2219
      %v2274 = vadd.f32 %v2059, %v2222
      %v2275 = vadd.f32 %v2060, %v2227
      %v2276 = vadd.f32 %v2061, %v2230
      %v2277 = vadd.f32 %v2062, %v2235
      %v2278 = vadd.f32 %v2063, %v2238
      %v2279 = vadd.f32 %v2064, %v2243
      %v2280 = vadd.f32 %v2065, %v2246
      %v2281 = vrot.slane %v235, 2
      %v2282 = vrot.slane %v236, 2
      %v2283 = vsel %vm863, %v2281, %v2282
      %v2284 = vrot.slane %v237, 2
      %v2285 = vsel %vm863, %v2282, %v2284
      %v2288 = vpack.c.bf16 %v2285, %v2283
      %v2289 = vld [vmem:[%s1 + $0x10] sm:$0x3]
      %v2291 = vsel %vm437, %v2288, 0
      %v2294 = vsel %vm486, %v2289, 0
      %2296 = vmatprep.subr.bf16.mxu0 0
      %2297 = vmatpush1.bf16.msra.mxu0 %v2294
      %2298 = vmatprep.subr.bf16.mxu0 0
      %2299 = vmatpush1.bf16.msra.mxu0 0
      %2300 = vmatprep.subr.bf16.mxu0 0
      %2301 = vmatpush1.bf16.msra.mxu0 0
      %2302 = vmatprep.subr.bf16.mxu0 0
      %2303 = vmatpush1.bf16.msra.mxu0 0
      %2304 = vmatprep.subr.bf16.mxu0 0
      %2305 = vmatpush1.bf16.msra.mxu0 0
      %2306 = vmatprep.subr.bf16.mxu0 0
      %2307 = vmatpush1.bf16.msra.mxu0 0
      %2308 = vmatprep.subr.bf16.mxu0 0
      %2309 = vmatpush1.bf16.msra.mxu0 0
      %2310 = vmatprep.subr.bf16.mxu0 0
      %2311 = vmatpush1.bf16.msra.mxu0 0
      %2312 = vmatprep.subr.bf16.mxu0 0
      %2313 = vmatpush1.bf16.msra.mxu0 0
      %2314 = vmatprep.subr.bf16.mxu0 0
      %2315 = vmatpush1.bf16.msra.mxu0 0
      %2316 = vmatprep.subr.bf16.mxu0 0
      %2317 = vmatpush1.bf16.msra.mxu0 0
      %2318 = vmatprep.subr.bf16.mxu0 0
      %2319 = vmatpush1.bf16.msra.mxu0 0
      %2320 = vmatprep.subr.bf16.mxu0 0
      %2321 = vmatpush1.bf16.msra.mxu0 0
      %2322 = vmatprep.subr.bf16.mxu0 0
      %2323 = vmatpush1.bf16.msra.mxu0 0
      %2324 = vmatprep.subr.bf16.mxu0 0
      %2325 = vmatpush1.bf16.msra.mxu0 0
      %2326 = vmatprep.subr.bf16.mxu0 0
      %2327 = vmatpush1.bf16.msra.mxu0 0
      %2328 = vmatprep.mubr.bf16.mxu0 0
      %2329 = vmatmul.mubr.bf16.gmra.mrb[0].mxu0 %v1000
      %v2330 = vpop.f32.mrb[0].mxu0
      %v2331 = vadd.f32 0.0, %v2330
      %v2332 = vpop.f32.mrb[0].mxu0
      %v2333 = vpop.f32.mrb[0].mxu0
      %v2334 = vadd.f32 0.0, %v2333
      %v2335 = vpop.f32.mrb[0].mxu0
      %2336 = vmatprep.mubr.bf16.mxu0 0
      %2337 = vmatmul.mubr.bf16.gmra.mrb[0].mxu0 %v1003
      %v2338 = vpop.f32.mrb[0].mxu0
      %v2339 = vadd.f32 0.0, %v2338
      %v2340 = vpop.f32.mrb[0].mxu0
      %v2341 = vpop.f32.mrb[0].mxu0
      %v2342 = vadd.f32 0.0, %v2341
      %v2343 = vpop.f32.mrb[0].mxu0
      %2344 = vmatprep.mubr.bf16.mxu0 0
      %2345 = vmatmul.mubr.bf16.gmra.mrb[0].mxu0 %v1006
      %v2346 = vpop.f32.mrb[0].mxu0
      %v2347 = vadd.f32 0.0, %v2346
      %v2348 = vpop.f32.mrb[0].mxu0
      %v2349 = vpop.f32.mrb[0].mxu0
      %v2350 = vadd.f32 0.0, %v2349
      %v2351 = vpop.f32.mrb[0].mxu0
      %2352 = vmatprep.mubr.bf16.mxu0 0
      %2353 = vmatmul.mubr.bf16.gmra.mrb[0].mxu0 %v1009
      %v2354 = vpop.f32.mrb[0].mxu0
      %v2355 = vadd.f32 0.0, %v2354
      %v2356 = vpop.f32.mrb[0].mxu0
      %v2357 = vpop.f32.mrb[0].mxu0
      %v2358 = vadd.f32 0.0, %v2357
      %v2359 = vpop.f32.mrb[0].mxu0
      %2360 = vmatprep.mubr.bf16.mxu0 0
      %2361 = vmatmul.mubr.bf16.gmra.mrb[0].mxu0 %v1012
      %v2362 = vpop.f32.mrb[0].mxu0
      %v2363 = vadd.f32 0.0, %v2362
      %v2364 = vpop.f32.mrb[0].mxu0
      %v2365 = vpop.f32.mrb[0].mxu0
      %v2366 = vadd.f32 0.0, %v2365
      %v2367 = vpop.f32.mrb[0].mxu0
      %2368 = vmatprep.mubr.bf16.mxu0 0
      %2369 = vmatmul.mubr.bf16.gmra.mrb[0].mxu0 %v1015
      %v2370 = vpop.f32.mrb[0].mxu0
      %v2371 = vadd.f32 0.0, %v2370
      %v2372 = vpop.f32.mrb[0].mxu0
      %v2373 = vpop.f32.mrb[0].mxu0
      %v2374 = vadd.f32 0.0, %v2373
      %v2375 = vpop.f32.mrb[0].mxu0
      %2376 = vmatprep.mubr.bf16.mxu0 0
      %2377 = vmatmul.mubr.bf16.gmra.mrb[0].mxu0 %v1018
      %v2378 = vpop.f32.mrb[0].mxu0
      %v2379 = vadd.f32 0.0, %v2378
      %v2380 = vpop.f32.mrb[0].mxu0
      %v2381 = vpop.f32.mrb[0].mxu0
      %v2382 = vadd.f32 0.0, %v2381
      %v2383 = vpop.f32.mrb[0].mxu0
      %2384 = vmatprep.mubr.bf16.mxu0 0
      %2385 = vmatmul.mubr.bf16.gmra.mrb[0].mxu0 %v1021
      %v2386 = vpop.f32.mrb[0].mxu0
      %v2387 = vadd.f32 0.0, %v2386
      %v2388 = vpop.f32.mrb[0].mxu0
      %v2389 = vpop.f32.mrb[0].mxu0
      %v2390 = vadd.f32 0.0, %v2389
      %v2391 = vpop.f32.mrb[0].mxu0
      %2392 = vmatprep.mubr.bf16.mxu0 0
      %2393 = vmatmul.mubr.bf16.gmra.mrb[0].mxu0 %v1024
      %v2394 = vpop.f32.mrb[0].mxu0
      %v2395 = vadd.f32 0.0, %v2394
      %v2396 = vpop.f32.mrb[0].mxu0
      %v2397 = vpop.f32.mrb[0].mxu0
      %v2398 = vadd.f32 0.0, %v2397
      %v2399 = vpop.f32.mrb[0].mxu0
      %2400 = vmatprep.mubr.bf16.mxu0 0
      %2401 = vmatmul.mubr.bf16.gmra.mrb[0].mxu0 %v1027
      %v2402 = vpop.f32.mrb[0].mxu0
      %v2403 = vadd.f32 0.0, %v2402
      %v2404 = vpop.f32.mrb[0].mxu0
      %v2405 = vpop.f32.mrb[0].mxu0
      %v2406 = vadd.f32 0.0, %v2405
      %v2407 = vpop.f32.mrb[0].mxu0
      %2408 = vmatprep.mubr.bf16.mxu0 0
      %2409 = vmatmul.mubr.bf16.gmra.mrb[0].mxu0 %v1030
      %v2410 = vpop.f32.mrb[0].mxu0
      %v2411 = vadd.f32 0.0, %v2410
      %v2412 = vpop.f32.mrb[0].mxu0
      %v2413 = vpop.f32.mrb[0].mxu0
      %v2414 = vadd.f32 0.0, %v2413
      %v2415 = vpop.f32.mrb[0].mxu0
      %2416 = vmatprep.mubr.bf16.mxu0 0
      %2417 = vmatmul.mubr.bf16.gmra.mrb[0].mxu0 %v1033
      %v2418 = vpop.f32.mrb[0].mxu0
      %v2419 = vadd.f32 0.0, %v2418
      %v2420 = vpop.f32.mrb[0].mxu0
      %v2421 = vpop.f32.mrb[0].mxu0
      %v2422 = vadd.f32 0.0, %v2421
      %v2423 = vpop.f32.mrb[0].mxu0
      %2424 = vmatprep.mubr.bf16.mxu0 0
      %2425 = vmatmul.mubr.bf16.gmra.mrb[0].mxu0 %v1036
      %v2426 = vpop.f32.mrb[0].mxu0
      %v2427 = vadd.f32 0.0, %v2426
      %v2428 = vpop.f32.mrb[0].mxu0
      %v2429 = vpop.f32.mrb[0].mxu0
      %v2430 = vadd.f32 0.0, %v2429
      %v2431 = vpop.f32.mrb[0].mxu0
      %2432 = vmatprep.mubr.bf16.mxu0 0
      %2433 = vmatmul.mubr.bf16.gmra.mrb[0].mxu0 %v1039
      %v2434 = vpop.f32.mrb[0].mxu0
      %v2435 = vadd.f32 0.0, %v2434
      %v2436 = vpop.f32.mrb[0].mxu0
      %v2437 = vpop.f32.mrb[0].mxu0
      %v2438 = vadd.f32 0.0, %v2437
      %v2439 = vpop.f32.mrb[0].mxu0
      %2440 = vmatprep.mubr.bf16.mxu0 0
      %2441 = vmatmul.mubr.bf16.gmra.mrb[0].mxu0 %v1667
      %v2442 = vpop.f32.mrb[0].mxu0
      %v2443 = vadd.f32 0.0, %v2442
      %v2444 = vpop.f32.mrb[0].mxu0
      %v2445 = vpop.f32.mrb[0].mxu0
      %v2446 = vadd.f32 0.0, %v2445
      %v2447 = vpop.f32.mrb[0].mxu0
      %2448 = vmatprep.mubr.bf16.mxu0 0
      %2449 = vmatmul.mubr.bf16.gmra.mrb[0].mxu0 %v2291
      %v2450 = vpop.f32.mrb[0].mxu0
      %v2451 = vadd.f32 0.0, %v2450
      %v2452 = vpop.f32.mrb[0].mxu0
      %v2453 = vpop.f32.mrb[0].mxu0
      %v2454 = vadd.f32 0.0, %v2453
      %v2455 = vpop.f32.mrb[0].mxu0
      %2456 = vdwg.mxu0
      %v2457 = vadd.f32 %v2249, %v2331
      %v2458 = vadd.f32 %v2250, %v2334
      %v2459 = vadd.f32 %v2251, %v2339
      %v2460 = vadd.f32 %v2252, %v2342
      %v2461 = vadd.f32 %v2253, %v2347
      %v2462 = vadd.f32 %v2254, %v2350
      %v2463 = vadd.f32 %v2255, %v2355
      %v2464 = vadd.f32 %v2256, %v2358
      %v2465 = vadd.f32 %v2257, %v2363
      %v2466 = vadd.f32 %v2258, %v2366
      %v2467 = vadd.f32 %v2259, %v2371
      %v2468 = vadd.f32 %v2260, %v2374
      %v2469 = vadd.f32 %v2261, %v2379
      %v2470 = vadd.f32 %v2262, %v2382
      %v2471 = vadd.f32 %v2263, %v2387
      %v2472 = vadd.f32 %v2264, %v2390
      %v2473 = vadd.f32 %v2265, %v2395
      %v2474 = vadd.f32 %v2266, %v2398
      %v2475 = vadd.f32 %v2267, %v2403
      %v2476 = vadd.f32 %v2268, %v2406
      %v2477 = vadd.f32 %v2269, %v2411
      %v2478 = vadd.f32 %v2270, %v2414
      %v2479 = vadd.f32 %v2271, %v2419
      %v2480 = vadd.f32 %v2272, %v2422
      %v2481 = vadd.f32 %v2273, %v2427
      %v2482 = vadd.f32 %v2274, %v2430
      %v2483 = vadd.f32 %v2275, %v2435
      %v2484 = vadd.f32 %v2276, %v2438
      %v2485 = vadd.f32 %v2277, %v2443
      %v2486 = vadd.f32 %v2278, %v2446
      %v2487 = vadd.f32 %v2279, %v2451
      %v2488 = vadd.f32 %v2280, %v2454
      %2489 = vst [vmem:[%s177] sm:$0xff] %v2457
      %2490 = vst [vmem:[%s177 + $0x8] sm:$0xff] %v2458
      %2491 = vst [vmem:[%s177 + $0x10] sm:$0xff] %v2459
      %2492 = vst [vmem:[%s177 + $0x18] sm:$0xff] %v2460
      %2493 = vst [vmem:[%s177 + $0x20] sm:$0xff] %v2461
      %2494 = vst [vmem:[%s177 + $0x28] sm:$0xff] %v2462
      %2495 = vst [vmem:[%s177 + $0x30] sm:$0xff] %v2463
      %2496 = vst [vmem:[%s177 + $0x38] sm:$0xff] %v2464
      %2497 = vst [vmem:[%s177 + $0x40] sm:$0xff] %v2465
      %2498 = vst [vmem:[%s177 + $0x48] sm:$0xff] %v2466
      %2499 = vst [vmem:[%s177 + $0x50] sm:$0xff] %v2467
      %2500 = vst [vmem:[%s177 + $0x58] sm:$0xff] %v2468
      %2501 = vst [vmem:[%s177 + $0x60] sm:$0xff] %v2469
      %2502 = vst [vmem:[%s177 + $0x68] sm:$0xff] %v2470
      %2503 = vst [vmem:[%s177 + $0x70] sm:$0xff] %v2471
      %2504 = vst [vmem:[%s177 + $0x78] sm:$0xff] %v2472
      %2505 = vst [vmem:[%s177 + $0x80] sm:$0xff] %v2473
      %2506 = vst [vmem:[%s177 + $0x88] sm:$0xff] %v2474
      %2507 = vst [vmem:[%s177 + $0x90] sm:$0xff] %v2475
      %2508 = vst [vmem:[%s177 + $0x98] sm:$0xff] %v2476
      %2509 = vst [vmem:[%s177 + $0xa0] sm:$0xff] %v2477
      %2510 = vst [vmem:[%s177 + $0xa8] sm:$0xff] %v2478
      %2511 = vst [vmem:[%s177 + $0xb0] sm:$0xff] %v2479
      %2512 = vst [vmem:[%s177 + $0xb8] sm:$0xff] %v2480
      %2513 = vst [vmem:[%s177 + $0xc0] sm:$0xff] %v2481
      %2514 = vst [vmem:[%s177 + $0xc8] sm:$0xff] %v2482
      %2515 = vst [vmem:[%s177 + $0xd0] sm:$0xff] %v2483
      %2516 = vst [vmem:[%s177 + $0xd8] sm:$0xff] %v2484
      %2517 = vst [vmem:[%s177 + $0xe0] sm:$0xff] %v2485
      %2518 = vst [vmem:[%s177 + $0xe8] sm:$0xff] %v2486
      %2519 = vst [vmem:[%s177 + $0xf0] sm:$0xff] %v2487
      %2520 = vst [vmem:[%s177 + $0xf8] sm:$0xff] %v2488
      %v2521 = vadd.f32 %v2457, %v2458
      %v2522 = vadd.f32 %v2521, %v2459
      %v2523 = vadd.f32 %v2522, %v2460
      %v2524 = vadd.f32 %v2523, %v2461
      %v2525 = vadd.f32 %v2524, %v2462
      %v2526 = vadd.f32 %v2525, %v2463
      %v2527 = vadd.f32 %v2526, %v2464
      %v2528 = vadd.f32 %v2527, %v2465
      %v2529 = vadd.f32 %v2528, %v2466
      %v2530 = vadd.f32 %v2529, %v2467
      %v2531 = vadd.f32 %v2530, %v2468
      %v2532 = vadd.f32 %v2531, %v2469
      %v2533 = vadd.f32 %v2532, %v2470
      %v2534 = vadd.f32 %v2533, %v2471
      %v2535 = vadd.f32 %v2534, %v2472
      %v2536 = vadd.f32 %v2535, %v2473
      %v2537 = vadd.f32 %v2536, %v2474
      %v2538 = vadd.f32 %v2537, %v2475
      %v2539 = vadd.f32 %v2538, %v2476
      %v2540 = vadd.f32 %v2539, %v2477
      %v2541 = vadd.f32 %v2540, %v2478
      %v2542 = vadd.f32 %v2541, %v2479
      %v2543 = vadd.f32 %v2542, %v2480
      %v2544 = vadd.f32 %v2543, %v2481
      %v2545 = vadd.f32 %v2544, %v2482
      %v2546 = vadd.f32 %v2545, %v2483
      %v2547 = vadd.f32 %v2546, %v2484
      %v2548 = vadd.f32 %v2547, %v2485
      %v2549 = vadd.f32 %v2548, %v2486
      %v2550 = vadd.f32 %v2549, %v2487
      %v2551 = vadd.f32 %v2550, %v2488
      %v2552 = vrot.slane %v2551, 4
      %v2553 = vadd.f32 %v2551, %v2552
      %v2554 = vrot.slane %v2553, 2
      %v2555 = vadd.f32 %v2553, %v2554
      %v2556 = vrot.slane %v2555, 1
      %v2557 = vadd.f32 %v2555, %v2556
      %v2558 = vmul.f32 %v2457, %v2457
      %v2559 = vmul.f32 %v2458, %v2458
      %v2560 = vmul.f32 %v2459, %v2459
      %v2561 = vmul.f32 %v2460, %v2460
      %v2562 = vmul.f32 %v2461, %v2461
      %v2563 = vmul.f32 %v2462, %v2462
      %v2564 = vmul.f32 %v2463, %v2463
      %v2565 = vmul.f32 %v2464, %v2464
      %v2566 = vmul.f32 %v2465, %v2465
      %v2567 = vmul.f32 %v2466, %v2466
      %v2568 = vmul.f32 %v2467, %v2467
      %v2569 = vmul.f32 %v2468, %v2468
      %v2570 = vmul.f32 %v2469, %v2469
      %v2571 = vmul.f32 %v2470, %v2470
      %v2572 = vmul.f32 %v2471, %v2471
      %v2573 = vmul.f32 %v2472, %v2472
      %v2574 = vmul.f32 %v2473, %v2473
      %v2575 = vmul.f32 %v2474, %v2474
      %v2576 = vmul.f32 %v2475, %v2475
      %v2577 = vmul.f32 %v2476, %v2476
      %v2578 = vmul.f32 %v2477, %v2477
      %v2579 = vmul.f32 %v2478, %v2478
      %v2580 = vmul.f32 %v2479, %v2479
      %v2581 = vmul.f32 %v2480, %v2480
      %v2582 = vmul.f32 %v2481, %v2481
      %v2583 = vmul.f32 %v2482, %v2482
      %v2584 = vmul.f32 %v2483, %v2483
      %v2585 = vmul.f32 %v2484, %v2484
      %v2586 = vmul.f32 %v2485, %v2485
      %v2587 = vmul.f32 %v2486, %v2486
      %v2588 = vmul.f32 %v2487, %v2487
      %v2589 = vmul.f32 %v2488, %v2488
      %v2590 = vadd.f32 %v2558, %v2559
      %v2591 = vadd.f32 %v2590, %v2560
      %v2592 = vadd.f32 %v2591, %v2561
      %v2593 = vadd.f32 %v2592, %v2562
      %v2594 = vadd.f32 %v2593, %v2563
      %v2595 = vadd.f32 %v2594, %v2564
      %v2596 = vadd.f32 %v2595, %v2565
      %v2597 = vadd.f32 %v2596, %v2566
      %v2598 = vadd.f32 %v2597, %v2567
      %v2599 = vadd.f32 %v2598, %v2568
      %v2600 = vadd.f32 %v2599, %v2569
      %v2601 = vadd.f32 %v2600, %v2570
      %v2602 = vadd.f32 %v2601, %v2571
      %v2603 = vadd.f32 %v2602, %v2572
      %v2604 = vadd.f32 %v2603, %v2573
      %v2605 = vadd.f32 %v2604, %v2574
      %v2606 = vadd.f32 %v2605, %v2575
      %v2607 = vadd.f32 %v2606, %v2576
      %v2608 = vadd.f32 %v2607, %v2577
      %v2609 = vadd.f32 %v2608, %v2578
      %v2610 = vadd.f32 %v2609, %v2579
      %v2611 = vadd.f32 %v2610, %v2580
      %v2612 = vadd.f32 %v2611, %v2581
      %v2613 = vadd.f32 %v2612, %v2582
      %v2614 = vadd.f32 %v2613, %v2583
      %v2615 = vadd.f32 %v2614, %v2584
      %v2616 = vadd.f32 %v2615, %v2585
      %v2617 = vadd.f32 %v2616, %v2586
      %v2618 = vadd.f32 %v2617, %v2587
      %v2619 = vadd.f32 %v2618, %v2588
      %v2620 = vadd.f32 %v2619, %v2589
      %v2621 = vrot.slane %v2620, 4
      %v2622 = vadd.f32 %v2620, %v2621
      %v2623 = vrot.slane %v2622, 2
      %v2624 = vadd.f32 %v2622, %v2623
      %v2625 = vrot.slane %v2624, 1
      %v2626 = vadd.f32 %v2624, %v2625
      %vm2627 = vcmask 1040384
      %v2628 = vsel %vm2627, %v2557, %v2626
      %v2629 = vsel %vm486, %v2628, 0.0
      %2630 = vst [vmem:[%s182] sm:$0xff] %v2629
      %s2631 = smul.u32 32, %s15
      %p2632 = scmp.lt.s32.totalorder %s2631, 63
      %s2633 = scalar_select %p2632, %s2631, 63
      %s2634 = smul.addr %s2633, 8
      %s2635 = scalar_lea.vmem %s2, %s2634
      %p2636 = scmp.lt.s32.totalorder %s15, 1
      %s2637 = scalar_select %p2636, %s15, 1
      %s2638 = smul.addr %s2637, 8
      %s2639 = scalar_lea.vmem %s3, %s2638
      // Predicated region
      $region29: #{cnn_basic_block_forward.2} parent=27 // pred_check
        %p2640 = pneg %p80
      $region30: #{cnn_basic_block_forward.2} parent=27 // pred_check_branch
        %2642 = sbr.rel (%p2640) target = $region32
      $region31: #{cnn_basic_block_forward.2} parent=27 // pred_region
        %s2643 = smul.u32 32, %s15
      $region32: #{cnn_basic_block_forward.2} parent=27 // pred_fallthru
        _
      // Predicated region
      $region33: #{cnn_basic_block_forward.2} parent=27 // pred_check
        %p2644 = pneg %p106
      $region34: #{cnn_basic_block_forward.2} parent=27 // pred_check_branch
        %2646 = sbr.rel (%p2644) target = $region36
      $region35: #{cnn_basic_block_forward.2} parent=27 // pred_region
        _
      $region36: #{cnn_basic_block_forward.2} parent=27 // pred_fallthru
        _
    $region28: #{cnn_basic_block_forward.2} parent=5 // pred_fallthru
      _
    %p2647 = scmp.le.s32.totalorder 2, %s10
    // Predicated region
    $region37: #{cnn_basic_block_forward.2} parent=5 // pred_check
      %p2648 = pneg %p2647
    $region38: #{cnn_basic_block_forward.2} parent=5 // pred_check_branch
      %2650 = sbr.rel (%p2648) target = $region40
    $region39: #{cnn_basic_block_forward.2} parent=5 // pred_region
      %s2651 = ssub.s32 %s10, 2
      // Predicated region
      $region41: #{cnn_basic_block_forward.2} parent=39 // pred_check
        %p2652 = pneg %p86
      $region42: #{cnn_basic_block_forward.2} parent=39 // pred_check_branch
        %2654 = sbr.rel (%p2652) target = $region44
      $region43: #{cnn_basic_block_forward.2} parent=39 // pred_region
        %s2655 = smul.u32 32, %s16
        %p2656 = scmp.lt.s32.totalorder %s2655, 63
        %s2657 = scalar_select %p2656, %s2655, 63
        %s2658 = smul.addr %s2657, 8
        %s2659 = scalar_lea.vmem %s2, %s2658
      $region44: #{cnn_basic_block_forward.2} parent=39 // pred_fallthru
        _
      // Predicated region
      $region45: #{cnn_basic_block_forward.2} parent=39 // pred_check
        %p2660 = pneg %p112
      $region46: #{cnn_basic_block_forward.2} parent=39 // pred_check_branch
        %2662 = sbr.rel (%p2660) target = $region48
      $region47: #{cnn_basic_block_forward.2} parent=39 // pred_region
        %p2663 = scmp.lt.s32.totalorder %s16, 1
        %s2664 = scalar_select %p2663, %s16, 1
        %s2665 = smul.addr %s2664, 8
        %s2666 = scalar_lea.vmem %s3, %s2665
      $region48: #{cnn_basic_block_forward.2} parent=39 // pred_fallthru
        _
    $region40: #{cnn_basic_block_forward.2} parent=5 // pred_fallthru
      _
  $region6: #{cnn_basic_block_forward.2} parent=0 // loop_footer
    %s14 = sadd.s32 1, %s10
  $region7: #{cnn_basic_block_forward.2} parent=0 // loop_footer_branch
    %9 = sbr.rel target = $region3
  $region8: #{cnn_basic_block_forward.2} parent=0 // loop_exit
    _

</llo_original>
